<compile_context>
chip_gen: v6e
topology: v6e:2x2x1
jax: 0.10.0
libtpu: 0.0.40
codegen_flags: <defaults>
</compile_context>

<pallas_src>
import functools

import jax
import jax.numpy as jnp
from jax.experimental import pallas as pl
from jax.experimental.pallas import tpu as pltpu

_EPS = 1e-7


def _rotated_bbox_loss_kernel(tss_ref, pred_ref, tgt_ref, anc_ref, sc_ref,
                              fg_ref, pd_ref, iou_out_ref, dfl_out_ref,
                              acc_iou_ref, acc_dfl_ref, *, reg_max: int):
    """One grid step handles a tile of trows*128 anchor positions.

    tss_ref  : (1,)   f32 SMEM        target_scores_sum
    pred_ref : (5, trows, 128)        pred rotated boxes (cx, cy, w, h, angle)
    tgt_ref  : (5, trows, 128)        target rotated boxes
    anc_ref  : (2, trows, 128)        anchor points (x, y)
    sc_ref   : (C, trows, 128)        target scores (class-major planes)
    fg_ref   : (trows, 128)           fg mask as f32 (0 in padding)
    pd_ref   : (4, reg_max, trows, 128) DFL logits (side-, bin-major planes)
    iou/dfl_out_ref : (1, 1) f32 SMEM scalar outputs
    acc_*_ref : (trows, 128) f32 VMEM partial-sum accumulators
    """
    g = pl.program_id(0)

    @pl.when(g == 0)
    def _init():
        acc_iou_ref[...] = jnp.zeros_like(acc_iou_ref)
        acc_dfl_ref[...] = jnp.zeros_like(acc_dfl_ref)

    fg = fg_ref[...]
    weight = jnp.sum(sc_ref[...], axis=0)            # target_scores.sum(-1)

    pb = pred_ref[...]
    tb = tgt_ref[...]
    px, py, pw, ph, pa = pb[0], pb[1], pb[2], pb[3], pb[4]
    tx, ty, tw, th, ta = tb[0], tb[1], tb[2], tb[3], tb[4]

    # ---------------- probiou(pred, target) ----------------
    a1 = pw * pw * (1.0 / 12.0)
    b1 = ph * ph * (1.0 / 12.0)
    cos1 = jnp.cos(pa)
    sin1 = jnp.sin(pa)
    A1 = a1 * cos1 * cos1 + b1 * sin1 * sin1
    B1 = a1 * sin1 * sin1 + b1 * cos1 * cos1
    C1 = (a1 - b1) * cos1 * sin1

    a2 = tw * tw * (1.0 / 12.0)
    b2 = th * th * (1.0 / 12.0)
    cos2 = jnp.cos(ta)
    sin2 = jnp.sin(ta)
    A2 = a2 * cos2 * cos2 + b2 * sin2 * sin2
    B2 = a2 * sin2 * sin2 + b2 * cos2 * cos2
    C2 = (a2 - b2) * cos2 * sin2

    SA = A1 + A2
    SB = B1 + B2
    SC = C1 + C2
    denom = SA * SB - SC * SC
    inv_denom = 1.0 / (denom + _EPS)
    t1 = (SA * (py - ty) * (py - ty) + SB * (px - tx) * (px - tx)) * inv_denom * 0.25
    t2 = (SC * (tx - px) * (py - ty)) * inv_denom * 0.5
    det1 = jnp.maximum(A1 * B1 - C1 * C1, 0.0)
    det2 = jnp.maximum(A2 * B2 - C2 * C2, 0.0)
    t3 = 0.5 * jnp.log(denom / (4.0 * jnp.sqrt(det1 * det2) + _EPS) + _EPS)
    bd = jnp.clip(t1 + t2 + t3, _EPS, 100.0)
    hd = jnp.sqrt(1.0 - jnp.exp(-bd) + _EPS)          # == 1 - probiou
    acc_iou_ref[...] = acc_iou_ref[...] + jnp.where(fg > 0.5, hd * weight, 0.0)

    # ---------------- DFL loss ----------------
    ax = anc_ref[0]
    ay = anc_ref[1]
    reg_hi = float(reg_max - 1) - 0.01                # bbox2dist / DFLoss clamp
    hw = tw * 0.5
    hh = th * 0.5
    d_l = jnp.clip(ax - (tx - hw), 0.0, reg_hi)
    d_t = jnp.clip(ay - (ty - hh), 0.0, reg_hi)
    d_r = jnp.clip((tx + hw) - ax, 0.0, reg_hi)
    d_b = jnp.clip((ty + hh) - ay, 0.0, reg_hi)

    dfl = jnp.zeros_like(fg)
    for s, tgt_s in enumerate((d_l, d_t, d_r, d_b)):
        # Stable log-sum-exp over the reg_max bins; bins are the leading plane
        # axis so every reduction stays element-wise on dense (trows,128) tiles.
        m = pd_ref[s, 0]
        for j in range(1, reg_max):
            m = jnp.maximum(m, pd_ref[s, j])
        tl = jnp.floor(tgt_s)                         # left bin index (float)
        wl = (tl + 1.0) - tgt_s
        wr = 1.0 - wl
        sum_e = jnp.zeros_like(m)
        gathered = jnp.zeros_like(m)
        for j in range(reg_max):
            z_j = pd_ref[s, j]
            sum_e = sum_e + jnp.exp(z_j - m)
            # bin j contributes wl if j == tl, wr if j == tl + 1 (one-hot gather)
            sel = jnp.where(tl == j, wl, 0.0) + jnp.where(tl == (j - 1), wr, 0.0)
            gathered = gathered + sel * z_j
        lse = m + jnp.log(sum_e)
        # wl*(lse - z[tl]) + wr*(lse - z[tr]) == lse - (wl*z[tl] + wr*z[tr])
        dfl = dfl + (lse - gathered)
    dfl = dfl * 0.25                                   # .mean(-1) over 4 sides
    acc_dfl_ref[...] = acc_dfl_ref[...] + jnp.where(fg > 0.5, dfl * weight, 0.0)

    @pl.when(g == pl.num_programs(0) - 1)
    def _finalize():
        inv_tss = 1.0 / tss_ref[0]
        iou_out_ref[0, 0] = jnp.sum(acc_iou_ref[...]) * inv_tss
        dfl_out_ref[0, 0] = jnp.sum(acc_dfl_ref[...]) * inv_tss


def rotated_bbox_loss(pred_dist, pred_bboxes, anchor_points, target_bboxes,
                      target_scores, target_scores_sum, fg_mask,
                      *, reg_max: int = 16, block_anchors: int = 4096):
    """Pallas equivalent of RotatedBboxLoss.forward. Returns (loss_iou, loss_dfl)."""
    if reg_max <= 1:
        # TODO(synk): reg_max == 1 (no-DFL) path not implemented.
        raise NotImplementedError("reg_max must be > 1")

    B, N, _ = pred_bboxes.shape
    C = target_scores.shape[-1]
    M = B * N

    T = block_anchors
    assert T % 1024 == 0, "block_anchors must be a multiple of 1024 (8 sublane rows)"
    G = -(-M // T)                 # grid steps over anchor tiles
    Mp = G * T                     # padded anchor count (fg == 0 in the tail)
    trows = T // 128
    Mr = Mp // 128
    f32 = jnp.float32

    def planes(x):                 # (M, R) -> (R, Mr, 128) coordinate-major planes
        x = jnp.pad(x.astype(f32), ((0, Mp - M), (0, 0)))
        return x.T.reshape(x.shape[1], Mr, 128)

    pred_pl = planes(pred_bboxes.reshape(M, 5))
    tgt_pl = planes(target_bboxes.reshape(M, 5))
    anc_pl = planes(jnp.broadcast_to(anchor_points[None], (B, N, 2)).reshape(M, 2))
    sc_pl = planes(target_scores.reshape(M, C))
    fg_pl = planes(fg_mask.reshape(M, 1).astype(f32))[0]           # (Mr, 128)

    pd = jnp.pad(pred_dist.astype(f32).reshape(M, 4, reg_max),
                 ((0, Mp - M), (0, 0), (0, 0)))
    pd_pl = jnp.transpose(pd, (1, 2, 0)).reshape(4, reg_max, Mr, 128)

    tss = jnp.reshape(jnp.asarray(target_scores_sum, f32), (1,))

    kernel = functools.partial(_rotated_bbox_loss_kernel, reg_max=reg_max)
    grid_spec = pltpu.PrefetchScalarGridSpec(
        num_scalar_prefetch=0,
        grid=(G,),
        in_specs=[
            pl.BlockSpec(memory_space=pltpu.SMEM),                        # tss
            pl.BlockSpec((5, trows, 128), lambda g: (0, g, 0)),           # pred boxes
            pl.BlockSpec((5, trows, 128), lambda g: (0, g, 0)),           # target boxes
            pl.BlockSpec((2, trows, 128), lambda g: (0, g, 0)),           # anchors
            pl.BlockSpec((C, trows, 128), lambda g: (0, g, 0)),           # target scores
            pl.BlockSpec((trows, 128), lambda g: (g, 0)),                 # fg mask
            pl.BlockSpec((4, reg_max, trows, 128), lambda g: (0, 0, g, 0)),  # DFL logits
        ],
        out_specs=[
            pl.BlockSpec(memory_space=pltpu.SMEM),
            pl.BlockSpec(memory_space=pltpu.SMEM),
        ],
        scratch_shapes=[
            pltpu.VMEM((trows, 128), f32),
            pltpu.VMEM((trows, 128), f32),
        ],
    )
    loss_iou, loss_dfl = pl.pallas_call(
        kernel,
        out_shape=(jax.ShapeDtypeStruct((1, 1), f32),
                   jax.ShapeDtypeStruct((1, 1), f32)),
        grid_spec=grid_spec,
        compiler_params=pltpu.CompilerParams(
            dimension_semantics=("arbitrary",)),
    )(tss, pred_pl, tgt_pl, anc_pl, sc_pl, fg_pl, pd_pl)
    return loss_iou[0, 0], loss_dfl[0, 0]


# ----------------------- pure-JAX reference -----------------------
def _ref_rotated_bbox_loss(pred_dist, pred_bboxes, anchor_points, target_bboxes,
                           target_scores, target_scores_sum, fg_mask, reg_max=16):
    eps = 1e-7
    fg = fg_mask.astype(bool)
    weight = jnp.sum(target_scores.astype(jnp.float32), -1)

    def cov(b):
        a = b[..., 2] ** 2 / 12.0
        bb = b[..., 3] ** 2 / 12.0
        c = b[..., 4]
        cos, sin = jnp.cos(c), jnp.sin(c)
        return (a * cos ** 2 + bb * sin ** 2,
                a * sin ** 2 + bb * cos ** 2,
                (a - bb) * cos * sin)

    x1, y1 = pred_bboxes[..., 0], pred_bboxes[..., 1]
    x2, y2 = target_bboxes[..., 0], target_bboxes[..., 1]
    a1, b1, c1 = cov(pred_bboxes)
    a2, b2, c2 = cov(target_bboxes)
    den = (a1 + a2) * (b1 + b2) - (c1 + c2) ** 2
    t1 = ((a1 + a2) * (y1 - y2) ** 2 + (b1 + b2) * (x1 - x2) ** 2) / (den + eps) * 0.25
    t2 = ((c1 + c2) * (x2 - x1) * (y1 - y2)) / (den + eps) * 0.5
    t3 = jnp.log(den / (4.0 * jnp.sqrt(jnp.clip(a1 * b1 - c1 ** 2, 0, None) *
                                       jnp.clip(a2 * b2 - c2 ** 2, 0, None)) + eps) + eps) * 0.5
    bd = jnp.clip(t1 + t2 + t3, eps, 100.0)
    iou = 1.0 - jnp.sqrt(1.0 - jnp.exp(-bd) + eps)
    loss_iou = jnp.sum(jnp.where(fg, (1.0 - iou) * weight, 0.0)) / target_scores_sum

    cx, cy, w, h = (target_bboxes[..., i] for i in range(4))
    xyxy = jnp.stack([cx - w / 2, cy - h / 2, cx + w / 2, cy + h / 2], -1)
    lt = anchor_points[None] - xyxy[..., :2]
    rb = xyxy[..., 2:] - anchor_points[None]
    tgt_ltrb = jnp.clip(jnp.concatenate([lt, rb], -1), 0.0, reg_max - 1 - 0.01)
    pd = pred_dist.astype(jnp.float32).reshape(*pred_dist.shape[:-1], 4, reg_max)
    lse = jax.nn.logsumexp(pd, -1)
    tl = jnp.floor(tgt_ltrb)
    wl = tl + 1.0 - tgt_ltrb
    wr = 1.0 - wl
    zl = jnp.take_along_axis(pd, tl.astype(jnp.int32)[..., None], -1)[..., 0]
    zr = jnp.take_along_axis(pd, (tl + 1.0).astype(jnp.int32)[..., None], -1)[..., 0]
    dfl = jnp.mean(wl * (lse - zl) + wr * (lse - zr), -1)
    loss_dfl = jnp.sum(jnp.where(fg, dfl * weight, 0.0)) / target_scores_sum
    return loss_iou, loss_dfl


if __name__ == "__main__":
    key = jax.random.PRNGKey(0)
    ks = jax.random.split(key, 8)
    B, N, C, reg_max = 2, 640, 4, 16       # M = 1280 anchors -> 2 grid steps @ 1024

    def make_boxes(k):
        k1, k2, k3 = jax.random.split(k, 3)
        cxy = jax.random.uniform(k1, (B, N, 2), jnp.float32, 2.0, 30.0)
        wh = jax.random.uniform(k2, (B, N, 2), jnp.float32, 1.0, 8.0)
        ang = jax.random.uniform(k3, (B, N, 1), jnp.float32, -0.7, 0.7)
        return jnp.concatenate([cxy, wh, ang], axis=-1)

    pred_bboxes = make_boxes(ks[0])                                   # (B, N, 5)
    target_bboxes = make_boxes(ks[1])                                 # (B, N, 5)
    anchor_points = jax.random.uniform(ks[2], (N, 2), jnp.float32, 2.0, 30.0)
    pred_dist = jax.random.normal(ks[3], (B, N, 4 * reg_max), jnp.float32)
    target_scores = jax.random.uniform(ks[4], (B, N, C), jnp.float32, 0.0, 1.0)
    fg_mask = jax.random.bernoulli(ks[5], 0.5, (B, N))
    target_scores_sum = jnp.maximum(jnp.sum(target_scores), 1.0)

    loss_fn = jax.jit(functools.partial(rotated_bbox_loss,
                                        reg_max=reg_max, block_anchors=1024))
    loss_iou, loss_dfl = jax.block_until_ready(
        loss_fn(pred_dist, pred_bboxes, anchor_points, target_bboxes,
                target_scores, target_scores_sum, fg_mask))

    ref_iou, ref_dfl = _ref_rotated_bbox_loss(
        pred_dist, pred_bboxes, anchor_points, target_bboxes,
        target_scores, target_scores_sum, fg_mask, reg_max=reg_max)

    assert jnp.allclose(loss_iou, ref_iou, atol=5e-4, rtol=5e-4), (loss_iou, ref_iou)
    assert jnp.allclose(loss_dfl, ref_dfl, atol=5e-4, rtol=5e-4), (loss_dfl, ref_dfl)
    print("KERNEL_OK")
</pallas_src>

<mosaic_0001>
module attributes {stable_mosaic.version = 11 : i64} {
  func.func @_rotated_bbox_loss_kernel(%arg0: i32, %arg1: memref<1xf32, #tpu.memory_space<smem>>, %arg2: memref<5x8x128xf32, #tpu.memory_space<vmem>>, %arg3: memref<5x8x128xf32, #tpu.memory_space<vmem>>, %arg4: memref<2x8x128xf32, #tpu.memory_space<vmem>>, %arg5: memref<4x8x128xf32, #tpu.memory_space<vmem>>, %arg6: memref<8x128xf32, #tpu.memory_space<vmem>>, %arg7: memref<4x16x8x128xf32, #tpu.memory_space<vmem>>, %arg8: memref<1x1xf32, #tpu.memory_space<smem>>, %arg9: memref<1x1xf32, #tpu.memory_space<smem>>, %arg10: memref<8x128xf32, #tpu.memory_space<vmem>>, %arg11: memref<8x128xf32, #tpu.memory_space<vmem>>) attributes {dimension_semantics = [#tpu.dimension_semantics<arbitrary>], iteration_bounds = array<i64: 2>, scalar_prefetch = 0 : i64, scratch_operands = 2 : i64, tpu.core_type = #tpu.core_type<tc>, window_params = [{transform_indices = @transform_0, window_bounds = array<i64: 1>}, {transform_indices = @transform_1, window_bounds = array<i64: 5, 8, 128>}, {transform_indices = @transform_2, window_bounds = array<i64: 5, 8, 128>}, {transform_indices = @transform_3, window_bounds = array<i64: 2, 8, 128>}, {transform_indices = @transform_4, window_bounds = array<i64: 4, 8, 128>}, {transform_indices = @transform_5, window_bounds = array<i64: 8, 128>}, {transform_indices = @transform_6, window_bounds = array<i64: 4, 16, 8, 128>}, {transform_indices = @transform_7, window_bounds = array<i64: 1, 1>}, {transform_indices = @transform_8, window_bounds = array<i64: 1, 1>}]} {
    %c0_i32 = arith.constant 0 : i32
    %0 = arith.cmpi eq, %arg0, %c0_i32 : i32
    %1 = arith.extui %0 : i1 to i32
    %c0_i32_0 = arith.constant 0 : i32
    %2 = arith.cmpi ne, %1, %c0_i32_0 : i32
    scf.if %2 {
      %cst_830 = arith.constant 0.000000e+00 : f32
      %1449 = vector.broadcast %cst_830 : f32 to vector<8x128xf32>
      %c0_831 = arith.constant 0 : index
      %c0_832 = arith.constant 0 : index
      %1450 = vector.load %arg10[%c0_831, %c0_832] : memref<8x128xf32, #tpu.memory_space<vmem>>, vector<8x128xf32>
      tpu.vector_store %arg10[%c0_831, %c0_832], %1449 {strides = array<i32>} : memref<8x128xf32, #tpu.memory_space<vmem>>, vector<8x128xf32>,
      %cst_833 = arith.constant 0.000000e+00 : f32
      %1451 = vector.broadcast %cst_833 : f32 to vector<8x128xf32>
      %c0_834 = arith.constant 0 : index
      %c0_835 = arith.constant 0 : index
      %1452 = vector.load %arg11[%c0_834, %c0_835] : memref<8x128xf32, #tpu.memory_space<vmem>>, vector<8x128xf32>
      tpu.vector_store %arg11[%c0_834, %c0_835], %1451 {strides = array<i32>} : memref<8x128xf32, #tpu.memory_space<vmem>>, vector<8x128xf32>,
    } else {
    }
    %c0 = arith.constant 0 : index
    %c0_1 = arith.constant 0 : index
    %3 = vector.load %arg6[%c0, %c0_1] : memref<8x128xf32, #tpu.memory_space<vmem>>, vector<8x128xf32>
    %c0_2 = arith.constant 0 : index
    %c0_3 = arith.constant 0 : index
    %c0_4 = arith.constant 0 : index
    %4 = vector.load %arg5[%c0_2, %c0_3, %c0_4] : memref<4x8x128xf32, #tpu.memory_space<vmem>>, vector<4x8x128xf32>
    %cst = arith.constant dense<0.000000e+00> : vector<8x128xf32>
    %5 = vector.multi_reduction <add>, %4, %cst [0] : vector<4x8x128xf32> to vector<8x128xf32>
    %c0_5 = arith.constant 0 : index
    %c0_6 = arith.constant 0 : index
    %c0_7 = arith.constant 0 : index
    %6 = vector.load %arg2[%c0_5, %c0_6, %c0_7] : memref<5x8x128xf32, #tpu.memory_space<vmem>>, vector<5x8x128xf32>
    %c0_8 = arith.constant 0 : index
    %c0_9 = arith.constant 0 : index
    %c0_10 = arith.constant 0 : index
    %7 = vector.load %arg3[%c0_8, %c0_9, %c0_10] : memref<5x8x128xf32, #tpu.memory_space<vmem>>, vector<5x8x128xf32>
    %8 = vector.extract_strided_slice %6 {offsets = [0, 0, 0], sizes = [1, 8, 128], strides = [1, 1, 1]} : vector<5x8x128xf32> to vector<1x8x128xf32>
    %9 = vector.shape_cast %8 : vector<1x8x128xf32> to vector<8x128xf32>
    %10 = vector.extract_strided_slice %6 {offsets = [1, 0, 0], sizes = [1, 8, 128], strides = [1, 1, 1]} : vector<5x8x128xf32> to vector<1x8x128xf32>
    %11 = vector.shape_cast %10 : vector<1x8x128xf32> to vector<8x128xf32>
    %12 = vector.extract_strided_slice %6 {offsets = [2, 0, 0], sizes = [1, 8, 128], strides = [1, 1, 1]} : vector<5x8x128xf32> to vector<1x8x128xf32>
    %13 = vector.shape_cast %12 : vector<1x8x128xf32> to vector<8x128xf32>
    %14 = vector.extract_strided_slice %6 {offsets = [3, 0, 0], sizes = [1, 8, 128], strides = [1, 1, 1]} : vector<5x8x128xf32> to vector<1x8x128xf32>
    %15 = vector.shape_cast %14 : vector<1x8x128xf32> to vector<8x128xf32>
    %16 = vector.extract_strided_slice %6 {offsets = [4, 0, 0], sizes = [1, 8, 128], strides = [1, 1, 1]} : vector<5x8x128xf32> to vector<1x8x128xf32>
    %17 = vector.shape_cast %16 : vector<1x8x128xf32> to vector<8x128xf32>
    %18 = vector.extract_strided_slice %7 {offsets = [0, 0, 0], sizes = [1, 8, 128], strides = [1, 1, 1]} : vector<5x8x128xf32> to vector<1x8x128xf32>
    %19 = vector.shape_cast %18 : vector<1x8x128xf32> to vector<8x128xf32>
    %20 = vector.extract_strided_slice %7 {offsets = [1, 0, 0], sizes = [1, 8, 128], strides = [1, 1, 1]} : vector<5x8x128xf32> to vector<1x8x128xf32>
    %21 = vector.shape_cast %20 : vector<1x8x128xf32> to vector<8x128xf32>
    %22 = vector.extract_strided_slice %7 {offsets = [2, 0, 0], sizes = [1, 8, 128], strides = [1, 1, 1]} : vector<5x8x128xf32> to vector<1x8x128xf32>
    %23 = vector.shape_cast %22 : vector<1x8x128xf32> to vector<8x128xf32>
    %24 = vector.extract_strided_slice %7 {offsets = [3, 0, 0], sizes = [1, 8, 128], strides = [1, 1, 1]} : vector<5x8x128xf32> to vector<1x8x128xf32>
    %25 = vector.shape_cast %24 : vector<1x8x128xf32> to vector<8x128xf32>
    %26 = vector.extract_strided_slice %7 {offsets = [4, 0, 0], sizes = [1, 8, 128], strides = [1, 1, 1]} : vector<5x8x128xf32> to vector<1x8x128xf32>
    %27 = vector.shape_cast %26 : vector<1x8x128xf32> to vector<8x128xf32>
    %28 = arith.mulf %13, %13 : vector<8x128xf32>
    %cst_11 = arith.constant 0.0833333358 : f32
    %29 = vector.broadcast %cst_11 : f32 to vector<8x128xf32>
    %30 = arith.mulf %28, %29 : vector<8x128xf32>
    %31 = arith.mulf %15, %15 : vector<8x128xf32>
    %cst_12 = arith.constant 0.0833333358 : f32
    %32 = vector.broadcast %cst_12 : f32 to vector<8x128xf32>
    %33 = arith.mulf %31, %32 : vector<8x128xf32>
    %34 = math.cos %17 : vector<8x128xf32>
    %35 = math.sin %17 : vector<8x128xf32>
    %36 = arith.mulf %30, %34 : vector<8x128xf32>
    %37 = arith.mulf %36, %34 : vector<8x128xf32>
    %38 = arith.mulf %33, %35 : vector<8x128xf32>
    %39 = arith.mulf %38, %35 : vector<8x128xf32>
    %40 = arith.addf %37, %39 : vector<8x128xf32>
    %41 = arith.mulf %30, %35 : vector<8x128xf32>
    %42 = arith.mulf %41, %35 : vector<8x128xf32>
    %43 = arith.mulf %33, %34 : vector<8x128xf32>
    %44 = arith.mulf %43, %34 : vector<8x128xf32>
    %45 = arith.addf %42, %44 : vector<8x128xf32>
    %46 = arith.subf %30, %33 : vector<8x128xf32>
    %47 = arith.mulf %46, %34 : vector<8x128xf32>
    %48 = arith.mulf %47, %35 : vector<8x128xf32>
    %49 = arith.mulf %23, %23 : vector<8x128xf32>
    %cst_13 = arith.constant 0.0833333358 : f32
    %50 = vector.broadcast %cst_13 : f32 to vector<8x128xf32>
    %51 = arith.mulf %49, %50 : vector<8x128xf32>
    %52 = arith.mulf %25, %25 : vector<8x128xf32>
    %cst_14 = arith.constant 0.0833333358 : f32
    %53 = vector.broadcast %cst_14 : f32 to vector<8x128xf32>
    %54 = arith.mulf %52, %53 : vector<8x128xf32>
    %55 = math.cos %27 : vector<8x128xf32>
    %56 = math.sin %27 : vector<8x128xf32>
    %57 = arith.mulf %51, %55 : vector<8x128xf32>
    %58 = arith.mulf %57, %55 : vector<8x128xf32>
    %59 = arith.mulf %54, %56 : vector<8x128xf32>
    %60 = arith.mulf %59, %56 : vector<8x128xf32>
    %61 = arith.addf %58, %60 : vector<8x128xf32>
    %62 = arith.mulf %51, %56 : vector<8x128xf32>
    %63 = arith.mulf %62, %56 : vector<8x128xf32>
    %64 = arith.mulf %54, %55 : vector<8x128xf32>
    %65 = arith.mulf %64, %55 : vector<8x128xf32>
    %66 = arith.addf %63, %65 : vector<8x128xf32>
    %67 = arith.subf %51, %54 : vector<8x128xf32>
    %68 = arith.mulf %67, %55 : vector<8x128xf32>
    %69 = arith.mulf %68, %56 : vector<8x128xf32>
    %70 = arith.addf %40, %61 : vector<8x128xf32>
    %71 = arith.addf %45, %66 : vector<8x128xf32>
    %72 = arith.addf %48, %69 : vector<8x128xf32>
    %73 = arith.mulf %70, %71 : vector<8x128xf32>
    %74 = arith.mulf %72, %72 : vector<8x128xf32>
    %75 = arith.subf %73, %74 : vector<8x128xf32>
    %cst_15 = arith.constant 1.000000e-07 : f32
    %76 = vector.broadcast %cst_15 : f32 to vector<8x128xf32>
    %77 = arith.addf %75, %76 : vector<8x128xf32>
    %cst_16 = arith.constant 1.000000e+00 : f32
    %78 = vector.broadcast %cst_16 : f32 to vector<8x128xf32>
    %79 = arith.divf %78, %77 : vector<8x128xf32>
    %80 = arith.subf %11, %21 : vector<8x128xf32>
    %81 = arith.mulf %70, %80 : vector<8x128xf32>
    %82 = arith.subf %11, %21 : vector<8x128xf32>
    %83 = arith.mulf %81, %82 : vector<8x128xf32>
    %84 = arith.subf %9, %19 : vector<8x128xf32>
    %85 = arith.mulf %71, %84 : vector<8x128xf32>
    %86 = arith.subf %9, %19 : vector<8x128xf32>
    %87 = arith.mulf %85, %86 : vector<8x128xf32>
    %88 = arith.addf %83, %87 : vector<8x128xf32>
    %89 = arith.mulf %88, %79 : vector<8x128xf32>
    %cst_17 = arith.constant 2.500000e-01 : f32
    %90 = vector.broadcast %cst_17 : f32 to vector<8x128xf32>
    %91 = arith.mulf %89, %90 : vector<8x128xf32>
    %92 = arith.subf %19, %9 : vector<8x128xf32>
    %93 = arith.mulf %72, %92 : vector<8x128xf32>
    %94 = arith.subf %11, %21 : vector<8x128xf32>
    %95 = arith.mulf %93, %94 : vector<8x128xf32>
    %96 = arith.mulf %95, %79 : vector<8x128xf32>
    %cst_18 = arith.constant 5.000000e-01 : f32
    %97 = vector.broadcast %cst_18 : f32 to vector<8x128xf32>
    %98 = arith.mulf %96, %97 : vector<8x128xf32>
    %99 = arith.mulf %40, %45 : vector<8x128xf32>
    %100 = arith.mulf %48, %48 : vector<8x128xf32>
    %101 = arith.subf %99, %100 : vector<8x128xf32>
    %cst_19 = arith.constant 0.000000e+00 : f32
    %102 = vector.broadcast %cst_19 : f32 to vector<8x128xf32>
    %103 = arith.maximumf %101, %102 : vector<8x128xf32>
    %104 = arith.mulf %61, %66 : vector<8x128xf32>
    %105 = arith.mulf %69, %69 : vector<8x128xf32>
    %106 = arith.subf %104, %105 : vector<8x128xf32>
    %cst_20 = arith.constant 0.000000e+00 : f32
    %107 = vector.broadcast %cst_20 : f32 to vector<8x128xf32>
    %108 = arith.maximumf %106, %107 : vector<8x128xf32>
    %109 = arith.mulf %103, %108 : vector<8x128xf32>
    %110 = math.sqrt %109 : vector<8x128xf32>
    %cst_21 = arith.constant 4.000000e+00 : f32
    %111 = vector.broadcast %cst_21 : f32 to vector<8x128xf32>
    %112 = arith.mulf %111, %110 : vector<8x128xf32>
    %cst_22 = arith.constant 1.000000e-07 : f32
    %113 = vector.broadcast %cst_22 : f32 to vector<8x128xf32>
    %114 = arith.addf %112, %113 : vector<8x128xf32>
    %115 = arith.divf %75, %114 : vector<8x128xf32>
    %cst_23 = arith.constant 1.000000e-07 : f32
    %116 = vector.broadcast %cst_23 : f32 to vector<8x128xf32>
    %117 = arith.addf %115, %116 : vector<8x128xf32>
    %118 = math.log %117 : vector<8x128xf32>
    %cst_24 = arith.constant 5.000000e-01 : f32
    %119 = vector.broadcast %cst_24 : f32 to vector<8x128xf32>
    %120 = arith.mulf %119, %118 : vector<8x128xf32>
    %121 = arith.addf %91, %98 : vector<8x128xf32>
    %122 = arith.addf %121, %120 : vector<8x128xf32>
    %cst_25 = arith.constant 1.000000e-07 : f32
    %cst_26 = arith.constant 1.000000e+02 : f32
    %123 = vector.broadcast %cst_25 : f32 to vector<8x128xf32>
    %124 = arith.maximumf %123, %122 : vector<8x128xf32>
    %125 = vector.broadcast %cst_26 : f32 to vector<8x128xf32>
    %126 = arith.minimumf %125, %124 : vector<8x128xf32>
    %cst_27 = arith.constant 0.000000e+00 : f32
    %127 = vector.broadcast %cst_27 : f32 to vector<8x128xf32>
    %128 = arith.subf %127, %126 : vector<8x128xf32>
    %129 = math.exp %128 : vector<8x128xf32>
    %cst_28 = arith.constant 1.000000e+00 : f32
    %130 = vector.broadcast %cst_28 : f32 to vector<8x128xf32>
    %131 = arith.subf %130, %129 : vector<8x128xf32>
    %cst_29 = arith.constant 1.000000e-07 : f32
    %132 = vector.broadcast %cst_29 : f32 to vector<8x128xf32>
    %133 = arith.addf %131, %132 : vector<8x128xf32>
    %134 = math.sqrt %133 : vector<8x128xf32>
    %c0_30 = arith.constant 0 : index
    %c0_31 = arith.constant 0 : index
    %135 = vector.load %arg10[%c0_30, %c0_31] : memref<8x128xf32, #tpu.memory_space<vmem>>, vector<8x128xf32>
    %cst_32 = arith.constant 5.000000e-01 : f32
    %136 = vector.broadcast %cst_32 : f32 to vector<8x128xf32>
    %137 = arith.cmpf ogt, %3, %136 : vector<8x128xf32>
    %138 = arith.mulf %134, %5 : vector<8x128xf32>
    %cst_33 = arith.constant 0.000000e+00 : f32
    %139 = vector.broadcast %cst_33 : f32 to vector<8x128xf32>
    %140 = arith.select %137, %138, %139 : vector<8x128xi1>, vector<8x128xf32>
    %141 = arith.addf %135, %140 : vector<8x128xf32>
    %c0_34 = arith.constant 0 : index
    %c0_35 = arith.constant 0 : index
    %142 = vector.load %arg10[%c0_34, %c0_35] : memref<8x128xf32, #tpu.memory_space<vmem>>, vector<8x128xf32>
    tpu.vector_store %arg10[%c0_34, %c0_35], %141 {strides = array<i32>} : memref<8x128xf32, #tpu.memory_space<vmem>>, vector<8x128xf32>,
    %c0_36 = arith.constant 0 : index
    %c0_37 = arith.constant 0 : index
    %c0_38 = arith.constant 0 : index
    %143 = vector.load %arg4[%c0_36, %c0_37, %c0_38] : memref<2x8x128xf32, #tpu.memory_space<vmem>>, vector<1x8x128xf32>
    %144 = vector.shape_cast %143 : vector<1x8x128xf32> to vector<8x128xf32>
    %c1 = arith.constant 1 : index
    %c0_39 = arith.constant 0 : index
    %c0_40 = arith.constant 0 : index
    %145 = vector.load %arg4[%c1, %c0_39, %c0_40] : memref<2x8x128xf32, #tpu.memory_space<vmem>>, vector<1x8x128xf32>
    %146 = vector.shape_cast %145 : vector<1x8x128xf32> to vector<8x128xf32>
    %cst_41 = arith.constant 5.000000e-01 : f32
    %147 = vector.broadcast %cst_41 : f32 to vector<8x128xf32>
    %148 = arith.mulf %23, %147 : vector<8x128xf32>
    %cst_42 = arith.constant 5.000000e-01 : f32
    %149 = vector.broadcast %cst_42 : f32 to vector<8x128xf32>
    %150 = arith.mulf %25, %149 : vector<8x128xf32>
    %151 = arith.subf %19, %148 : vector<8x128xf32>
    %152 = arith.subf %144, %151 : vector<8x128xf32>
    %cst_43 = arith.constant 0.000000e+00 : f32
    %cst_44 = arith.constant 1.499000e+01 : f32
    %153 = vector.broadcast %cst_43 : f32 to vector<8x128xf32>
    %154 = arith.maximumf %153, %152 : vector<8x128xf32>
    %155 = vector.broadcast %cst_44 : f32 to vector<8x128xf32>
    %156 = arith.minimumf %155, %154 : vector<8x128xf32>
    %157 = arith.subf %21, %150 : vector<8x128xf32>
    %158 = arith.subf %146, %157 : vector<8x128xf32>
    %cst_45 = arith.constant 0.000000e+00 : f32
    %cst_46 = arith.constant 1.499000e+01 : f32
    %159 = vector.broadcast %cst_45 : f32 to vector<8x128xf32>
    %160 = arith.maximumf %159, %158 : vector<8x128xf32>
    %161 = vector.broadcast %cst_46 : f32 to vector<8x128xf32>
    %162 = arith.minimumf %161, %160 : vector<8x128xf32>
    %163 = arith.addf %19, %148 : vector<8x128xf32>
    %164 = arith.subf %163, %144 : vector<8x128xf32>
    %cst_47 = arith.constant 0.000000e+00 : f32
    %cst_48 = arith.constant 1.499000e+01 : f32
    %165 = vector.broadcast %cst_47 : f32 to vector<8x128xf32>
    %166 = arith.maximumf %165, %164 : vector<8x128xf32>
    %167 = vector.broadcast %cst_48 : f32 to vector<8x128xf32>
    %168 = arith.minimumf %167, %166 : vector<8x128xf32>
    %169 = arith.addf %21, %150 : vector<8x128xf32>
    %170 = arith.subf %169, %146 : vector<8x128xf32>
    %cst_49 = arith.constant 0.000000e+00 : f32
    %cst_50 = arith.constant 1.499000e+01 : f32
    %171 = vector.broadcast %cst_49 : f32 to vector<8x128xf32>
    %172 = arith.maximumf %171, %170 : vector<8x128xf32>
    %173 = vector.broadcast %cst_50 : f32 to vector<8x128xf32>
    %174 = arith.minimumf %173, %172 : vector<8x128xf32>
    %cst_51 = arith.constant 0.000000e+00 : f32
    %175 = vector.broadcast %cst_51 : f32 to vector<8x128xf32>
    %c0_52 = arith.constant 0 : index
    %c0_53 = arith.constant 0 : index
    %c0_54 = arith.constant 0 : index
    %c0_55 = arith.constant 0 : index
    %176 = vector.load %arg7[%c0_52, %c0_53, %c0_54, %c0_55] : memref<4x16x8x128xf32, #tpu.memory_space<vmem>>, vector<1x1x8x128xf32>
    %177 = vector.shape_cast %176 : vector<1x1x8x128xf32> to vector<8x128xf32>
    %c0_56 = arith.constant 0 : index
    %c1_57 = arith.constant 1 : index
    %c0_58 = arith.constant 0 : index
    %c0_59 = arith.constant 0 : index
    %178 = vector.load %arg7[%c0_56, %c1_57, %c0_58, %c0_59] : memref<4x16x8x128xf32, #tpu.memory_space<vmem>>, vector<1x1x8x128xf32>
    %179 = vector.shape_cast %178 : vector<1x1x8x128xf32> to vector<8x128xf32>
    %180 = arith.maximumf %177, %179 : vector<8x128xf32>
    %c0_60 = arith.constant 0 : index
    %c2 = arith.constant 2 : index
    %c0_61 = arith.constant 0 : index
    %c0_62 = arith.constant 0 : index
    %181 = vector.load %arg7[%c0_60, %c2, %c0_61, %c0_62] : memref<4x16x8x128xf32, #tpu.memory_space<vmem>>, vector<1x1x8x128xf32>
    %182 = vector.shape_cast %181 : vector<1x1x8x128xf32> to vector<8x128xf32>
    %183 = arith.maximumf %180, %182 : vector<8x128xf32>
    %c0_63 = arith.constant 0 : index
    %c3 = arith.constant 3 : index
    %c0_64 = arith.constant 0 : index
    %c0_65 = arith.constant 0 : index
    %184 = vector.load %arg7[%c0_63, %c3, %c0_64, %c0_65] : memref<4x16x8x128xf32, #tpu.memory_space<vmem>>, vector<1x1x8x128xf32>
    %185 = vector.shape_cast %184 : vector<1x1x8x128xf32> to vector<8x128xf32>
    %186 = arith.maximumf %183, %185 : vector<8x128xf32>
    %c0_66 = arith.constant 0 : index
    %c4 = arith.constant 4 : index
    %c0_67 = arith.constant 0 : index
    %c0_68 = arith.constant 0 : index
    %187 = vector.load %arg7[%c0_66, %c4, %c0_67, %c0_68] : memref<4x16x8x128xf32, #tpu.memory_space<vmem>>, vector<1x1x8x128xf32>
    %188 = vector.shape_cast %187 : vector<1x1x8x128xf32> to vector<8x128xf32>
    %189 = arith.maximumf %186, %188 : vector<8x128xf32>
    %c0_69 = arith.constant 0 : index
    %c5 = arith.constant 5 : index
    %c0_70 = arith.constant 0 : index
    %c0_71 = arith.constant 0 : index
    %190 = vector.load %arg7[%c0_69, %c5, %c0_70, %c0_71] : memref<4x16x8x128xf32, #tpu.memory_space<vmem>>, vector<1x1x8x128xf32>
    %191 = vector.shape_cast %190 : vector<1x1x8x128xf32> to vector<8x128xf32>
    %192 = arith.maximumf %189, %191 : vector<8x128xf32>
    %c0_72 = arith.constant 0 : index
    %c6 = arith.constant 6 : index
    %c0_73 = arith.constant 0 : index
    %c0_74 = arith.constant 0 : index
    %193 = vector.load %arg7[%c0_72, %c6, %c0_73, %c0_74] : memref<4x16x8x128xf32, #tpu.memory_space<vmem>>, vector<1x1x8x128xf32>
    %194 = vector.shape_cast %193 : vector<1x1x8x128xf32> to vector<8x128xf32>
    %195 = arith.maximumf %192, %194 : vector<8x128xf32>
    %c0_75 = arith.constant 0 : index
    %c7 = arith.constant 7 : index
    %c0_76 = arith.constant 0 : index
    %c0_77 = arith.constant 0 : index
    %196 = vector.load %arg7[%c0_75, %c7, %c0_76, %c0_77] : memref<4x16x8x128xf32, #tpu.memory_space<vmem>>, vector<1x1x8x128xf32>
    %197 = vector.shape_cast %196 : vector<1x1x8x128xf32> to vector<8x128xf32>
    %198 = arith.maximumf %195, %197 : vector<8x128xf32>
    %c0_78 = arith.constant 0 : index
    %c8 = arith.constant 8 : index
    %c0_79 = arith.constant 0 : index
    %c0_80 = arith.constant 0 : index
    %199 = vector.load %arg7[%c0_78, %c8, %c0_79, %c0_80] : memref<4x16x8x128xf32, #tpu.memory_space<vmem>>, vector<1x1x8x128xf32>
    %200 = vector.shape_cast %199 : vector<1x1x8x128xf32> to vector<8x128xf32>
    %201 = arith.maximumf %198, %200 : vector<8x128xf32>
    %c0_81 = arith.constant 0 : index
    %c9 = arith.constant 9 : index
    %c0_82 = arith.constant 0 : index
    %c0_83 = arith.constant 0 : index
    %202 = vector.load %arg7[%c0_81, %c9, %c0_82, %c0_83] : memref<4x16x8x128xf32, #tpu.memory_space<vmem>>, vector<1x1x8x128xf32>
    %203 = vector.shape_cast %202 : vector<1x1x8x128xf32> to vector<8x128xf32>
    %204 = arith.maximumf %201, %203 : vector<8x128xf32>
    %c0_84 = arith.constant 0 : index
    %c10 = arith.constant 10 : index
    %c0_85 = arith.constant 0 : index
    %c0_86 = arith.constant 0 : index
    %205 = vector.load %arg7[%c0_84, %c10, %c0_85, %c0_86] : memref<4x16x8x128xf32, #tpu.memory_space<vmem>>, vector<1x1x8x128xf32>
    %206 = vector.shape_cast %205 : vector<1x1x8x128xf32> to vector<8x128xf32>
    %207 = arith.maximumf %204, %206 : vector<8x128xf32>
    %c0_87 = arith.constant 0 : index
    %c11 = arith.constant 11 : index
    %c0_88 = arith.constant 0 : index
    %c0_89 = arith.constant 0 : index
    %208 = vector.load %arg7[%c0_87, %c11, %c0_88, %c0_89] : memref<4x16x8x128xf32, #tpu.memory_space<vmem>>, vector<1x1x8x128xf32>
    %209 = vector.shape_cast %208 : vector<1x1x8x128xf32> to vector<8x128xf32>
    %210 = arith.maximumf %207, %209 : vector<8x128xf32>
    %c0_90 = arith.constant 0 : index
    %c12 = arith.constant 12 : index
    %c0_91 = arith.constant 0 : index
    %c0_92 = arith.constant 0 : index
    %211 = vector.load %arg7[%c0_90, %c12, %c0_91, %c0_92] : memref<4x16x8x128xf32, #tpu.memory_space<vmem>>, vector<1x1x8x128xf32>
    %212 = vector.shape_cast %211 : vector<1x1x8x128xf32> to vector<8x128xf32>
    %213 = arith.maximumf %210, %212 : vector<8x128xf32>
    %c0_93 = arith.constant 0 : index
    %c13 = arith.constant 13 : index
    %c0_94 = arith.constant 0 : index
    %c0_95 = arith.constant 0 : index
    %214 = vector.load %arg7[%c0_93, %c13, %c0_94, %c0_95] : memref<4x16x8x128xf32, #tpu.memory_space<vmem>>, vector<1x1x8x128xf32>
    %215 = vector.shape_cast %214 : vector<1x1x8x128xf32> to vector<8x128xf32>
    %216 = arith.maximumf %213, %215 : vector<8x128xf32>
    %c0_96 = arith.constant 0 : index
    %c14 = arith.constant 14 : index
    %c0_97 = arith.constant 0 : index
    %c0_98 = arith.constant 0 : index
    %217 = vector.load %arg7[%c0_96, %c14, %c0_97, %c0_98] : memref<4x16x8x128xf32, #tpu.memory_space<vmem>>, vector<1x1x8x128xf32>
    %218 = vector.shape_cast %217 : vector<1x1x8x128xf32> to vector<8x128xf32>
    %219 = arith.maximumf %216, %218 : vector<8x128xf32>
    %c0_99 = arith.constant 0 : index
    %c15 = arith.constant 15 : index
    %c0_100 = arith.constant 0 : index
    %c0_101 = arith.constant 0 : index
    %220 = vector.load %arg7[%c0_99, %c15, %c0_100, %c0_101] : memref<4x16x8x128xf32, #tpu.memory_space<vmem>>, vector<1x1x8x128xf32>
    %221 = vector.shape_cast %220 : vector<1x1x8x128xf32> to vector<8x128xf32>
    %222 = arith.maximumf %219, %221 : vector<8x128xf32>
    %223 = math.floor %156 : vector<8x128xf32>
    %cst_102 = arith.constant 1.000000e+00 : f32
    %224 = vector.broadcast %cst_102 : f32 to vector<8x128xf32>
    %225 = arith.addf %223, %224 : vector<8x128xf32>
    %226 = arith.subf %225, %156 : vector<8x128xf32>
    %cst_103 = arith.constant 1.000000e+00 : f32
    %227 = vector.broadcast %cst_103 : f32 to vector<8x128xf32>
    %228 = arith.subf %227, %226 : vector<8x128xf32>
    %cst_104 = arith.constant 0.000000e+00 : f32
    %229 = vector.broadcast %cst_104 : f32 to vector<8x128xf32>
    %cst_105 = arith.constant 0.000000e+00 : f32
    %230 = vector.broadcast %cst_105 : f32 to vector<8x128xf32>
    %c0_106 = arith.constant 0 : index
    %c0_107 = arith.constant 0 : index
    %c0_108 = arith.constant 0 : index
    %c0_109 = arith.constant 0 : index
    %231 = vector.load %arg7[%c0_106, %c0_107, %c0_108, %c0_109] : memref<4x16x8x128xf32, #tpu.memory_space<vmem>>, vector<1x1x8x128xf32>
    %232 = vector.shape_cast %231 : vector<1x1x8x128xf32> to vector<8x128xf32>
    %233 = arith.subf %232, %222 : vector<8x128xf32>
    %234 = math.exp %233 : vector<8x128xf32>
    %235 = arith.addf %229, %234 : vector<8x128xf32>
    %cst_110 = arith.constant 0.000000e+00 : f32
    %236 = vector.broadcast %cst_110 : f32 to vector<8x128xf32>
    %237 = arith.cmpf oeq, %223, %236 : vector<8x128xf32>
    %cst_111 = arith.constant 0.000000e+00 : f32
    %238 = vector.broadcast %cst_111 : f32 to vector<8x128xf32>
    %239 = arith.select %237, %226, %238 : vector<8x128xi1>, vector<8x128xf32>
    %cst_112 = arith.constant -1.000000e+00 : f32
    %240 = vector.broadcast %cst_112 : f32 to vector<8x128xf32>
    %241 = arith.cmpf oeq, %223, %240 : vector<8x128xf32>
    %cst_113 = arith.constant 0.000000e+00 : f32
    %242 = vector.broadcast %cst_113 : f32 to vector<8x128xf32>
    %243 = arith.select %241, %228, %242 : vector<8x128xi1>, vector<8x128xf32>
    %244 = arith.addf %239, %243 : vector<8x128xf32>
    %245 = arith.mulf %244, %232 : vector<8x128xf32>
    %246 = arith.addf %230, %245 : vector<8x128xf32>
    %c0_114 = arith.constant 0 : index
    %c1_115 = arith.constant 1 : index
    %c0_116 = arith.constant 0 : index
    %c0_117 = arith.constant 0 : index
    %247 = vector.load %arg7[%c0_114, %c1_115, %c0_116, %c0_117] : memref<4x16x8x128xf32, #tpu.memory_space<vmem>>, vector<1x1x8x128xf32>
    %248 = vector.shape_cast %247 : vector<1x1x8x128xf32> to vector<8x128xf32>
    %249 = arith.subf %248, %222 : vector<8x128xf32>
    %250 = math.exp %249 : vector<8x128xf32>
    %251 = arith.addf %235, %250 : vector<8x128xf32>
    %cst_118 = arith.constant 1.000000e+00 : f32
    %252 = vector.broadcast %cst_118 : f32 to vector<8x128xf32>
    %253 = arith.cmpf oeq, %223, %252 : vector<8x128xf32>
    %cst_119 = arith.constant 0.000000e+00 : f32
    %254 = vector.broadcast %cst_119 : f32 to vector<8x128xf32>
    %255 = arith.select %253, %226, %254 : vector<8x128xi1>, vector<8x128xf32>
    %cst_120 = arith.constant 0.000000e+00 : f32
    %256 = vector.broadcast %cst_120 : f32 to vector<8x128xf32>
    %257 = arith.cmpf oeq, %223, %256 : vector<8x128xf32>
    %cst_121 = arith.constant 0.000000e+00 : f32
    %258 = vector.broadcast %cst_121 : f32 to vector<8x128xf32>
    %259 = arith.select %257, %228, %258 : vector<8x128xi1>, vector<8x128xf32>
    %260 = arith.addf %255, %259 : vector<8x128xf32>
    %261 = arith.mulf %260, %248 : vector<8x128xf32>
    %262 = arith.addf %246, %261 : vector<8x128xf32>
    %c0_122 = arith.constant 0 : index
    %c2_123 = arith.constant 2 : index
    %c0_124 = arith.constant 0 : index
    %c0_125 = arith.constant 0 : index
    %263 = vector.load %arg7[%c0_122, %c2_123, %c0_124, %c0_125] : memref<4x16x8x128xf32, #tpu.memory_space<vmem>>, vector<1x1x8x128xf32>
    %264 = vector.shape_cast %263 : vector<1x1x8x128xf32> to vector<8x128xf32>
    %265 = arith.subf %264, %222 : vector<8x128xf32>
    %266 = math.exp %265 : vector<8x128xf32>
    %267 = arith.addf %251, %266 : vector<8x128xf32>
    %cst_126 = arith.constant 2.000000e+00 : f32
    %268 = vector.broadcast %cst_126 : f32 to vector<8x128xf32>
    %269 = arith.cmpf oeq, %223, %268 : vector<8x128xf32>
    %cst_127 = arith.constant 0.000000e+00 : f32
    %270 = vector.broadcast %cst_127 : f32 to vector<8x128xf32>
    %271 = arith.select %269, %226, %270 : vector<8x128xi1>, vector<8x128xf32>
    %cst_128 = arith.constant 1.000000e+00 : f32
    %272 = vector.broadcast %cst_128 : f32 to vector<8x128xf32>
    %273 = arith.cmpf oeq, %223, %272 : vector<8x128xf32>
    %cst_129 = arith.constant 0.000000e+00 : f32
    %274 = vector.broadcast %cst_129 : f32 to vector<8x128xf32>
    %275 = arith.select %273, %228, %274 : vector<8x128xi1>, vector<8x128xf32>
    %276 = arith.addf %271, %275 : vector<8x128xf32>
    %277 = arith.mulf %276, %264 : vector<8x128xf32>
    %278 = arith.addf %262, %277 : vector<8x128xf32>
    %c0_130 = arith.constant 0 : index
    %c3_131 = arith.constant 3 : index
    %c0_132 = arith.constant 0 : index
    %c0_133 = arith.constant 0 : index
    %279 = vector.load %arg7[%c0_130, %c3_131, %c0_132, %c0_133] : memref<4x16x8x128xf32, #tpu.memory_space<vmem>>, vector<1x1x8x128xf32>
    %280 = vector.shape_cast %279 : vector<1x1x8x128xf32> to vector<8x128xf32>
    %281 = arith.subf %280, %222 : vector<8x128xf32>
    %282 = math.exp %281 : vector<8x128xf32>
    %283 = arith.addf %267, %282 : vector<8x128xf32>
    %cst_134 = arith.constant 3.000000e+00 : f32
    %284 = vector.broadcast %cst_134 : f32 to vector<8x128xf32>
    %285 = arith.cmpf oeq, %223, %284 : vector<8x128xf32>
    %cst_135 = arith.constant 0.000000e+00 : f32
    %286 = vector.broadcast %cst_135 : f32 to vector<8x128xf32>
    %287 = arith.select %285, %226, %286 : vector<8x128xi1>, vector<8x128xf32>
    %cst_136 = arith.constant 2.000000e+00 : f32
    %288 = vector.broadcast %cst_136 : f32 to vector<8x128xf32>
    %289 = arith.cmpf oeq, %223, %288 : vector<8x128xf32>
    %cst_137 = arith.constant 0.000000e+00 : f32
    %290 = vector.broadcast %cst_137 : f32 to vector<8x128xf32>
    %291 = arith.select %289, %228, %290 : vector<8x128xi1>, vector<8x128xf32>
    %292 = arith.addf %287, %291 : vector<8x128xf32>
    %293 = arith.mulf %292, %280 : vector<8x128xf32>
    %294 = arith.addf %278, %293 : vector<8x128xf32>
    %c0_138 = arith.constant 0 : index
    %c4_139 = arith.constant 4 : index
    %c0_140 = arith.constant 0 : index
    %c0_141 = arith.constant 0 : index
    %295 = vector.load %arg7[%c0_138, %c4_139, %c0_140, %c0_141] : memref<4x16x8x128xf32, #tpu.memory_space<vmem>>, vector<1x1x8x128xf32>
    %296 = vector.shape_cast %295 : vector<1x1x8x128xf32> to vector<8x128xf32>
    %297 = arith.subf %296, %222 : vector<8x128xf32>
    %298 = math.exp %297 : vector<8x128xf32>
    %299 = arith.addf %283, %298 : vector<8x128xf32>
    %cst_142 = arith.constant 4.000000e+00 : f32
    %300 = vector.broadcast %cst_142 : f32 to vector<8x128xf32>
    %301 = arith.cmpf oeq, %223, %300 : vector<8x128xf32>
    %cst_143 = arith.constant 0.000000e+00 : f32
    %302 = vector.broadcast %cst_143 : f32 to vector<8x128xf32>
    %303 = arith.select %301, %226, %302 : vector<8x128xi1>, vector<8x128xf32>
    %cst_144 = arith.constant 3.000000e+00 : f32
    %304 = vector.broadcast %cst_144 : f32 to vector<8x128xf32>
    %305 = arith.cmpf oeq, %223, %304 : vector<8x128xf32>
    %cst_145 = arith.constant 0.000000e+00 : f32
    %306 = vector.broadcast %cst_145 : f32 to vector<8x128xf32>
    %307 = arith.select %305, %228, %306 : vector<8x128xi1>, vector<8x128xf32>
    %308 = arith.addf %303, %307 : vector<8x128xf32>
    %309 = arith.mulf %308, %296 : vector<8x128xf32>
    %310 = arith.addf %294, %309 : vector<8x128xf32>
    %c0_146 = arith.constant 0 : index
    %c5_147 = arith.constant 5 : index
    %c0_148 = arith.constant 0 : index
    %c0_149 = arith.constant 0 : index
    %311 = vector.load %arg7[%c0_146, %c5_147, %c0_148, %c0_149] : memref<4x16x8x128xf32, #tpu.memory_space<vmem>>, vector<1x1x8x128xf32>
    %312 = vector.shape_cast %311 : vector<1x1x8x128xf32> to vector<8x128xf32>
    %313 = arith.subf %312, %222 : vector<8x128xf32>
    %314 = math.exp %313 : vector<8x128xf32>
    %315 = arith.addf %299, %314 : vector<8x128xf32>
    %cst_150 = arith.constant 5.000000e+00 : f32
    %316 = vector.broadcast %cst_150 : f32 to vector<8x128xf32>
    %317 = arith.cmpf oeq, %223, %316 : vector<8x128xf32>
    %cst_151 = arith.constant 0.000000e+00 : f32
    %318 = vector.broadcast %cst_151 : f32 to vector<8x128xf32>
    %319 = arith.select %317, %226, %318 : vector<8x128xi1>, vector<8x128xf32>
    %cst_152 = arith.constant 4.000000e+00 : f32
    %320 = vector.broadcast %cst_152 : f32 to vector<8x128xf32>
    %321 = arith.cmpf oeq, %223, %320 : vector<8x128xf32>
    %cst_153 = arith.constant 0.000000e+00 : f32
    %322 = vector.broadcast %cst_153 : f32 to vector<8x128xf32>
    %323 = arith.select %321, %228, %322 : vector<8x128xi1>, vector<8x128xf32>
    %324 = arith.addf %319, %323 : vector<8x128xf32>
    %325 = arith.mulf %324, %312 : vector<8x128xf32>
    %326 = arith.addf %310, %325 : vector<8x128xf32>
    %c0_154 = arith.constant 0 : index
    %c6_155 = arith.constant 6 : index
    %c0_156 = arith.constant 0 : index
    %c0_157 = arith.constant 0 : index
    %327 = vector.load %arg7[%c0_154, %c6_155, %c0_156, %c0_157] : memref<4x16x8x128xf32, #tpu.memory_space<vmem>>, vector<1x1x8x128xf32>
    %328 = vector.shape_cast %327 : vector<1x1x8x128xf32> to vector<8x128xf32>
    %329 = arith.subf %328, %222 : vector<8x128xf32>
    %330 = math.exp %329 : vector<8x128xf32>
    %331 = arith.addf %315, %330 : vector<8x128xf32>
    %cst_158 = arith.constant 6.000000e+00 : f32
    %332 = vector.broadcast %cst_158 : f32 to vector<8x128xf32>
    %333 = arith.cmpf oeq, %223, %332 : vector<8x128xf32>
    %cst_159 = arith.constant 0.000000e+00 : f32
    %334 = vector.broadcast %cst_159 : f32 to vector<8x128xf32>
    %335 = arith.select %333, %226, %334 : vector<8x128xi1>, vector<8x128xf32>
    %cst_160 = arith.constant 5.000000e+00 : f32
    %336 = vector.broadcast %cst_160 : f32 to vector<8x128xf32>
    %337 = arith.cmpf oeq, %223, %336 : vector<8x128xf32>
    %cst_161 = arith.constant 0.000000e+00 : f32
    %338 = vector.broadcast %cst_161 : f32 to vector<8x128xf32>
    %339 = arith.select %337, %228, %338 : vector<8x128xi1>, vector<8x128xf32>
    %340 = arith.addf %335, %339 : vector<8x128xf32>
    %341 = arith.mulf %340, %328 : vector<8x128xf32>
    %342 = arith.addf %326, %341 : vector<8x128xf32>
    %c0_162 = arith.constant 0 : index
    %c7_163 = arith.constant 7 : index
    %c0_164 = arith.constant 0 : index
    %c0_165 = arith.constant 0 : index
    %343 = vector.load %arg7[%c0_162, %c7_163, %c0_164, %c0_165] : memref<4x16x8x128xf32, #tpu.memory_space<vmem>>, vector<1x1x8x128xf32>
    %344 = vector.shape_cast %343 : vector<1x1x8x128xf32> to vector<8x128xf32>
    %345 = arith.subf %344, %222 : vector<8x128xf32>
    %346 = math.exp %345 : vector<8x128xf32>
    %347 = arith.addf %331, %346 : vector<8x128xf32>
    %cst_166 = arith.constant 7.000000e+00 : f32
    %348 = vector.broadcast %cst_166 : f32 to vector<8x128xf32>
    %349 = arith.cmpf oeq, %223, %348 : vector<8x128xf32>
    %cst_167 = arith.constant 0.000000e+00 : f32
    %350 = vector.broadcast %cst_167 : f32 to vector<8x128xf32>
    %351 = arith.select %349, %226, %350 : vector<8x128xi1>, vector<8x128xf32>
    %cst_168 = arith.constant 6.000000e+00 : f32
    %352 = vector.broadcast %cst_168 : f32 to vector<8x128xf32>
    %353 = arith.cmpf oeq, %223, %352 : vector<8x128xf32>
    %cst_169 = arith.constant 0.000000e+00 : f32
    %354 = vector.broadcast %cst_169 : f32 to vector<8x128xf32>
    %355 = arith.select %353, %228, %354 : vector<8x128xi1>, vector<8x128xf32>
    %356 = arith.addf %351, %355 : vector<8x128xf32>
    %357 = arith.mulf %356, %344 : vector<8x128xf32>
    %358 = arith.addf %342, %357 : vector<8x128xf32>
    %c0_170 = arith.constant 0 : index
    %c8_171 = arith.constant 8 : index
    %c0_172 = arith.constant 0 : index
    %c0_173 = arith.constant 0 : index
    %359 = vector.load %arg7[%c0_170, %c8_171, %c0_172, %c0_173] : memref<4x16x8x128xf32, #tpu.memory_space<vmem>>, vector<1x1x8x128xf32>
    %360 = vector.shape_cast %359 : vector<1x1x8x128xf32> to vector<8x128xf32>
    %361 = arith.subf %360, %222 : vector<8x128xf32>
    %362 = math.exp %361 : vector<8x128xf32>
    %363 = arith.addf %347, %362 : vector<8x128xf32>
    %cst_174 = arith.constant 8.000000e+00 : f32
    %364 = vector.broadcast %cst_174 : f32 to vector<8x128xf32>
    %365 = arith.cmpf oeq, %223, %364 : vector<8x128xf32>
    %cst_175 = arith.constant 0.000000e+00 : f32
    %366 = vector.broadcast %cst_175 : f32 to vector<8x128xf32>
    %367 = arith.select %365, %226, %366 : vector<8x128xi1>, vector<8x128xf32>
    %cst_176 = arith.constant 7.000000e+00 : f32
    %368 = vector.broadcast %cst_176 : f32 to vector<8x128xf32>
    %369 = arith.cmpf oeq, %223, %368 : vector<8x128xf32>
    %cst_177 = arith.constant 0.000000e+00 : f32
    %370 = vector.broadcast %cst_177 : f32 to vector<8x128xf32>
    %371 = arith.select %369, %228, %370 : vector<8x128xi1>, vector<8x128xf32>
    %372 = arith.addf %367, %371 : vector<8x128xf32>
    %373 = arith.mulf %372, %360 : vector<8x128xf32>
    %374 = arith.addf %358, %373 : vector<8x128xf32>
    %c0_178 = arith.constant 0 : index
    %c9_179 = arith.constant 9 : index
    %c0_180 = arith.constant 0 : index
    %c0_181 = arith.constant 0 : index
    %375 = vector.load %arg7[%c0_178, %c9_179, %c0_180, %c0_181] : memref<4x16x8x128xf32, #tpu.memory_space<vmem>>, vector<1x1x8x128xf32>
    %376 = vector.shape_cast %375 : vector<1x1x8x128xf32> to vector<8x128xf32>
    %377 = arith.subf %376, %222 : vector<8x128xf32>
    %378 = math.exp %377 : vector<8x128xf32>
    %379 = arith.addf %363, %378 : vector<8x128xf32>
    %cst_182 = arith.constant 9.000000e+00 : f32
    %380 = vector.broadcast %cst_182 : f32 to vector<8x128xf32>
    %381 = arith.cmpf oeq, %223, %380 : vector<8x128xf32>
    %cst_183 = arith.constant 0.000000e+00 : f32
    %382 = vector.broadcast %cst_183 : f32 to vector<8x128xf32>
    %383 = arith.select %381, %226, %382 : vector<8x128xi1>, vector<8x128xf32>
    %cst_184 = arith.constant 8.000000e+00 : f32
    %384 = vector.broadcast %cst_184 : f32 to vector<8x128xf32>
    %385 = arith.cmpf oeq, %223, %384 : vector<8x128xf32>
    %cst_185 = arith.constant 0.000000e+00 : f32
    %386 = vector.broadcast %cst_185 : f32 to vector<8x128xf32>
    %387 = arith.select %385, %228, %386 : vector<8x128xi1>, vector<8x128xf32>
    %388 = arith.addf %383, %387 : vector<8x128xf32>
    %389 = arith.mulf %388, %376 : vector<8x128xf32>
    %390 = arith.addf %374, %389 : vector<8x128xf32>
    %c0_186 = arith.constant 0 : index
    %c10_187 = arith.constant 10 : index
    %c0_188 = arith.constant 0 : index
    %c0_189 = arith.constant 0 : index
    %391 = vector.load %arg7[%c0_186, %c10_187, %c0_188, %c0_189] : memref<4x16x8x128xf32, #tpu.memory_space<vmem>>, vector<1x1x8x128xf32>
    %392 = vector.shape_cast %391 : vector<1x1x8x128xf32> to vector<8x128xf32>
    %393 = arith.subf %392, %222 : vector<8x128xf32>
    %394 = math.exp %393 : vector<8x128xf32>
    %395 = arith.addf %379, %394 : vector<8x128xf32>
    %cst_190 = arith.constant 1.000000e+01 : f32
    %396 = vector.broadcast %cst_190 : f32 to vector<8x128xf32>
    %397 = arith.cmpf oeq, %223, %396 : vector<8x128xf32>
    %cst_191 = arith.constant 0.000000e+00 : f32
    %398 = vector.broadcast %cst_191 : f32 to vector<8x128xf32>
    %399 = arith.select %397, %226, %398 : vector<8x128xi1>, vector<8x128xf32>
    %cst_192 = arith.constant 9.000000e+00 : f32
    %400 = vector.broadcast %cst_192 : f32 to vector<8x128xf32>
    %401 = arith.cmpf oeq, %223, %400 : vector<8x128xf32>
    %cst_193 = arith.constant 0.000000e+00 : f32
    %402 = vector.broadcast %cst_193 : f32 to vector<8x128xf32>
    %403 = arith.select %401, %228, %402 : vector<8x128xi1>, vector<8x128xf32>
    %404 = arith.addf %399, %403 : vector<8x128xf32>
    %405 = arith.mulf %404, %392 : vector<8x128xf32>
    %406 = arith.addf %390, %405 : vector<8x128xf32>
    %c0_194 = arith.constant 0 : index
    %c11_195 = arith.constant 11 : index
    %c0_196 = arith.constant 0 : index
    %c0_197 = arith.constant 0 : index
    %407 = vector.load %arg7[%c0_194, %c11_195, %c0_196, %c0_197] : memref<4x16x8x128xf32, #tpu.memory_space<vmem>>, vector<1x1x8x128xf32>
    %408 = vector.shape_cast %407 : vector<1x1x8x128xf32> to vector<8x128xf32>
    %409 = arith.subf %408, %222 : vector<8x128xf32>
    %410 = math.exp %409 : vector<8x128xf32>
    %411 = arith.addf %395, %410 : vector<8x128xf32>
    %cst_198 = arith.constant 1.100000e+01 : f32
    %412 = vector.broadcast %cst_198 : f32 to vector<8x128xf32>
    %413 = arith.cmpf oeq, %223, %412 : vector<8x128xf32>
    %cst_199 = arith.constant 0.000000e+00 : f32
    %414 = vector.broadcast %cst_199 : f32 to vector<8x128xf32>
    %415 = arith.select %413, %226, %414 : vector<8x128xi1>, vector<8x128xf32>
    %cst_200 = arith.constant 1.000000e+01 : f32
    %416 = vector.broadcast %cst_200 : f32 to vector<8x128xf32>
    %417 = arith.cmpf oeq, %223, %416 : vector<8x128xf32>
    %cst_201 = arith.constant 0.000000e+00 : f32
    %418 = vector.broadcast %cst_201 : f32 to vector<8x128xf32>
    %419 = arith.select %417, %228, %418 : vector<8x128xi1>, vector<8x128xf32>
    %420 = arith.addf %415, %419 : vector<8x128xf32>
    %421 = arith.mulf %420, %408 : vector<8x128xf32>
    %422 = arith.addf %406, %421 : vector<8x128xf32>
    %c0_202 = arith.constant 0 : index
    %c12_203 = arith.constant 12 : index
    %c0_204 = arith.constant 0 : index
    %c0_205 = arith.constant 0 : index
    %423 = vector.load %arg7[%c0_202, %c12_203, %c0_204, %c0_205] : memref<4x16x8x128xf32, #tpu.memory_space<vmem>>, vector<1x1x8x128xf32>
    %424 = vector.shape_cast %423 : vector<1x1x8x128xf32> to vector<8x128xf32>
    %425 = arith.subf %424, %222 : vector<8x128xf32>
    %426 = math.exp %425 : vector<8x128xf32>
    %427 = arith.addf %411, %426 : vector<8x128xf32>
    %cst_206 = arith.constant 1.200000e+01 : f32
    %428 = vector.broadcast %cst_206 : f32 to vector<8x128xf32>
    %429 = arith.cmpf oeq, %223, %428 : vector<8x128xf32>
    %cst_207 = arith.constant 0.000000e+00 : f32
    %430 = vector.broadcast %cst_207 : f32 to vector<8x128xf32>
    %431 = arith.select %429, %226, %430 : vector<8x128xi1>, vector<8x128xf32>
    %cst_208 = arith.constant 1.100000e+01 : f32
    %432 = vector.broadcast %cst_208 : f32 to vector<8x128xf32>
    %433 = arith.cmpf oeq, %223, %432 : vector<8x128xf32>
    %cst_209 = arith.constant 0.000000e+00 : f32
    %434 = vector.broadcast %cst_209 : f32 to vector<8x128xf32>
    %435 = arith.select %433, %228, %434 : vector<8x128xi1>, vector<8x128xf32>
    %436 = arith.addf %431, %435 : vector<8x128xf32>
    %437 = arith.mulf %436, %424 : vector<8x128xf32>
    %438 = arith.addf %422, %437 : vector<8x128xf32>
    %c0_210 = arith.constant 0 : index
    %c13_211 = arith.constant 13 : index
    %c0_212 = arith.constant 0 : index
    %c0_213 = arith.constant 0 : index
    %439 = vector.load %arg7[%c0_210, %c13_211, %c0_212, %c0_213] : memref<4x16x8x128xf32, #tpu.memory_space<vmem>>, vector<1x1x8x128xf32>
    %440 = vector.shape_cast %439 : vector<1x1x8x128xf32> to vector<8x128xf32>
    %441 = arith.subf %440, %222 : vector<8x128xf32>
    %442 = math.exp %441 : vector<8x128xf32>
    %443 = arith.addf %427, %442 : vector<8x128xf32>
    %cst_214 = arith.constant 1.300000e+01 : f32
    %444 = vector.broadcast %cst_214 : f32 to vector<8x128xf32>
    %445 = arith.cmpf oeq, %223, %444 : vector<8x128xf32>
    %cst_215 = arith.constant 0.000000e+00 : f32
    %446 = vector.broadcast %cst_215 : f32 to vector<8x128xf32>
    %447 = arith.select %445, %226, %446 : vector<8x128xi1>, vector<8x128xf32>
    %cst_216 = arith.constant 1.200000e+01 : f32
    %448 = vector.broadcast %cst_216 : f32 to vector<8x128xf32>
    %449 = arith.cmpf oeq, %223, %448 : vector<8x128xf32>
    %cst_217 = arith.constant 0.000000e+00 : f32
    %450 = vector.broadcast %cst_217 : f32 to vector<8x128xf32>
    %451 = arith.select %449, %228, %450 : vector<8x128xi1>, vector<8x128xf32>
    %452 = arith.addf %447, %451 : vector<8x128xf32>
    %453 = arith.mulf %452, %440 : vector<8x128xf32>
    %454 = arith.addf %438, %453 : vector<8x128xf32>
    %c0_218 = arith.constant 0 : index
    %c14_219 = arith.constant 14 : index
    %c0_220 = arith.constant 0 : index
    %c0_221 = arith.constant 0 : index
    %455 = vector.load %arg7[%c0_218, %c14_219, %c0_220, %c0_221] : memref<4x16x8x128xf32, #tpu.memory_space<vmem>>, vector<1x1x8x128xf32>
    %456 = vector.shape_cast %455 : vector<1x1x8x128xf32> to vector<8x128xf32>
    %457 = arith.subf %456, %222 : vector<8x128xf32>
    %458 = math.exp %457 : vector<8x128xf32>
    %459 = arith.addf %443, %458 : vector<8x128xf32>
    %cst_222 = arith.constant 1.400000e+01 : f32
    %460 = vector.broadcast %cst_222 : f32 to vector<8x128xf32>
    %461 = arith.cmpf oeq, %223, %460 : vector<8x128xf32>
    %cst_223 = arith.constant 0.000000e+00 : f32
    %462 = vector.broadcast %cst_223 : f32 to vector<8x128xf32>
    %463 = arith.select %461, %226, %462 : vector<8x128xi1>, vector<8x128xf32>
    %cst_224 = arith.constant 1.300000e+01 : f32
    %464 = vector.broadcast %cst_224 : f32 to vector<8x128xf32>
    %465 = arith.cmpf oeq, %223, %464 : vector<8x128xf32>
    %cst_225 = arith.constant 0.000000e+00 : f32
    %466 = vector.broadcast %cst_225 : f32 to vector<8x128xf32>
    %467 = arith.select %465, %228, %466 : vector<8x128xi1>, vector<8x128xf32>
    %468 = arith.addf %463, %467 : vector<8x128xf32>
    %469 = arith.mulf %468, %456 : vector<8x128xf32>
    %470 = arith.addf %454, %469 : vector<8x128xf32>
    %c0_226 = arith.constant 0 : index
    %c15_227 = arith.constant 15 : index
    %c0_228 = arith.constant 0 : index
    %c0_229 = arith.constant 0 : index
    %471 = vector.load %arg7[%c0_226, %c15_227, %c0_228, %c0_229] : memref<4x16x8x128xf32, #tpu.memory_space<vmem>>, vector<1x1x8x128xf32>
    %472 = vector.shape_cast %471 : vector<1x1x8x128xf32> to vector<8x128xf32>
    %473 = arith.subf %472, %222 : vector<8x128xf32>
    %474 = math.exp %473 : vector<8x128xf32>
    %475 = arith.addf %459, %474 : vector<8x128xf32>
    %cst_230 = arith.constant 1.500000e+01 : f32
    %476 = vector.broadcast %cst_230 : f32 to vector<8x128xf32>
    %477 = arith.cmpf oeq, %223, %476 : vector<8x128xf32>
    %cst_231 = arith.constant 0.000000e+00 : f32
    %478 = vector.broadcast %cst_231 : f32 to vector<8x128xf32>
    %479 = arith.select %477, %226, %478 : vector<8x128xi1>, vector<8x128xf32>
    %cst_232 = arith.constant 1.400000e+01 : f32
    %480 = vector.broadcast %cst_232 : f32 to vector<8x128xf32>
    %481 = arith.cmpf oeq, %223, %480 : vector<8x128xf32>
    %cst_233 = arith.constant 0.000000e+00 : f32
    %482 = vector.broadcast %cst_233 : f32 to vector<8x128xf32>
    %483 = arith.select %481, %228, %482 : vector<8x128xi1>, vector<8x128xf32>
    %484 = arith.addf %479, %483 : vector<8x128xf32>
    %485 = arith.mulf %484, %472 : vector<8x128xf32>
    %486 = arith.addf %470, %485 : vector<8x128xf32>
    %487 = math.log %475 : vector<8x128xf32>
    %488 = arith.addf %222, %487 : vector<8x128xf32>
    %489 = arith.subf %488, %486 : vector<8x128xf32>
    %490 = arith.addf %175, %489 : vector<8x128xf32>
    %c1_234 = arith.constant 1 : index
    %c0_235 = arith.constant 0 : index
    %c0_236 = arith.constant 0 : index
    %c0_237 = arith.constant 0 : index
    %491 = vector.load %arg7[%c1_234, %c0_235, %c0_236, %c0_237] : memref<4x16x8x128xf32, #tpu.memory_space<vmem>>, vector<1x1x8x128xf32>
    %492 = vector.shape_cast %491 : vector<1x1x8x128xf32> to vector<8x128xf32>
    %c1_238 = arith.constant 1 : index
    %c1_239 = arith.constant 1 : index
    %c0_240 = arith.constant 0 : index
    %c0_241 = arith.constant 0 : index
    %493 = vector.load %arg7[%c1_238, %c1_239, %c0_240, %c0_241] : memref<4x16x8x128xf32, #tpu.memory_space<vmem>>, vector<1x1x8x128xf32>
    %494 = vector.shape_cast %493 : vector<1x1x8x128xf32> to vector<8x128xf32>
    %495 = arith.maximumf %492, %494 : vector<8x128xf32>
    %c1_242 = arith.constant 1 : index
    %c2_243 = arith.constant 2 : index
    %c0_244 = arith.constant 0 : index
    %c0_245 = arith.constant 0 : index
    %496 = vector.load %arg7[%c1_242, %c2_243, %c0_244, %c0_245] : memref<4x16x8x128xf32, #tpu.memory_space<vmem>>, vector<1x1x8x128xf32>
    %497 = vector.shape_cast %496 : vector<1x1x8x128xf32> to vector<8x128xf32>
    %498 = arith.maximumf %495, %497 : vector<8x128xf32>
    %c1_246 = arith.constant 1 : index
    %c3_247 = arith.constant 3 : index
    %c0_248 = arith.constant 0 : index
    %c0_249 = arith.constant 0 : index
    %499 = vector.load %arg7[%c1_246, %c3_247, %c0_248, %c0_249] : memref<4x16x8x128xf32, #tpu.memory_space<vmem>>, vector<1x1x8x128xf32>
    %500 = vector.shape_cast %499 : vector<1x1x8x128xf32> to vector<8x128xf32>
    %501 = arith.maximumf %498, %500 : vector<8x128xf32>
    %c1_250 = arith.constant 1 : index
    %c4_251 = arith.constant 4 : index
    %c0_252 = arith.constant 0 : index
    %c0_253 = arith.constant 0 : index
    %502 = vector.load %arg7[%c1_250, %c4_251, %c0_252, %c0_253] : memref<4x16x8x128xf32, #tpu.memory_space<vmem>>, vector<1x1x8x128xf32>
    %503 = vector.shape_cast %502 : vector<1x1x8x128xf32> to vector<8x128xf32>
    %504 = arith.maximumf %501, %503 : vector<8x128xf32>
    %c1_254 = arith.constant 1 : index
    %c5_255 = arith.constant 5 : index
    %c0_256 = arith.constant 0 : index
    %c0_257 = arith.constant 0 : index
    %505 = vector.load %arg7[%c1_254, %c5_255, %c0_256, %c0_257] : memref<4x16x8x128xf32, #tpu.memory_space<vmem>>, vector<1x1x8x128xf32>
    %506 = vector.shape_cast %505 : vector<1x1x8x128xf32> to vector<8x128xf32>
    %507 = arith.maximumf %504, %506 : vector<8x128xf32>
    %c1_258 = arith.constant 1 : index
    %c6_259 = arith.constant 6 : index
    %c0_260 = arith.constant 0 : index
    %c0_261 = arith.constant 0 : index
    %508 = vector.load %arg7[%c1_258, %c6_259, %c0_260, %c0_261] : memref<4x16x8x128xf32, #tpu.memory_space<vmem>>, vector<1x1x8x128xf32>
    %509 = vector.shape_cast %508 : vector<1x1x8x128xf32> to vector<8x128xf32>
    %510 = arith.maximumf %507, %509 : vector<8x128xf32>
    %c1_262 = arith.constant 1 : index
    %c7_263 = arith.constant 7 : index
    %c0_264 = arith.constant 0 : index
    %c0_265 = arith.constant 0 : index
    %511 = vector.load %arg7[%c1_262, %c7_263, %c0_264, %c0_265] : memref<4x16x8x128xf32, #tpu.memory_space<vmem>>, vector<1x1x8x128xf32>
    %512 = vector.shape_cast %511 : vector<1x1x8x128xf32> to vector<8x128xf32>
    %513 = arith.maximumf %510, %512 : vector<8x128xf32>
    %c1_266 = arith.constant 1 : index
    %c8_267 = arith.constant 8 : index
    %c0_268 = arith.constant 0 : index
    %c0_269 = arith.constant 0 : index
    %514 = vector.load %arg7[%c1_266, %c8_267, %c0_268, %c0_269] : memref<4x16x8x128xf32, #tpu.memory_space<vmem>>, vector<1x1x8x128xf32>
    %515 = vector.shape_cast %514 : vector<1x1x8x128xf32> to vector<8x128xf32>
    %516 = arith.maximumf %513, %515 : vector<8x128xf32>
    %c1_270 = arith.constant 1 : index
    %c9_271 = arith.constant 9 : index
    %c0_272 = arith.constant 0 : index
    %c0_273 = arith.constant 0 : index
    %517 = vector.load %arg7[%c1_270, %c9_271, %c0_272, %c0_273] : memref<4x16x8x128xf32, #tpu.memory_space<vmem>>, vector<1x1x8x128xf32>
    %518 = vector.shape_cast %517 : vector<1x1x8x128xf32> to vector<8x128xf32>
    %519 = arith.maximumf %516, %518 : vector<8x128xf32>
    %c1_274 = arith.constant 1 : index
    %c10_275 = arith.constant 10 : index
    %c0_276 = arith.constant 0 : index
    %c0_277 = arith.constant 0 : index
    %520 = vector.load %arg7[%c1_274, %c10_275, %c0_276, %c0_277] : memref<4x16x8x128xf32, #tpu.memory_space<vmem>>, vector<1x1x8x128xf32>
    %521 = vector.shape_cast %520 : vector<1x1x8x128xf32> to vector<8x128xf32>
    %522 = arith.maximumf %519, %521 : vector<8x128xf32>
    %c1_278 = arith.constant 1 : index
    %c11_279 = arith.constant 11 : index
    %c0_280 = arith.constant 0 : index
    %c0_281 = arith.constant 0 : index
    %523 = vector.load %arg7[%c1_278, %c11_279, %c0_280, %c0_281] : memref<4x16x8x128xf32, #tpu.memory_space<vmem>>, vector<1x1x8x128xf32>
    %524 = vector.shape_cast %523 : vector<1x1x8x128xf32> to vector<8x128xf32>
    %525 = arith.maximumf %522, %524 : vector<8x128xf32>
    %c1_282 = arith.constant 1 : index
    %c12_283 = arith.constant 12 : index
    %c0_284 = arith.constant 0 : index
    %c0_285 = arith.constant 0 : index
    %526 = vector.load %arg7[%c1_282, %c12_283, %c0_284, %c0_285] : memref<4x16x8x128xf32, #tpu.memory_space<vmem>>, vector<1x1x8x128xf32>
    %527 = vector.shape_cast %526 : vector<1x1x8x128xf32> to vector<8x128xf32>
    %528 = arith.maximumf %525, %527 : vector<8x128xf32>
    %c1_286 = arith.constant 1 : index
    %c13_287 = arith.constant 13 : index
    %c0_288 = arith.constant 0 : index
    %c0_289 = arith.constant 0 : index
    %529 = vector.load %arg7[%c1_286, %c13_287, %c0_288, %c0_289] : memref<4x16x8x128xf32, #tpu.memory_space<vmem>>, vector<1x1x8x128xf32>
    %530 = vector.shape_cast %529 : vector<1x1x8x128xf32> to vector<8x128xf32>
    %531 = arith.maximumf %528, %530 : vector<8x128xf32>
    %c1_290 = arith.constant 1 : index
    %c14_291 = arith.constant 14 : index
    %c0_292 = arith.constant 0 : index
    %c0_293 = arith.constant 0 : index
    %532 = vector.load %arg7[%c1_290, %c14_291, %c0_292, %c0_293] : memref<4x16x8x128xf32, #tpu.memory_space<vmem>>, vector<1x1x8x128xf32>
    %533 = vector.shape_cast %532 : vector<1x1x8x128xf32> to vector<8x128xf32>
    %534 = arith.maximumf %531, %533 : vector<8x128xf32>
    %c1_294 = arith.constant 1 : index
    %c15_295 = arith.constant 15 : index
    %c0_296 = arith.constant 0 : index
    %c0_297 = arith.constant 0 : index
    %535 = vector.load %arg7[%c1_294, %c15_295, %c0_296, %c0_297] : memref<4x16x8x128xf32, #tpu.memory_space<vmem>>, vector<1x1x8x128xf32>
    %536 = vector.shape_cast %535 : vector<1x1x8x128xf32> to vector<8x128xf32>
    %537 = arith.maximumf %534, %536 : vector<8x128xf32>
    %538 = math.floor %162 : vector<8x128xf32>
    %cst_298 = arith.constant 1.000000e+00 : f32
    %539 = vector.broadcast %cst_298 : f32 to vector<8x128xf32>
    %540 = arith.addf %538, %539 : vector<8x128xf32>
    %541 = arith.subf %540, %162 : vector<8x128xf32>
    %cst_299 = arith.constant 1.000000e+00 : f32
    %542 = vector.broadcast %cst_299 : f32 to vector<8x128xf32>
    %543 = arith.subf %542, %541 : vector<8x128xf32>
    %cst_300 = arith.constant 0.000000e+00 : f32
    %544 = vector.broadcast %cst_300 : f32 to vector<8x128xf32>
    %cst_301 = arith.constant 0.000000e+00 : f32
    %545 = vector.broadcast %cst_301 : f32 to vector<8x128xf32>
    %c1_302 = arith.constant 1 : index
    %c0_303 = arith.constant 0 : index
    %c0_304 = arith.constant 0 : index
    %c0_305 = arith.constant 0 : index
    %546 = vector.load %arg7[%c1_302, %c0_303, %c0_304, %c0_305] : memref<4x16x8x128xf32, #tpu.memory_space<vmem>>, vector<1x1x8x128xf32>
    %547 = vector.shape_cast %546 : vector<1x1x8x128xf32> to vector<8x128xf32>
    %548 = arith.subf %547, %537 : vector<8x128xf32>
    %549 = math.exp %548 : vector<8x128xf32>
    %550 = arith.addf %544, %549 : vector<8x128xf32>
    %cst_306 = arith.constant 0.000000e+00 : f32
    %551 = vector.broadcast %cst_306 : f32 to vector<8x128xf32>
    %552 = arith.cmpf oeq, %538, %551 : vector<8x128xf32>
    %cst_307 = arith.constant 0.000000e+00 : f32
    %553 = vector.broadcast %cst_307 : f32 to vector<8x128xf32>
    %554 = arith.select %552, %541, %553 : vector<8x128xi1>, vector<8x128xf32>
    %cst_308 = arith.constant -1.000000e+00 : f32
    %555 = vector.broadcast %cst_308 : f32 to vector<8x128xf32>
    %556 = arith.cmpf oeq, %538, %555 : vector<8x128xf32>
    %cst_309 = arith.constant 0.000000e+00 : f32
    %557 = vector.broadcast %cst_309 : f32 to vector<8x128xf32>
    %558 = arith.select %556, %543, %557 : vector<8x128xi1>, vector<8x128xf32>
    %559 = arith.addf %554, %558 : vector<8x128xf32>
    %560 = arith.mulf %559, %547 : vector<8x128xf32>
    %561 = arith.addf %545, %560 : vector<8x128xf32>
    %c1_310 = arith.constant 1 : index
    %c1_311 = arith.constant 1 : index
    %c0_312 = arith.constant 0 : index
    %c0_313 = arith.constant 0 : index
    %562 = vector.load %arg7[%c1_310, %c1_311, %c0_312, %c0_313] : memref<4x16x8x128xf32, #tpu.memory_space<vmem>>, vector<1x1x8x128xf32>
    %563 = vector.shape_cast %562 : vector<1x1x8x128xf32> to vector<8x128xf32>
    %564 = arith.subf %563, %537 : vector<8x128xf32>
    %565 = math.exp %564 : vector<8x128xf32>
    %566 = arith.addf %550, %565 : vector<8x128xf32>
    %cst_314 = arith.constant 1.000000e+00 : f32
    %567 = vector.broadcast %cst_314 : f32 to vector<8x128xf32>
    %568 = arith.cmpf oeq, %538, %567 : vector<8x128xf32>
    %cst_315 = arith.constant 0.000000e+00 : f32
    %569 = vector.broadcast %cst_315 : f32 to vector<8x128xf32>
    %570 = arith.select %568, %541, %569 : vector<8x128xi1>, vector<8x128xf32>
    %cst_316 = arith.constant 0.000000e+00 : f32
    %571 = vector.broadcast %cst_316 : f32 to vector<8x128xf32>
    %572 = arith.cmpf oeq, %538, %571 : vector<8x128xf32>
    %cst_317 = arith.constant 0.000000e+00 : f32
    %573 = vector.broadcast %cst_317 : f32 to vector<8x128xf32>
    %574 = arith.select %572, %543, %573 : vector<8x128xi1>, vector<8x128xf32>
    %575 = arith.addf %570, %574 : vector<8x128xf32>
    %576 = arith.mulf %575, %563 : vector<8x128xf32>
    %577 = arith.addf %561, %576 : vector<8x128xf32>
    %c1_318 = arith.constant 1 : index
    %c2_319 = arith.constant 2 : index
    %c0_320 = arith.constant 0 : index
    %c0_321 = arith.constant 0 : index
    %578 = vector.load %arg7[%c1_318, %c2_319, %c0_320, %c0_321] : memref<4x16x8x128xf32, #tpu.memory_space<vmem>>, vector<1x1x8x128xf32>
    %579 = vector.shape_cast %578 : vector<1x1x8x128xf32> to vector<8x128xf32>
    %580 = arith.subf %579, %537 : vector<8x128xf32>
    %581 = math.exp %580 : vector<8x128xf32>
    %582 = arith.addf %566, %581 : vector<8x128xf32>
    %cst_322 = arith.constant 2.000000e+00 : f32
    %583 = vector.broadcast %cst_322 : f32 to vector<8x128xf32>
    %584 = arith.cmpf oeq, %538, %583 : vector<8x128xf32>
    %cst_323 = arith.constant 0.000000e+00 : f32
    %585 = vector.broadcast %cst_323 : f32 to vector<8x128xf32>
    %586 = arith.select %584, %541, %585 : vector<8x128xi1>, vector<8x128xf32>
    %cst_324 = arith.constant 1.000000e+00 : f32
    %587 = vector.broadcast %cst_324 : f32 to vector<8x128xf32>
    %588 = arith.cmpf oeq, %538, %587 : vector<8x128xf32>
    %cst_325 = arith.constant 0.000000e+00 : f32
    %589 = vector.broadcast %cst_325 : f32 to vector<8x128xf32>
    %590 = arith.select %588, %543, %589 : vector<8x128xi1>, vector<8x128xf32>
    %591 = arith.addf %586, %590 : vector<8x128xf32>
    %592 = arith.mulf %591, %579 : vector<8x128xf32>
    %593 = arith.addf %577, %592 : vector<8x128xf32>
    %c1_326 = arith.constant 1 : index
    %c3_327 = arith.constant 3 : index
    %c0_328 = arith.constant 0 : index
    %c0_329 = arith.constant 0 : index
    %594 = vector.load %arg7[%c1_326, %c3_327, %c0_328, %c0_329] : memref<4x16x8x128xf32, #tpu.memory_space<vmem>>, vector<1x1x8x128xf32>
    %595 = vector.shape_cast %594 : vector<1x1x8x128xf32> to vector<8x128xf32>
    %596 = arith.subf %595, %537 : vector<8x128xf32>
    %597 = math.exp %596 : vector<8x128xf32>
    %598 = arith.addf %582, %597 : vector<8x128xf32>
    %cst_330 = arith.constant 3.000000e+00 : f32
    %599 = vector.broadcast %cst_330 : f32 to vector<8x128xf32>
    %600 = arith.cmpf oeq, %538, %599 : vector<8x128xf32>
    %cst_331 = arith.constant 0.000000e+00 : f32
    %601 = vector.broadcast %cst_331 : f32 to vector<8x128xf32>
    %602 = arith.select %600, %541, %601 : vector<8x128xi1>, vector<8x128xf32>
    %cst_332 = arith.constant 2.000000e+00 : f32
    %603 = vector.broadcast %cst_332 : f32 to vector<8x128xf32>
    %604 = arith.cmpf oeq, %538, %603 : vector<8x128xf32>
    %cst_333 = arith.constant 0.000000e+00 : f32
    %605 = vector.broadcast %cst_333 : f32 to vector<8x128xf32>
    %606 = arith.select %604, %543, %605 : vector<8x128xi1>, vector<8x128xf32>
    %607 = arith.addf %602, %606 : vector<8x128xf32>
    %608 = arith.mulf %607, %595 : vector<8x128xf32>
    %609 = arith.addf %593, %608 : vector<8x128xf32>
    %c1_334 = arith.constant 1 : index
    %c4_335 = arith.constant 4 : index
    %c0_336 = arith.constant 0 : index
    %c0_337 = arith.constant 0 : index
    %610 = vector.load %arg7[%c1_334, %c4_335, %c0_336, %c0_337] : memref<4x16x8x128xf32, #tpu.memory_space<vmem>>, vector<1x1x8x128xf32>
    %611 = vector.shape_cast %610 : vector<1x1x8x128xf32> to vector<8x128xf32>
    %612 = arith.subf %611, %537 : vector<8x128xf32>
    %613 = math.exp %612 : vector<8x128xf32>
    %614 = arith.addf %598, %613 : vector<8x128xf32>
    %cst_338 = arith.constant 4.000000e+00 : f32
    %615 = vector.broadcast %cst_338 : f32 to vector<8x128xf32>
    %616 = arith.cmpf oeq, %538, %615 : vector<8x128xf32>
    %cst_339 = arith.constant 0.000000e+00 : f32
    %617 = vector.broadcast %cst_339 : f32 to vector<8x128xf32>
    %618 = arith.select %616, %541, %617 : vector<8x128xi1>, vector<8x128xf32>
    %cst_340 = arith.constant 3.000000e+00 : f32
    %619 = vector.broadcast %cst_340 : f32 to vector<8x128xf32>
    %620 = arith.cmpf oeq, %538, %619 : vector<8x128xf32>
    %cst_341 = arith.constant 0.000000e+00 : f32
    %621 = vector.broadcast %cst_341 : f32 to vector<8x128xf32>
    %622 = arith.select %620, %543, %621 : vector<8x128xi1>, vector<8x128xf32>
    %623 = arith.addf %618, %622 : vector<8x128xf32>
    %624 = arith.mulf %623, %611 : vector<8x128xf32>
    %625 = arith.addf %609, %624 : vector<8x128xf32>
    %c1_342 = arith.constant 1 : index
    %c5_343 = arith.constant 5 : index
    %c0_344 = arith.constant 0 : index
    %c0_345 = arith.constant 0 : index
    %626 = vector.load %arg7[%c1_342, %c5_343, %c0_344, %c0_345] : memref<4x16x8x128xf32, #tpu.memory_space<vmem>>, vector<1x1x8x128xf32>
    %627 = vector.shape_cast %626 : vector<1x1x8x128xf32> to vector<8x128xf32>
    %628 = arith.subf %627, %537 : vector<8x128xf32>
    %629 = math.exp %628 : vector<8x128xf32>
    %630 = arith.addf %614, %629 : vector<8x128xf32>
    %cst_346 = arith.constant 5.000000e+00 : f32
    %631 = vector.broadcast %cst_346 : f32 to vector<8x128xf32>
    %632 = arith.cmpf oeq, %538, %631 : vector<8x128xf32>
    %cst_347 = arith.constant 0.000000e+00 : f32
    %633 = vector.broadcast %cst_347 : f32 to vector<8x128xf32>
    %634 = arith.select %632, %541, %633 : vector<8x128xi1>, vector<8x128xf32>
    %cst_348 = arith.constant 4.000000e+00 : f32
    %635 = vector.broadcast %cst_348 : f32 to vector<8x128xf32>
    %636 = arith.cmpf oeq, %538, %635 : vector<8x128xf32>
    %cst_349 = arith.constant 0.000000e+00 : f32
    %637 = vector.broadcast %cst_349 : f32 to vector<8x128xf32>
    %638 = arith.select %636, %543, %637 : vector<8x128xi1>, vector<8x128xf32>
    %639 = arith.addf %634, %638 : vector<8x128xf32>
    %640 = arith.mulf %639, %627 : vector<8x128xf32>
    %641 = arith.addf %625, %640 : vector<8x128xf32>
    %c1_350 = arith.constant 1 : index
    %c6_351 = arith.constant 6 : index
    %c0_352 = arith.constant 0 : index
    %c0_353 = arith.constant 0 : index
    %642 = vector.load %arg7[%c1_350, %c6_351, %c0_352, %c0_353] : memref<4x16x8x128xf32, #tpu.memory_space<vmem>>, vector<1x1x8x128xf32>
    %643 = vector.shape_cast %642 : vector<1x1x8x128xf32> to vector<8x128xf32>
    %644 = arith.subf %643, %537 : vector<8x128xf32>
    %645 = math.exp %644 : vector<8x128xf32>
    %646 = arith.addf %630, %645 : vector<8x128xf32>
    %cst_354 = arith.constant 6.000000e+00 : f32
    %647 = vector.broadcast %cst_354 : f32 to vector<8x128xf32>
    %648 = arith.cmpf oeq, %538, %647 : vector<8x128xf32>
    %cst_355 = arith.constant 0.000000e+00 : f32
    %649 = vector.broadcast %cst_355 : f32 to vector<8x128xf32>
    %650 = arith.select %648, %541, %649 : vector<8x128xi1>, vector<8x128xf32>
    %cst_356 = arith.constant 5.000000e+00 : f32
    %651 = vector.broadcast %cst_356 : f32 to vector<8x128xf32>
    %652 = arith.cmpf oeq, %538, %651 : vector<8x128xf32>
    %cst_357 = arith.constant 0.000000e+00 : f32
    %653 = vector.broadcast %cst_357 : f32 to vector<8x128xf32>
    %654 = arith.select %652, %543, %653 : vector<8x128xi1>, vector<8x128xf32>
    %655 = arith.addf %650, %654 : vector<8x128xf32>
    %656 = arith.mulf %655, %643 : vector<8x128xf32>
    %657 = arith.addf %641, %656 : vector<8x128xf32>
    %c1_358 = arith.constant 1 : index
    %c7_359 = arith.constant 7 : index
    %c0_360 = arith.constant 0 : index
    %c0_361 = arith.constant 0 : index
    %658 = vector.load %arg7[%c1_358, %c7_359, %c0_360, %c0_361] : memref<4x16x8x128xf32, #tpu.memory_space<vmem>>, vector<1x1x8x128xf32>
    %659 = vector.shape_cast %658 : vector<1x1x8x128xf32> to vector<8x128xf32>
    %660 = arith.subf %659, %537 : vector<8x128xf32>
    %661 = math.exp %660 : vector<8x128xf32>
    %662 = arith.addf %646, %661 : vector<8x128xf32>
    %cst_362 = arith.constant 7.000000e+00 : f32
    %663 = vector.broadcast %cst_362 : f32 to vector<8x128xf32>
    %664 = arith.cmpf oeq, %538, %663 : vector<8x128xf32>
    %cst_363 = arith.constant 0.000000e+00 : f32
    %665 = vector.broadcast %cst_363 : f32 to vector<8x128xf32>
    %666 = arith.select %664, %541, %665 : vector<8x128xi1>, vector<8x128xf32>
    %cst_364 = arith.constant 6.000000e+00 : f32
    %667 = vector.broadcast %cst_364 : f32 to vector<8x128xf32>
    %668 = arith.cmpf oeq, %538, %667 : vector<8x128xf32>
    %cst_365 = arith.constant 0.000000e+00 : f32
    %669 = vector.broadcast %cst_365 : f32 to vector<8x128xf32>
    %670 = arith.select %668, %543, %669 : vector<8x128xi1>, vector<8x128xf32>
    %671 = arith.addf %666, %670 : vector<8x128xf32>
    %672 = arith.mulf %671, %659 : vector<8x128xf32>
    %673 = arith.addf %657, %672 : vector<8x128xf32>
    %c1_366 = arith.constant 1 : index
    %c8_367 = arith.constant 8 : index
    %c0_368 = arith.constant 0 : index
    %c0_369 = arith.constant 0 : index
    %674 = vector.load %arg7[%c1_366, %c8_367, %c0_368, %c0_369] : memref<4x16x8x128xf32, #tpu.memory_space<vmem>>, vector<1x1x8x128xf32>
    %675 = vector.shape_cast %674 : vector<1x1x8x128xf32> to vector<8x128xf32>
    %676 = arith.subf %675, %537 : vector<8x128xf32>
    %677 = math.exp %676 : vector<8x128xf32>
    %678 = arith.addf %662, %677 : vector<8x128xf32>
    %cst_370 = arith.constant 8.000000e+00 : f32
    %679 = vector.broadcast %cst_370 : f32 to vector<8x128xf32>
    %680 = arith.cmpf oeq, %538, %679 : vector<8x128xf32>
    %cst_371 = arith.constant 0.000000e+00 : f32
    %681 = vector.broadcast %cst_371 : f32 to vector<8x128xf32>
    %682 = arith.select %680, %541, %681 : vector<8x128xi1>, vector<8x128xf32>
    %cst_372 = arith.constant 7.000000e+00 : f32
    %683 = vector.broadcast %cst_372 : f32 to vector<8x128xf32>
    %684 = arith.cmpf oeq, %538, %683 : vector<8x128xf32>
    %cst_373 = arith.constant 0.000000e+00 : f32
    %685 = vector.broadcast %cst_373 : f32 to vector<8x128xf32>
    %686 = arith.select %684, %543, %685 : vector<8x128xi1>, vector<8x128xf32>
    %687 = arith.addf %682, %686 : vector<8x128xf32>
    %688 = arith.mulf %687, %675 : vector<8x128xf32>
    %689 = arith.addf %673, %688 : vector<8x128xf32>
    %c1_374 = arith.constant 1 : index
    %c9_375 = arith.constant 9 : index
    %c0_376 = arith.constant 0 : index
    %c0_377 = arith.constant 0 : index
    %690 = vector.load %arg7[%c1_374, %c9_375, %c0_376, %c0_377] : memref<4x16x8x128xf32, #tpu.memory_space<vmem>>, vector<1x1x8x128xf32>
    %691 = vector.shape_cast %690 : vector<1x1x8x128xf32> to vector<8x128xf32>
    %692 = arith.subf %691, %537 : vector<8x128xf32>
    %693 = math.exp %692 : vector<8x128xf32>
    %694 = arith.addf %678, %693 : vector<8x128xf32>
    %cst_378 = arith.constant 9.000000e+00 : f32
    %695 = vector.broadcast %cst_378 : f32 to vector<8x128xf32>
    %696 = arith.cmpf oeq, %538, %695 : vector<8x128xf32>
    %cst_379 = arith.constant 0.000000e+00 : f32
    %697 = vector.broadcast %cst_379 : f32 to vector<8x128xf32>
    %698 = arith.select %696, %541, %697 : vector<8x128xi1>, vector<8x128xf32>
    %cst_380 = arith.constant 8.000000e+00 : f32
    %699 = vector.broadcast %cst_380 : f32 to vector<8x128xf32>
    %700 = arith.cmpf oeq, %538, %699 : vector<8x128xf32>
    %cst_381 = arith.constant 0.000000e+00 : f32
    %701 = vector.broadcast %cst_381 : f32 to vector<8x128xf32>
    %702 = arith.select %700, %543, %701 : vector<8x128xi1>, vector<8x128xf32>
    %703 = arith.addf %698, %702 : vector<8x128xf32>
    %704 = arith.mulf %703, %691 : vector<8x128xf32>
    %705 = arith.addf %689, %704 : vector<8x128xf32>
    %c1_382 = arith.constant 1 : index
    %c10_383 = arith.constant 10 : index
    %c0_384 = arith.constant 0 : index
    %c0_385 = arith.constant 0 : index
    %706 = vector.load %arg7[%c1_382, %c10_383, %c0_384, %c0_385] : memref<4x16x8x128xf32, #tpu.memory_space<vmem>>, vector<1x1x8x128xf32>
    %707 = vector.shape_cast %706 : vector<1x1x8x128xf32> to vector<8x128xf32>
    %708 = arith.subf %707, %537 : vector<8x128xf32>
    %709 = math.exp %708 : vector<8x128xf32>
    %710 = arith.addf %694, %709 : vector<8x128xf32>
    %cst_386 = arith.constant 1.000000e+01 : f32
    %711 = vector.broadcast %cst_386 : f32 to vector<8x128xf32>
    %712 = arith.cmpf oeq, %538, %711 : vector<8x128xf32>
    %cst_387 = arith.constant 0.000000e+00 : f32
    %713 = vector.broadcast %cst_387 : f32 to vector<8x128xf32>
    %714 = arith.select %712, %541, %713 : vector<8x128xi1>, vector<8x128xf32>
    %cst_388 = arith.constant 9.000000e+00 : f32
    %715 = vector.broadcast %cst_388 : f32 to vector<8x128xf32>
    %716 = arith.cmpf oeq, %538, %715 : vector<8x128xf32>
    %cst_389 = arith.constant 0.000000e+00 : f32
    %717 = vector.broadcast %cst_389 : f32 to vector<8x128xf32>
    %718 = arith.select %716, %543, %717 : vector<8x128xi1>, vector<8x128xf32>
    %719 = arith.addf %714, %718 : vector<8x128xf32>
    %720 = arith.mulf %719, %707 : vector<8x128xf32>
    %721 = arith.addf %705, %720 : vector<8x128xf32>
    %c1_390 = arith.constant 1 : index
    %c11_391 = arith.constant 11 : index
    %c0_392 = arith.constant 0 : index
    %c0_393 = arith.constant 0 : index
    %722 = vector.load %arg7[%c1_390, %c11_391, %c0_392, %c0_393] : memref<4x16x8x128xf32, #tpu.memory_space<vmem>>, vector<1x1x8x128xf32>
    %723 = vector.shape_cast %722 : vector<1x1x8x128xf32> to vector<8x128xf32>
    %724 = arith.subf %723, %537 : vector<8x128xf32>
    %725 = math.exp %724 : vector<8x128xf32>
    %726 = arith.addf %710, %725 : vector<8x128xf32>
    %cst_394 = arith.constant 1.100000e+01 : f32
    %727 = vector.broadcast %cst_394 : f32 to vector<8x128xf32>
    %728 = arith.cmpf oeq, %538, %727 : vector<8x128xf32>
    %cst_395 = arith.constant 0.000000e+00 : f32
    %729 = vector.broadcast %cst_395 : f32 to vector<8x128xf32>
    %730 = arith.select %728, %541, %729 : vector<8x128xi1>, vector<8x128xf32>
    %cst_396 = arith.constant 1.000000e+01 : f32
    %731 = vector.broadcast %cst_396 : f32 to vector<8x128xf32>
    %732 = arith.cmpf oeq, %538, %731 : vector<8x128xf32>
    %cst_397 = arith.constant 0.000000e+00 : f32
    %733 = vector.broadcast %cst_397 : f32 to vector<8x128xf32>
    %734 = arith.select %732, %543, %733 : vector<8x128xi1>, vector<8x128xf32>
    %735 = arith.addf %730, %734 : vector<8x128xf32>
    %736 = arith.mulf %735, %723 : vector<8x128xf32>
    %737 = arith.addf %721, %736 : vector<8x128xf32>
    %c1_398 = arith.constant 1 : index
    %c12_399 = arith.constant 12 : index
    %c0_400 = arith.constant 0 : index
    %c0_401 = arith.constant 0 : index
    %738 = vector.load %arg7[%c1_398, %c12_399, %c0_400, %c0_401] : memref<4x16x8x128xf32, #tpu.memory_space<vmem>>, vector<1x1x8x128xf32>
    %739 = vector.shape_cast %738 : vector<1x1x8x128xf32> to vector<8x128xf32>
    %740 = arith.subf %739, %537 : vector<8x128xf32>
    %741 = math.exp %740 : vector<8x128xf32>
    %742 = arith.addf %726, %741 : vector<8x128xf32>
    %cst_402 = arith.constant 1.200000e+01 : f32
    %743 = vector.broadcast %cst_402 : f32 to vector<8x128xf32>
    %744 = arith.cmpf oeq, %538, %743 : vector<8x128xf32>
    %cst_403 = arith.constant 0.000000e+00 : f32
    %745 = vector.broadcast %cst_403 : f32 to vector<8x128xf32>
    %746 = arith.select %744, %541, %745 : vector<8x128xi1>, vector<8x128xf32>
    %cst_404 = arith.constant 1.100000e+01 : f32
    %747 = vector.broadcast %cst_404 : f32 to vector<8x128xf32>
    %748 = arith.cmpf oeq, %538, %747 : vector<8x128xf32>
    %cst_405 = arith.constant 0.000000e+00 : f32
    %749 = vector.broadcast %cst_405 : f32 to vector<8x128xf32>
    %750 = arith.select %748, %543, %749 : vector<8x128xi1>, vector<8x128xf32>
    %751 = arith.addf %746, %750 : vector<8x128xf32>
    %752 = arith.mulf %751, %739 : vector<8x128xf32>
    %753 = arith.addf %737, %752 : vector<8x128xf32>
    %c1_406 = arith.constant 1 : index
    %c13_407 = arith.constant 13 : index
    %c0_408 = arith.constant 0 : index
    %c0_409 = arith.constant 0 : index
    %754 = vector.load %arg7[%c1_406, %c13_407, %c0_408, %c0_409] : memref<4x16x8x128xf32, #tpu.memory_space<vmem>>, vector<1x1x8x128xf32>
    %755 = vector.shape_cast %754 : vector<1x1x8x128xf32> to vector<8x128xf32>
    %756 = arith.subf %755, %537 : vector<8x128xf32>
    %757 = math.exp %756 : vector<8x128xf32>
    %758 = arith.addf %742, %757 : vector<8x128xf32>
    %cst_410 = arith.constant 1.300000e+01 : f32
    %759 = vector.broadcast %cst_410 : f32 to vector<8x128xf32>
    %760 = arith.cmpf oeq, %538, %759 : vector<8x128xf32>
    %cst_411 = arith.constant 0.000000e+00 : f32
    %761 = vector.broadcast %cst_411 : f32 to vector<8x128xf32>
    %762 = arith.select %760, %541, %761 : vector<8x128xi1>, vector<8x128xf32>
    %cst_412 = arith.constant 1.200000e+01 : f32
    %763 = vector.broadcast %cst_412 : f32 to vector<8x128xf32>
    %764 = arith.cmpf oeq, %538, %763 : vector<8x128xf32>
    %cst_413 = arith.constant 0.000000e+00 : f32
    %765 = vector.broadcast %cst_413 : f32 to vector<8x128xf32>
    %766 = arith.select %764, %543, %765 : vector<8x128xi1>, vector<8x128xf32>
    %767 = arith.addf %762, %766 : vector<8x128xf32>
    %768 = arith.mulf %767, %755 : vector<8x128xf32>
    %769 = arith.addf %753, %768 : vector<8x128xf32>
    %c1_414 = arith.constant 1 : index
    %c14_415 = arith.constant 14 : index
    %c0_416 = arith.constant 0 : index
    %c0_417 = arith.constant 0 : index
    %770 = vector.load %arg7[%c1_414, %c14_415, %c0_416, %c0_417] : memref<4x16x8x128xf32, #tpu.memory_space<vmem>>, vector<1x1x8x128xf32>
    %771 = vector.shape_cast %770 : vector<1x1x8x128xf32> to vector<8x128xf32>
    %772 = arith.subf %771, %537 : vector<8x128xf32>
    %773 = math.exp %772 : vector<8x128xf32>
    %774 = arith.addf %758, %773 : vector<8x128xf32>
    %cst_418 = arith.constant 1.400000e+01 : f32
    %775 = vector.broadcast %cst_418 : f32 to vector<8x128xf32>
    %776 = arith.cmpf oeq, %538, %775 : vector<8x128xf32>
    %cst_419 = arith.constant 0.000000e+00 : f32
    %777 = vector.broadcast %cst_419 : f32 to vector<8x128xf32>
    %778 = arith.select %776, %541, %777 : vector<8x128xi1>, vector<8x128xf32>
    %cst_420 = arith.constant 1.300000e+01 : f32
    %779 = vector.broadcast %cst_420 : f32 to vector<8x128xf32>
    %780 = arith.cmpf oeq, %538, %779 : vector<8x128xf32>
    %cst_421 = arith.constant 0.000000e+00 : f32
    %781 = vector.broadcast %cst_421 : f32 to vector<8x128xf32>
    %782 = arith.select %780, %543, %781 : vector<8x128xi1>, vector<8x128xf32>
    %783 = arith.addf %778, %782 : vector<8x128xf32>
    %784 = arith.mulf %783, %771 : vector<8x128xf32>
    %785 = arith.addf %769, %784 : vector<8x128xf32>
    %c1_422 = arith.constant 1 : index
    %c15_423 = arith.constant 15 : index
    %c0_424 = arith.constant 0 : index
    %c0_425 = arith.constant 0 : index
    %786 = vector.load %arg7[%c1_422, %c15_423, %c0_424, %c0_425] : memref<4x16x8x128xf32, #tpu.memory_space<vmem>>, vector<1x1x8x128xf32>
    %787 = vector.shape_cast %786 : vector<1x1x8x128xf32> to vector<8x128xf32>
    %788 = arith.subf %787, %537 : vector<8x128xf32>
    %789 = math.exp %788 : vector<8x128xf32>
    %790 = arith.addf %774, %789 : vector<8x128xf32>
    %cst_426 = arith.constant 1.500000e+01 : f32
    %791 = vector.broadcast %cst_426 : f32 to vector<8x128xf32>
    %792 = arith.cmpf oeq, %538, %791 : vector<8x128xf32>
    %cst_427 = arith.constant 0.000000e+00 : f32
    %793 = vector.broadcast %cst_427 : f32 to vector<8x128xf32>
    %794 = arith.select %792, %541, %793 : vector<8x128xi1>, vector<8x128xf32>
    %cst_428 = arith.constant 1.400000e+01 : f32
    %795 = vector.broadcast %cst_428 : f32 to vector<8x128xf32>
    %796 = arith.cmpf oeq, %538, %795 : vector<8x128xf32>
    %cst_429 = arith.constant 0.000000e+00 : f32
    %797 = vector.broadcast %cst_429 : f32 to vector<8x128xf32>
    %798 = arith.select %796, %543, %797 : vector<8x128xi1>, vector<8x128xf32>
    %799 = arith.addf %794, %798 : vector<8x128xf32>
    %800 = arith.mulf %799, %787 : vector<8x128xf32>
    %801 = arith.addf %785, %800 : vector<8x128xf32>
    %802 = math.log %790 : vector<8x128xf32>
    %803 = arith.addf %537, %802 : vector<8x128xf32>
    %804 = arith.subf %803, %801 : vector<8x128xf32>
    %805 = arith.addf %490, %804 : vector<8x128xf32>
    %c2_430 = arith.constant 2 : index
    %c0_431 = arith.constant 0 : index
    %c0_432 = arith.constant 0 : index
    %c0_433 = arith.constant 0 : index
    %806 = vector.load %arg7[%c2_430, %c0_431, %c0_432, %c0_433] : memref<4x16x8x128xf32, #tpu.memory_space<vmem>>, vector<1x1x8x128xf32>
    %807 = vector.shape_cast %806 : vector<1x1x8x128xf32> to vector<8x128xf32>
    %c2_434 = arith.constant 2 : index
    %c1_435 = arith.constant 1 : index
    %c0_436 = arith.constant 0 : index
    %c0_437 = arith.constant 0 : index
    %808 = vector.load %arg7[%c2_434, %c1_435, %c0_436, %c0_437] : memref<4x16x8x128xf32, #tpu.memory_space<vmem>>, vector<1x1x8x128xf32>
    %809 = vector.shape_cast %808 : vector<1x1x8x128xf32> to vector<8x128xf32>
    %810 = arith.maximumf %807, %809 : vector<8x128xf32>
    %c2_438 = arith.constant 2 : index
    %c2_439 = arith.constant 2 : index
    %c0_440 = arith.constant 0 : index
    %c0_441 = arith.constant 0 : index
    %811 = vector.load %arg7[%c2_438, %c2_439, %c0_440, %c0_441] : memref<4x16x8x128xf32, #tpu.memory_space<vmem>>, vector<1x1x8x128xf32>
    %812 = vector.shape_cast %811 : vector<1x1x8x128xf32> to vector<8x128xf32>
    %813 = arith.maximumf %810, %812 : vector<8x128xf32>
    %c2_442 = arith.constant 2 : index
    %c3_443 = arith.constant 3 : index
    %c0_444 = arith.constant 0 : index
    %c0_445 = arith.constant 0 : index
    %814 = vector.load %arg7[%c2_442, %c3_443, %c0_444, %c0_445] : memref<4x16x8x128xf32, #tpu.memory_space<vmem>>, vector<1x1x8x128xf32>
    %815 = vector.shape_cast %814 : vector<1x1x8x128xf32> to vector<8x128xf32>
    %816 = arith.maximumf %813, %815 : vector<8x128xf32>
    %c2_446 = arith.constant 2 : index
    %c4_447 = arith.constant 4 : index
    %c0_448 = arith.constant 0 : index
    %c0_449 = arith.constant 0 : index
    %817 = vector.load %arg7[%c2_446, %c4_447, %c0_448, %c0_449] : memref<4x16x8x128xf32, #tpu.memory_space<vmem>>, vector<1x1x8x128xf32>
    %818 = vector.shape_cast %817 : vector<1x1x8x128xf32> to vector<8x128xf32>
    %819 = arith.maximumf %816, %818 : vector<8x128xf32>
    %c2_450 = arith.constant 2 : index
    %c5_451 = arith.constant 5 : index
    %c0_452 = arith.constant 0 : index
    %c0_453 = arith.constant 0 : index
    %820 = vector.load %arg7[%c2_450, %c5_451, %c0_452, %c0_453] : memref<4x16x8x128xf32, #tpu.memory_space<vmem>>, vector<1x1x8x128xf32>
    %821 = vector.shape_cast %820 : vector<1x1x8x128xf32> to vector<8x128xf32>
    %822 = arith.maximumf %819, %821 : vector<8x128xf32>
    %c2_454 = arith.constant 2 : index
    %c6_455 = arith.constant 6 : index
    %c0_456 = arith.constant 0 : index
    %c0_457 = arith.constant 0 : index
    %823 = vector.load %arg7[%c2_454, %c6_455, %c0_456, %c0_457] : memref<4x16x8x128xf32, #tpu.memory_space<vmem>>, vector<1x1x8x128xf32>
    %824 = vector.shape_cast %823 : vector<1x1x8x128xf32> to vector<8x128xf32>
    %825 = arith.maximumf %822, %824 : vector<8x128xf32>
    %c2_458 = arith.constant 2 : index
    %c7_459 = arith.constant 7 : index
    %c0_460 = arith.constant 0 : index
    %c0_461 = arith.constant 0 : index
    %826 = vector.load %arg7[%c2_458, %c7_459, %c0_460, %c0_461] : memref<4x16x8x128xf32, #tpu.memory_space<vmem>>, vector<1x1x8x128xf32>
    %827 = vector.shape_cast %826 : vector<1x1x8x128xf32> to vector<8x128xf32>
    %828 = arith.maximumf %825, %827 : vector<8x128xf32>
    %c2_462 = arith.constant 2 : index
    %c8_463 = arith.constant 8 : index
    %c0_464 = arith.constant 0 : index
    %c0_465 = arith.constant 0 : index
    %829 = vector.load %arg7[%c2_462, %c8_463, %c0_464, %c0_465] : memref<4x16x8x128xf32, #tpu.memory_space<vmem>>, vector<1x1x8x128xf32>
    %830 = vector.shape_cast %829 : vector<1x1x8x128xf32> to vector<8x128xf32>
    %831 = arith.maximumf %828, %830 : vector<8x128xf32>
    %c2_466 = arith.constant 2 : index
    %c9_467 = arith.constant 9 : index
    %c0_468 = arith.constant 0 : index
    %c0_469 = arith.constant 0 : index
    %832 = vector.load %arg7[%c2_466, %c9_467, %c0_468, %c0_469] : memref<4x16x8x128xf32, #tpu.memory_space<vmem>>, vector<1x1x8x128xf32>
    %833 = vector.shape_cast %832 : vector<1x1x8x128xf32> to vector<8x128xf32>
    %834 = arith.maximumf %831, %833 : vector<8x128xf32>
    %c2_470 = arith.constant 2 : index
    %c10_471 = arith.constant 10 : index
    %c0_472 = arith.constant 0 : index
    %c0_473 = arith.constant 0 : index
    %835 = vector.load %arg7[%c2_470, %c10_471, %c0_472, %c0_473] : memref<4x16x8x128xf32, #tpu.memory_space<vmem>>, vector<1x1x8x128xf32>
    %836 = vector.shape_cast %835 : vector<1x1x8x128xf32> to vector<8x128xf32>
    %837 = arith.maximumf %834, %836 : vector<8x128xf32>
    %c2_474 = arith.constant 2 : index
    %c11_475 = arith.constant 11 : index
    %c0_476 = arith.constant 0 : index
    %c0_477 = arith.constant 0 : index
    %838 = vector.load %arg7[%c2_474, %c11_475, %c0_476, %c0_477] : memref<4x16x8x128xf32, #tpu.memory_space<vmem>>, vector<1x1x8x128xf32>
    %839 = vector.shape_cast %838 : vector<1x1x8x128xf32> to vector<8x128xf32>
    %840 = arith.maximumf %837, %839 : vector<8x128xf32>
    %c2_478 = arith.constant 2 : index
    %c12_479 = arith.constant 12 : index
    %c0_480 = arith.constant 0 : index
    %c0_481 = arith.constant 0 : index
    %841 = vector.load %arg7[%c2_478, %c12_479, %c0_480, %c0_481] : memref<4x16x8x128xf32, #tpu.memory_space<vmem>>, vector<1x1x8x128xf32>
    %842 = vector.shape_cast %841 : vector<1x1x8x128xf32> to vector<8x128xf32>
    %843 = arith.maximumf %840, %842 : vector<8x128xf32>
    %c2_482 = arith.constant 2 : index
    %c13_483 = arith.constant 13 : index
    %c0_484 = arith.constant 0 : index
    %c0_485 = arith.constant 0 : index
    %844 = vector.load %arg7[%c2_482, %c13_483, %c0_484, %c0_485] : memref<4x16x8x128xf32, #tpu.memory_space<vmem>>, vector<1x1x8x128xf32>
    %845 = vector.shape_cast %844 : vector<1x1x8x128xf32> to vector<8x128xf32>
    %846 = arith.maximumf %843, %845 : vector<8x128xf32>
    %c2_486 = arith.constant 2 : index
    %c14_487 = arith.constant 14 : index
    %c0_488 = arith.constant 0 : index
    %c0_489 = arith.constant 0 : index
    %847 = vector.load %arg7[%c2_486, %c14_487, %c0_488, %c0_489] : memref<4x16x8x128xf32, #tpu.memory_space<vmem>>, vector<1x1x8x128xf32>
    %848 = vector.shape_cast %847 : vector<1x1x8x128xf32> to vector<8x128xf32>
    %849 = arith.maximumf %846, %848 : vector<8x128xf32>
    %c2_490 = arith.constant 2 : index
    %c15_491 = arith.constant 15 : index
    %c0_492 = arith.constant 0 : index
    %c0_493 = arith.constant 0 : index
    %850 = vector.load %arg7[%c2_490, %c15_491, %c0_492, %c0_493] : memref<4x16x8x128xf32, #tpu.memory_space<vmem>>, vector<1x1x8x128xf32>
    %851 = vector.shape_cast %850 : vector<1x1x8x128xf32> to vector<8x128xf32>
    %852 = arith.maximumf %849, %851 : vector<8x128xf32>
    %853 = math.floor %168 : vector<8x128xf32>
    %cst_494 = arith.constant 1.000000e+00 : f32
    %854 = vector.broadcast %cst_494 : f32 to vector<8x128xf32>
    %855 = arith.addf %853, %854 : vector<8x128xf32>
    %856 = arith.subf %855, %168 : vector<8x128xf32>
    %cst_495 = arith.constant 1.000000e+00 : f32
    %857 = vector.broadcast %cst_495 : f32 to vector<8x128xf32>
    %858 = arith.subf %857, %856 : vector<8x128xf32>
    %cst_496 = arith.constant 0.000000e+00 : f32
    %859 = vector.broadcast %cst_496 : f32 to vector<8x128xf32>
    %cst_497 = arith.constant 0.000000e+00 : f32
    %860 = vector.broadcast %cst_497 : f32 to vector<8x128xf32>
    %c2_498 = arith.constant 2 : index
    %c0_499 = arith.constant 0 : index
    %c0_500 = arith.constant 0 : index
    %c0_501 = arith.constant 0 : index
    %861 = vector.load %arg7[%c2_498, %c0_499, %c0_500, %c0_501] : memref<4x16x8x128xf32, #tpu.memory_space<vmem>>, vector<1x1x8x128xf32>
    %862 = vector.shape_cast %861 : vector<1x1x8x128xf32> to vector<8x128xf32>
    %863 = arith.subf %862, %852 : vector<8x128xf32>
    %864 = math.exp %863 : vector<8x128xf32>
    %865 = arith.addf %859, %864 : vector<8x128xf32>
    %cst_502 = arith.constant 0.000000e+00 : f32
    %866 = vector.broadcast %cst_502 : f32 to vector<8x128xf32>
    %867 = arith.cmpf oeq, %853, %866 : vector<8x128xf32>
    %cst_503 = arith.constant 0.000000e+00 : f32
    %868 = vector.broadcast %cst_503 : f32 to vector<8x128xf32>
    %869 = arith.select %867, %856, %868 : vector<8x128xi1>, vector<8x128xf32>
    %cst_504 = arith.constant -1.000000e+00 : f32
    %870 = vector.broadcast %cst_504 : f32 to vector<8x128xf32>
    %871 = arith.cmpf oeq, %853, %870 : vector<8x128xf32>
    %cst_505 = arith.constant 0.000000e+00 : f32
    %872 = vector.broadcast %cst_505 : f32 to vector<8x128xf32>
    %873 = arith.select %871, %858, %872 : vector<8x128xi1>, vector<8x128xf32>
    %874 = arith.addf %869, %873 : vector<8x128xf32>
    %875 = arith.mulf %874, %862 : vector<8x128xf32>
    %876 = arith.addf %860, %875 : vector<8x128xf32>
    %c2_506 = arith.constant 2 : index
    %c1_507 = arith.constant 1 : index
    %c0_508 = arith.constant 0 : index
    %c0_509 = arith.constant 0 : index
    %877 = vector.load %arg7[%c2_506, %c1_507, %c0_508, %c0_509] : memref<4x16x8x128xf32, #tpu.memory_space<vmem>>, vector<1x1x8x128xf32>
    %878 = vector.shape_cast %877 : vector<1x1x8x128xf32> to vector<8x128xf32>
    %879 = arith.subf %878, %852 : vector<8x128xf32>
    %880 = math.exp %879 : vector<8x128xf32>
    %881 = arith.addf %865, %880 : vector<8x128xf32>
    %cst_510 = arith.constant 1.000000e+00 : f32
    %882 = vector.broadcast %cst_510 : f32 to vector<8x128xf32>
    %883 = arith.cmpf oeq, %853, %882 : vector<8x128xf32>
    %cst_511 = arith.constant 0.000000e+00 : f32
    %884 = vector.broadcast %cst_511 : f32 to vector<8x128xf32>
    %885 = arith.select %883, %856, %884 : vector<8x128xi1>, vector<8x128xf32>
    %cst_512 = arith.constant 0.000000e+00 : f32
    %886 = vector.broadcast %cst_512 : f32 to vector<8x128xf32>
    %887 = arith.cmpf oeq, %853, %886 : vector<8x128xf32>
    %cst_513 = arith.constant 0.000000e+00 : f32
    %888 = vector.broadcast %cst_513 : f32 to vector<8x128xf32>
    %889 = arith.select %887, %858, %888 : vector<8x128xi1>, vector<8x128xf32>
    %890 = arith.addf %885, %889 : vector<8x128xf32>
    %891 = arith.mulf %890, %878 : vector<8x128xf32>
    %892 = arith.addf %876, %891 : vector<8x128xf32>
    %c2_514 = arith.constant 2 : index
    %c2_515 = arith.constant 2 : index
    %c0_516 = arith.constant 0 : index
    %c0_517 = arith.constant 0 : index
    %893 = vector.load %arg7[%c2_514, %c2_515, %c0_516, %c0_517] : memref<4x16x8x128xf32, #tpu.memory_space<vmem>>, vector<1x1x8x128xf32>
    %894 = vector.shape_cast %893 : vector<1x1x8x128xf32> to vector<8x128xf32>
    %895 = arith.subf %894, %852 : vector<8x128xf32>
    %896 = math.exp %895 : vector<8x128xf32>
    %897 = arith.addf %881, %896 : vector<8x128xf32>
    %cst_518 = arith.constant 2.000000e+00 : f32
    %898 = vector.broadcast %cst_518 : f32 to vector<8x128xf32>
    %899 = arith.cmpf oeq, %853, %898 : vector<8x128xf32>
    %cst_519 = arith.constant 0.000000e+00 : f32
    %900 = vector.broadcast %cst_519 : f32 to vector<8x128xf32>
    %901 = arith.select %899, %856, %900 : vector<8x128xi1>, vector<8x128xf32>
    %cst_520 = arith.constant 1.000000e+00 : f32
    %902 = vector.broadcast %cst_520 : f32 to vector<8x128xf32>
    %903 = arith.cmpf oeq, %853, %902 : vector<8x128xf32>
    %cst_521 = arith.constant 0.000000e+00 : f32
    %904 = vector.broadcast %cst_521 : f32 to vector<8x128xf32>
    %905 = arith.select %903, %858, %904 : vector<8x128xi1>, vector<8x128xf32>
    %906 = arith.addf %901, %905 : vector<8x128xf32>
    %907 = arith.mulf %906, %894 : vector<8x128xf32>
    %908 = arith.addf %892, %907 : vector<8x128xf32>
    %c2_522 = arith.constant 2 : index
    %c3_523 = arith.constant 3 : index
    %c0_524 = arith.constant 0 : index
    %c0_525 = arith.constant 0 : index
    %909 = vector.load %arg7[%c2_522, %c3_523, %c0_524, %c0_525] : memref<4x16x8x128xf32, #tpu.memory_space<vmem>>, vector<1x1x8x128xf32>
    %910 = vector.shape_cast %909 : vector<1x1x8x128xf32> to vector<8x128xf32>
    %911 = arith.subf %910, %852 : vector<8x128xf32>
    %912 = math.exp %911 : vector<8x128xf32>
    %913 = arith.addf %897, %912 : vector<8x128xf32>
    %cst_526 = arith.constant 3.000000e+00 : f32
    %914 = vector.broadcast %cst_526 : f32 to vector<8x128xf32>
    %915 = arith.cmpf oeq, %853, %914 : vector<8x128xf32>
    %cst_527 = arith.constant 0.000000e+00 : f32
    %916 = vector.broadcast %cst_527 : f32 to vector<8x128xf32>
    %917 = arith.select %915, %856, %916 : vector<8x128xi1>, vector<8x128xf32>
    %cst_528 = arith.constant 2.000000e+00 : f32
    %918 = vector.broadcast %cst_528 : f32 to vector<8x128xf32>
    %919 = arith.cmpf oeq, %853, %918 : vector<8x128xf32>
    %cst_529 = arith.constant 0.000000e+00 : f32
    %920 = vector.broadcast %cst_529 : f32 to vector<8x128xf32>
    %921 = arith.select %919, %858, %920 : vector<8x128xi1>, vector<8x128xf32>
    %922 = arith.addf %917, %921 : vector<8x128xf32>
    %923 = arith.mulf %922, %910 : vector<8x128xf32>
    %924 = arith.addf %908, %923 : vector<8x128xf32>
    %c2_530 = arith.constant 2 : index
    %c4_531 = arith.constant 4 : index
    %c0_532 = arith.constant 0 : index
    %c0_533 = arith.constant 0 : index
    %925 = vector.load %arg7[%c2_530, %c4_531, %c0_532, %c0_533] : memref<4x16x8x128xf32, #tpu.memory_space<vmem>>, vector<1x1x8x128xf32>
    %926 = vector.shape_cast %925 : vector<1x1x8x128xf32> to vector<8x128xf32>
    %927 = arith.subf %926, %852 : vector<8x128xf32>
    %928 = math.exp %927 : vector<8x128xf32>
    %929 = arith.addf %913, %928 : vector<8x128xf32>
    %cst_534 = arith.constant 4.000000e+00 : f32
    %930 = vector.broadcast %cst_534 : f32 to vector<8x128xf32>
    %931 = arith.cmpf oeq, %853, %930 : vector<8x128xf32>
    %cst_535 = arith.constant 0.000000e+00 : f32
    %932 = vector.broadcast %cst_535 : f32 to vector<8x128xf32>
    %933 = arith.select %931, %856, %932 : vector<8x128xi1>, vector<8x128xf32>
    %cst_536 = arith.constant 3.000000e+00 : f32
    %934 = vector.broadcast %cst_536 : f32 to vector<8x128xf32>
    %935 = arith.cmpf oeq, %853, %934 : vector<8x128xf32>
    %cst_537 = arith.constant 0.000000e+00 : f32
    %936 = vector.broadcast %cst_537 : f32 to vector<8x128xf32>
    %937 = arith.select %935, %858, %936 : vector<8x128xi1>, vector<8x128xf32>
    %938 = arith.addf %933, %937 : vector<8x128xf32>
    %939 = arith.mulf %938, %926 : vector<8x128xf32>
    %940 = arith.addf %924, %939 : vector<8x128xf32>
    %c2_538 = arith.constant 2 : index
    %c5_539 = arith.constant 5 : index
    %c0_540 = arith.constant 0 : index
    %c0_541 = arith.constant 0 : index
    %941 = vector.load %arg7[%c2_538, %c5_539, %c0_540, %c0_541] : memref<4x16x8x128xf32, #tpu.memory_space<vmem>>, vector<1x1x8x128xf32>
    %942 = vector.shape_cast %941 : vector<1x1x8x128xf32> to vector<8x128xf32>
    %943 = arith.subf %942, %852 : vector<8x128xf32>
    %944 = math.exp %943 : vector<8x128xf32>
    %945 = arith.addf %929, %944 : vector<8x128xf32>
    %cst_542 = arith.constant 5.000000e+00 : f32
    %946 = vector.broadcast %cst_542 : f32 to vector<8x128xf32>
    %947 = arith.cmpf oeq, %853, %946 : vector<8x128xf32>
    %cst_543 = arith.constant 0.000000e+00 : f32
    %948 = vector.broadcast %cst_543 : f32 to vector<8x128xf32>
    %949 = arith.select %947, %856, %948 : vector<8x128xi1>, vector<8x128xf32>
    %cst_544 = arith.constant 4.000000e+00 : f32
    %950 = vector.broadcast %cst_544 : f32 to vector<8x128xf32>
    %951 = arith.cmpf oeq, %853, %950 : vector<8x128xf32>
    %cst_545 = arith.constant 0.000000e+00 : f32
    %952 = vector.broadcast %cst_545 : f32 to vector<8x128xf32>
    %953 = arith.select %951, %858, %952 : vector<8x128xi1>, vector<8x128xf32>
    %954 = arith.addf %949, %953 : vector<8x128xf32>
    %955 = arith.mulf %954, %942 : vector<8x128xf32>
    %956 = arith.addf %940, %955 : vector<8x128xf32>
    %c2_546 = arith.constant 2 : index
    %c6_547 = arith.constant 6 : index
    %c0_548 = arith.constant 0 : index
    %c0_549 = arith.constant 0 : index
    %957 = vector.load %arg7[%c2_546, %c6_547, %c0_548, %c0_549] : memref<4x16x8x128xf32, #tpu.memory_space<vmem>>, vector<1x1x8x128xf32>
    %958 = vector.shape_cast %957 : vector<1x1x8x128xf32> to vector<8x128xf32>
    %959 = arith.subf %958, %852 : vector<8x128xf32>
    %960 = math.exp %959 : vector<8x128xf32>
    %961 = arith.addf %945, %960 : vector<8x128xf32>
    %cst_550 = arith.constant 6.000000e+00 : f32
    %962 = vector.broadcast %cst_550 : f32 to vector<8x128xf32>
    %963 = arith.cmpf oeq, %853, %962 : vector<8x128xf32>
    %cst_551 = arith.constant 0.000000e+00 : f32
    %964 = vector.broadcast %cst_551 : f32 to vector<8x128xf32>
    %965 = arith.select %963, %856, %964 : vector<8x128xi1>, vector<8x128xf32>
    %cst_552 = arith.constant 5.000000e+00 : f32
    %966 = vector.broadcast %cst_552 : f32 to vector<8x128xf32>
    %967 = arith.cmpf oeq, %853, %966 : vector<8x128xf32>
    %cst_553 = arith.constant 0.000000e+00 : f32
    %968 = vector.broadcast %cst_553 : f32 to vector<8x128xf32>
    %969 = arith.select %967, %858, %968 : vector<8x128xi1>, vector<8x128xf32>
    %970 = arith.addf %965, %969 : vector<8x128xf32>
    %971 = arith.mulf %970, %958 : vector<8x128xf32>
    %972 = arith.addf %956, %971 : vector<8x128xf32>
    %c2_554 = arith.constant 2 : index
    %c7_555 = arith.constant 7 : index
    %c0_556 = arith.constant 0 : index
    %c0_557 = arith.constant 0 : index
    %973 = vector.load %arg7[%c2_554, %c7_555, %c0_556, %c0_557] : memref<4x16x8x128xf32, #tpu.memory_space<vmem>>, vector<1x1x8x128xf32>
    %974 = vector.shape_cast %973 : vector<1x1x8x128xf32> to vector<8x128xf32>
    %975 = arith.subf %974, %852 : vector<8x128xf32>
    %976 = math.exp %975 : vector<8x128xf32>
    %977 = arith.addf %961, %976 : vector<8x128xf32>
    %cst_558 = arith.constant 7.000000e+00 : f32
    %978 = vector.broadcast %cst_558 : f32 to vector<8x128xf32>
    %979 = arith.cmpf oeq, %853, %978 : vector<8x128xf32>
    %cst_559 = arith.constant 0.000000e+00 : f32
    %980 = vector.broadcast %cst_559 : f32 to vector<8x128xf32>
    %981 = arith.select %979, %856, %980 : vector<8x128xi1>, vector<8x128xf32>
    %cst_560 = arith.constant 6.000000e+00 : f32
    %982 = vector.broadcast %cst_560 : f32 to vector<8x128xf32>
    %983 = arith.cmpf oeq, %853, %982 : vector<8x128xf32>
    %cst_561 = arith.constant 0.000000e+00 : f32
    %984 = vector.broadcast %cst_561 : f32 to vector<8x128xf32>
    %985 = arith.select %983, %858, %984 : vector<8x128xi1>, vector<8x128xf32>
    %986 = arith.addf %981, %985 : vector<8x128xf32>
    %987 = arith.mulf %986, %974 : vector<8x128xf32>
    %988 = arith.addf %972, %987 : vector<8x128xf32>
    %c2_562 = arith.constant 2 : index
    %c8_563 = arith.constant 8 : index
    %c0_564 = arith.constant 0 : index
    %c0_565 = arith.constant 0 : index
    %989 = vector.load %arg7[%c2_562, %c8_563, %c0_564, %c0_565] : memref<4x16x8x128xf32, #tpu.memory_space<vmem>>, vector<1x1x8x128xf32>
    %990 = vector.shape_cast %989 : vector<1x1x8x128xf32> to vector<8x128xf32>
    %991 = arith.subf %990, %852 : vector<8x128xf32>
    %992 = math.exp %991 : vector<8x128xf32>
    %993 = arith.addf %977, %992 : vector<8x128xf32>
    %cst_566 = arith.constant 8.000000e+00 : f32
    %994 = vector.broadcast %cst_566 : f32 to vector<8x128xf32>
    %995 = arith.cmpf oeq, %853, %994 : vector<8x128xf32>
    %cst_567 = arith.constant 0.000000e+00 : f32
    %996 = vector.broadcast %cst_567 : f32 to vector<8x128xf32>
    %997 = arith.select %995, %856, %996 : vector<8x128xi1>, vector<8x128xf32>
    %cst_568 = arith.constant 7.000000e+00 : f32
    %998 = vector.broadcast %cst_568 : f32 to vector<8x128xf32>
    %999 = arith.cmpf oeq, %853, %998 : vector<8x128xf32>
    %cst_569 = arith.constant 0.000000e+00 : f32
    %1000 = vector.broadcast %cst_569 : f32 to vector<8x128xf32>
    %1001 = arith.select %999, %858, %1000 : vector<8x128xi1>, vector<8x128xf32>
    %1002 = arith.addf %997, %1001 : vector<8x128xf32>
    %1003 = arith.mulf %1002, %990 : vector<8x128xf32>
    %1004 = arith.addf %988, %1003 : vector<8x128xf32>
    %c2_570 = arith.constant 2 : index
    %c9_571 = arith.constant 9 : index
    %c0_572 = arith.constant 0 : index
    %c0_573 = arith.constant 0 : index
    %1005 = vector.load %arg7[%c2_570, %c9_571, %c0_572, %c0_573] : memref<4x16x8x128xf32, #tpu.memory_space<vmem>>, vector<1x1x8x128xf32>
    %1006 = vector.shape_cast %1005 : vector<1x1x8x128xf32> to vector<8x128xf32>
    %1007 = arith.subf %1006, %852 : vector<8x128xf32>
    %1008 = math.exp %1007 : vector<8x128xf32>
    %1009 = arith.addf %993, %1008 : vector<8x128xf32>
    %cst_574 = arith.constant 9.000000e+00 : f32
    %1010 = vector.broadcast %cst_574 : f32 to vector<8x128xf32>
    %1011 = arith.cmpf oeq, %853, %1010 : vector<8x128xf32>
    %cst_575 = arith.constant 0.000000e+00 : f32
    %1012 = vector.broadcast %cst_575 : f32 to vector<8x128xf32>
    %1013 = arith.select %1011, %856, %1012 : vector<8x128xi1>, vector<8x128xf32>
    %cst_576 = arith.constant 8.000000e+00 : f32
    %1014 = vector.broadcast %cst_576 : f32 to vector<8x128xf32>
    %1015 = arith.cmpf oeq, %853, %1014 : vector<8x128xf32>
    %cst_577 = arith.constant 0.000000e+00 : f32
    %1016 = vector.broadcast %cst_577 : f32 to vector<8x128xf32>
    %1017 = arith.select %1015, %858, %1016 : vector<8x128xi1>, vector<8x128xf32>
    %1018 = arith.addf %1013, %1017 : vector<8x128xf32>
    %1019 = arith.mulf %1018, %1006 : vector<8x128xf32>
    %1020 = arith.addf %1004, %1019 : vector<8x128xf32>
    %c2_578 = arith.constant 2 : index
    %c10_579 = arith.constant 10 : index
    %c0_580 = arith.constant 0 : index
    %c0_581 = arith.constant 0 : index
    %1021 = vector.load %arg7[%c2_578, %c10_579, %c0_580, %c0_581] : memref<4x16x8x128xf32, #tpu.memory_space<vmem>>, vector<1x1x8x128xf32>
    %1022 = vector.shape_cast %1021 : vector<1x1x8x128xf32> to vector<8x128xf32>
    %1023 = arith.subf %1022, %852 : vector<8x128xf32>
    %1024 = math.exp %1023 : vector<8x128xf32>
    %1025 = arith.addf %1009, %1024 : vector<8x128xf32>
    %cst_582 = arith.constant 1.000000e+01 : f32
    %1026 = vector.broadcast %cst_582 : f32 to vector<8x128xf32>
    %1027 = arith.cmpf oeq, %853, %1026 : vector<8x128xf32>
    %cst_583 = arith.constant 0.000000e+00 : f32
    %1028 = vector.broadcast %cst_583 : f32 to vector<8x128xf32>
    %1029 = arith.select %1027, %856, %1028 : vector<8x128xi1>, vector<8x128xf32>
    %cst_584 = arith.constant 9.000000e+00 : f32
    %1030 = vector.broadcast %cst_584 : f32 to vector<8x128xf32>
    %1031 = arith.cmpf oeq, %853, %1030 : vector<8x128xf32>
    %cst_585 = arith.constant 0.000000e+00 : f32
    %1032 = vector.broadcast %cst_585 : f32 to vector<8x128xf32>
    %1033 = arith.select %1031, %858, %1032 : vector<8x128xi1>, vector<8x128xf32>
    %1034 = arith.addf %1029, %1033 : vector<8x128xf32>
    %1035 = arith.mulf %1034, %1022 : vector<8x128xf32>
    %1036 = arith.addf %1020, %1035 : vector<8x128xf32>
    %c2_586 = arith.constant 2 : index
    %c11_587 = arith.constant 11 : index
    %c0_588 = arith.constant 0 : index
    %c0_589 = arith.constant 0 : index
    %1037 = vector.load %arg7[%c2_586, %c11_587, %c0_588, %c0_589] : memref<4x16x8x128xf32, #tpu.memory_space<vmem>>, vector<1x1x8x128xf32>
    %1038 = vector.shape_cast %1037 : vector<1x1x8x128xf32> to vector<8x128xf32>
    %1039 = arith.subf %1038, %852 : vector<8x128xf32>
    %1040 = math.exp %1039 : vector<8x128xf32>
    %1041 = arith.addf %1025, %1040 : vector<8x128xf32>
    %cst_590 = arith.constant 1.100000e+01 : f32
    %1042 = vector.broadcast %cst_590 : f32 to vector<8x128xf32>
    %1043 = arith.cmpf oeq, %853, %1042 : vector<8x128xf32>
    %cst_591 = arith.constant 0.000000e+00 : f32
    %1044 = vector.broadcast %cst_591 : f32 to vector<8x128xf32>
    %1045 = arith.select %1043, %856, %1044 : vector<8x128xi1>, vector<8x128xf32>
    %cst_592 = arith.constant 1.000000e+01 : f32
    %1046 = vector.broadcast %cst_592 : f32 to vector<8x128xf32>
    %1047 = arith.cmpf oeq, %853, %1046 : vector<8x128xf32>
    %cst_593 = arith.constant 0.000000e+00 : f32
    %1048 = vector.broadcast %cst_593 : f32 to vector<8x128xf32>
    %1049 = arith.select %1047, %858, %1048 : vector<8x128xi1>, vector<8x128xf32>
    %1050 = arith.addf %1045, %1049 : vector<8x128xf32>
    %1051 = arith.mulf %1050, %1038 : vector<8x128xf32>
    %1052 = arith.addf %1036, %1051 : vector<8x128xf32>
    %c2_594 = arith.constant 2 : index
    %c12_595 = arith.constant 12 : index
    %c0_596 = arith.constant 0 : index
    %c0_597 = arith.constant 0 : index
    %1053 = vector.load %arg7[%c2_594, %c12_595, %c0_596, %c0_597] : memref<4x16x8x128xf32, #tpu.memory_space<vmem>>, vector<1x1x8x128xf32>
    %1054 = vector.shape_cast %1053 : vector<1x1x8x128xf32> to vector<8x128xf32>
    %1055 = arith.subf %1054, %852 : vector<8x128xf32>
    %1056 = math.exp %1055 : vector<8x128xf32>
    %1057 = arith.addf %1041, %1056 : vector<8x128xf32>
    %cst_598 = arith.constant 1.200000e+01 : f32
    %1058 = vector.broadcast %cst_598 : f32 to vector<8x128xf32>
    %1059 = arith.cmpf oeq, %853, %1058 : vector<8x128xf32>
    %cst_599 = arith.constant 0.000000e+00 : f32
    %1060 = vector.broadcast %cst_599 : f32 to vector<8x128xf32>
    %1061 = arith.select %1059, %856, %1060 : vector<8x128xi1>, vector<8x128xf32>
    %cst_600 = arith.constant 1.100000e+01 : f32
    %1062 = vector.broadcast %cst_600 : f32 to vector<8x128xf32>
    %1063 = arith.cmpf oeq, %853, %1062 : vector<8x128xf32>
    %cst_601 = arith.constant 0.000000e+00 : f32
    %1064 = vector.broadcast %cst_601 : f32 to vector<8x128xf32>
    %1065 = arith.select %1063, %858, %1064 : vector<8x128xi1>, vector<8x128xf32>
    %1066 = arith.addf %1061, %1065 : vector<8x128xf32>
    %1067 = arith.mulf %1066, %1054 : vector<8x128xf32>
    %1068 = arith.addf %1052, %1067 : vector<8x128xf32>
    %c2_602 = arith.constant 2 : index
    %c13_603 = arith.constant 13 : index
    %c0_604 = arith.constant 0 : index
    %c0_605 = arith.constant 0 : index
    %1069 = vector.load %arg7[%c2_602, %c13_603, %c0_604, %c0_605] : memref<4x16x8x128xf32, #tpu.memory_space<vmem>>, vector<1x1x8x128xf32>
    %1070 = vector.shape_cast %1069 : vector<1x1x8x128xf32> to vector<8x128xf32>
    %1071 = arith.subf %1070, %852 : vector<8x128xf32>
    %1072 = math.exp %1071 : vector<8x128xf32>
    %1073 = arith.addf %1057, %1072 : vector<8x128xf32>
    %cst_606 = arith.constant 1.300000e+01 : f32
    %1074 = vector.broadcast %cst_606 : f32 to vector<8x128xf32>
    %1075 = arith.cmpf oeq, %853, %1074 : vector<8x128xf32>
    %cst_607 = arith.constant 0.000000e+00 : f32
    %1076 = vector.broadcast %cst_607 : f32 to vector<8x128xf32>
    %1077 = arith.select %1075, %856, %1076 : vector<8x128xi1>, vector<8x128xf32>
    %cst_608 = arith.constant 1.200000e+01 : f32
    %1078 = vector.broadcast %cst_608 : f32 to vector<8x128xf32>
    %1079 = arith.cmpf oeq, %853, %1078 : vector<8x128xf32>
    %cst_609 = arith.constant 0.000000e+00 : f32
    %1080 = vector.broadcast %cst_609 : f32 to vector<8x128xf32>
    %1081 = arith.select %1079, %858, %1080 : vector<8x128xi1>, vector<8x128xf32>
    %1082 = arith.addf %1077, %1081 : vector<8x128xf32>
    %1083 = arith.mulf %1082, %1070 : vector<8x128xf32>
    %1084 = arith.addf %1068, %1083 : vector<8x128xf32>
    %c2_610 = arith.constant 2 : index
    %c14_611 = arith.constant 14 : index
    %c0_612 = arith.constant 0 : index
    %c0_613 = arith.constant 0 : index
    %1085 = vector.load %arg7[%c2_610, %c14_611, %c0_612, %c0_613] : memref<4x16x8x128xf32, #tpu.memory_space<vmem>>, vector<1x1x8x128xf32>
    %1086 = vector.shape_cast %1085 : vector<1x1x8x128xf32> to vector<8x128xf32>
    %1087 = arith.subf %1086, %852 : vector<8x128xf32>
    %1088 = math.exp %1087 : vector<8x128xf32>
    %1089 = arith.addf %1073, %1088 : vector<8x128xf32>
    %cst_614 = arith.constant 1.400000e+01 : f32
    %1090 = vector.broadcast %cst_614 : f32 to vector<8x128xf32>
    %1091 = arith.cmpf oeq, %853, %1090 : vector<8x128xf32>
    %cst_615 = arith.constant 0.000000e+00 : f32
    %1092 = vector.broadcast %cst_615 : f32 to vector<8x128xf32>
    %1093 = arith.select %1091, %856, %1092 : vector<8x128xi1>, vector<8x128xf32>
    %cst_616 = arith.constant 1.300000e+01 : f32
    %1094 = vector.broadcast %cst_616 : f32 to vector<8x128xf32>
    %1095 = arith.cmpf oeq, %853, %1094 : vector<8x128xf32>
    %cst_617 = arith.constant 0.000000e+00 : f32
    %1096 = vector.broadcast %cst_617 : f32 to vector<8x128xf32>
    %1097 = arith.select %1095, %858, %1096 : vector<8x128xi1>, vector<8x128xf32>
    %1098 = arith.addf %1093, %1097 : vector<8x128xf32>
    %1099 = arith.mulf %1098, %1086 : vector<8x128xf32>
    %1100 = arith.addf %1084, %1099 : vector<8x128xf32>
    %c2_618 = arith.constant 2 : index
    %c15_619 = arith.constant 15 : index
    %c0_620 = arith.constant 0 : index
    %c0_621 = arith.constant 0 : index
    %1101 = vector.load %arg7[%c2_618, %c15_619, %c0_620, %c0_621] : memref<4x16x8x128xf32, #tpu.memory_space<vmem>>, vector<1x1x8x128xf32>
    %1102 = vector.shape_cast %1101 : vector<1x1x8x128xf32> to vector<8x128xf32>
    %1103 = arith.subf %1102, %852 : vector<8x128xf32>
    %1104 = math.exp %1103 : vector<8x128xf32>
    %1105 = arith.addf %1089, %1104 : vector<8x128xf32>
    %cst_622 = arith.constant 1.500000e+01 : f32
    %1106 = vector.broadcast %cst_622 : f32 to vector<8x128xf32>
    %1107 = arith.cmpf oeq, %853, %1106 : vector<8x128xf32>
    %cst_623 = arith.constant 0.000000e+00 : f32
    %1108 = vector.broadcast %cst_623 : f32 to vector<8x128xf32>
    %1109 = arith.select %1107, %856, %1108 : vector<8x128xi1>, vector<8x128xf32>
    %cst_624 = arith.constant 1.400000e+01 : f32
    %1110 = vector.broadcast %cst_624 : f32 to vector<8x128xf32>
    %1111 = arith.cmpf oeq, %853, %1110 : vector<8x128xf32>
    %cst_625 = arith.constant 0.000000e+00 : f32
    %1112 = vector.broadcast %cst_625 : f32 to vector<8x128xf32>
    %1113 = arith.select %1111, %858, %1112 : vector<8x128xi1>, vector<8x128xf32>
    %1114 = arith.addf %1109, %1113 : vector<8x128xf32>
    %1115 = arith.mulf %1114, %1102 : vector<8x128xf32>
    %1116 = arith.addf %1100, %1115 : vector<8x128xf32>
    %1117 = math.log %1105 : vector<8x128xf32>
    %1118 = arith.addf %852, %1117 : vector<8x128xf32>
    %1119 = arith.subf %1118, %1116 : vector<8x128xf32>
    %1120 = arith.addf %805, %1119 : vector<8x128xf32>
    %c3_626 = arith.constant 3 : index
    %c0_627 = arith.constant 0 : index
    %c0_628 = arith.constant 0 : index
    %c0_629 = arith.constant 0 : index
    %1121 = vector.load %arg7[%c3_626, %c0_627, %c0_628, %c0_629] : memref<4x16x8x128xf32, #tpu.memory_space<vmem>>, vector<1x1x8x128xf32>
    %1122 = vector.shape_cast %1121 : vector<1x1x8x128xf32> to vector<8x128xf32>
    %c3_630 = arith.constant 3 : index
    %c1_631 = arith.constant 1 : index
    %c0_632 = arith.constant 0 : index
    %c0_633 = arith.constant 0 : index
    %1123 = vector.load %arg7[%c3_630, %c1_631, %c0_632, %c0_633] : memref<4x16x8x128xf32, #tpu.memory_space<vmem>>, vector<1x1x8x128xf32>
    %1124 = vector.shape_cast %1123 : vector<1x1x8x128xf32> to vector<8x128xf32>
    %1125 = arith.maximumf %1122, %1124 : vector<8x128xf32>
    %c3_634 = arith.constant 3 : index
    %c2_635 = arith.constant 2 : index
    %c0_636 = arith.constant 0 : index
    %c0_637 = arith.constant 0 : index
    %1126 = vector.load %arg7[%c3_634, %c2_635, %c0_636, %c0_637] : memref<4x16x8x128xf32, #tpu.memory_space<vmem>>, vector<1x1x8x128xf32>
    %1127 = vector.shape_cast %1126 : vector<1x1x8x128xf32> to vector<8x128xf32>
    %1128 = arith.maximumf %1125, %1127 : vector<8x128xf32>
    %c3_638 = arith.constant 3 : index
    %c3_639 = arith.constant 3 : index
    %c0_640 = arith.constant 0 : index
    %c0_641 = arith.constant 0 : index
    %1129 = vector.load %arg7[%c3_638, %c3_639, %c0_640, %c0_641] : memref<4x16x8x128xf32, #tpu.memory_space<vmem>>, vector<1x1x8x128xf32>
    %1130 = vector.shape_cast %1129 : vector<1x1x8x128xf32> to vector<8x128xf32>
    %1131 = arith.maximumf %1128, %1130 : vector<8x128xf32>
    %c3_642 = arith.constant 3 : index
    %c4_643 = arith.constant 4 : index
    %c0_644 = arith.constant 0 : index
    %c0_645 = arith.constant 0 : index
    %1132 = vector.load %arg7[%c3_642, %c4_643, %c0_644, %c0_645] : memref<4x16x8x128xf32, #tpu.memory_space<vmem>>, vector<1x1x8x128xf32>
    %1133 = vector.shape_cast %1132 : vector<1x1x8x128xf32> to vector<8x128xf32>
    %1134 = arith.maximumf %1131, %1133 : vector<8x128xf32>
    %c3_646 = arith.constant 3 : index
    %c5_647 = arith.constant 5 : index
    %c0_648 = arith.constant 0 : index
    %c0_649 = arith.constant 0 : index
    %1135 = vector.load %arg7[%c3_646, %c5_647, %c0_648, %c0_649] : memref<4x16x8x128xf32, #tpu.memory_space<vmem>>, vector<1x1x8x128xf32>
    %1136 = vector.shape_cast %1135 : vector<1x1x8x128xf32> to vector<8x128xf32>
    %1137 = arith.maximumf %1134, %1136 : vector<8x128xf32>
    %c3_650 = arith.constant 3 : index
    %c6_651 = arith.constant 6 : index
    %c0_652 = arith.constant 0 : index
    %c0_653 = arith.constant 0 : index
    %1138 = vector.load %arg7[%c3_650, %c6_651, %c0_652, %c0_653] : memref<4x16x8x128xf32, #tpu.memory_space<vmem>>, vector<1x1x8x128xf32>
    %1139 = vector.shape_cast %1138 : vector<1x1x8x128xf32> to vector<8x128xf32>
    %1140 = arith.maximumf %1137, %1139 : vector<8x128xf32>
    %c3_654 = arith.constant 3 : index
    %c7_655 = arith.constant 7 : index
    %c0_656 = arith.constant 0 : index
    %c0_657 = arith.constant 0 : index
    %1141 = vector.load %arg7[%c3_654, %c7_655, %c0_656, %c0_657] : memref<4x16x8x128xf32, #tpu.memory_space<vmem>>, vector<1x1x8x128xf32>
    %1142 = vector.shape_cast %1141 : vector<1x1x8x128xf32> to vector<8x128xf32>
    %1143 = arith.maximumf %1140, %1142 : vector<8x128xf32>
    %c3_658 = arith.constant 3 : index
    %c8_659 = arith.constant 8 : index
    %c0_660 = arith.constant 0 : index
    %c0_661 = arith.constant 0 : index
    %1144 = vector.load %arg7[%c3_658, %c8_659, %c0_660, %c0_661] : memref<4x16x8x128xf32, #tpu.memory_space<vmem>>, vector<1x1x8x128xf32>
    %1145 = vector.shape_cast %1144 : vector<1x1x8x128xf32> to vector<8x128xf32>
    %1146 = arith.maximumf %1143, %1145 : vector<8x128xf32>
    %c3_662 = arith.constant 3 : index
    %c9_663 = arith.constant 9 : index
    %c0_664 = arith.constant 0 : index
    %c0_665 = arith.constant 0 : index
    %1147 = vector.load %arg7[%c3_662, %c9_663, %c0_664, %c0_665] : memref<4x16x8x128xf32, #tpu.memory_space<vmem>>, vector<1x1x8x128xf32>
    %1148 = vector.shape_cast %1147 : vector<1x1x8x128xf32> to vector<8x128xf32>
    %1149 = arith.maximumf %1146, %1148 : vector<8x128xf32>
    %c3_666 = arith.constant 3 : index
    %c10_667 = arith.constant 10 : index
    %c0_668 = arith.constant 0 : index
    %c0_669 = arith.constant 0 : index
    %1150 = vector.load %arg7[%c3_666, %c10_667, %c0_668, %c0_669] : memref<4x16x8x128xf32, #tpu.memory_space<vmem>>, vector<1x1x8x128xf32>
    %1151 = vector.shape_cast %1150 : vector<1x1x8x128xf32> to vector<8x128xf32>
    %1152 = arith.maximumf %1149, %1151 : vector<8x128xf32>
    %c3_670 = arith.constant 3 : index
    %c11_671 = arith.constant 11 : index
    %c0_672 = arith.constant 0 : index
    %c0_673 = arith.constant 0 : index
    %1153 = vector.load %arg7[%c3_670, %c11_671, %c0_672, %c0_673] : memref<4x16x8x128xf32, #tpu.memory_space<vmem>>, vector<1x1x8x128xf32>
    %1154 = vector.shape_cast %1153 : vector<1x1x8x128xf32> to vector<8x128xf32>
    %1155 = arith.maximumf %1152, %1154 : vector<8x128xf32>
    %c3_674 = arith.constant 3 : index
    %c12_675 = arith.constant 12 : index
    %c0_676 = arith.constant 0 : index
    %c0_677 = arith.constant 0 : index
    %1156 = vector.load %arg7[%c3_674, %c12_675, %c0_676, %c0_677] : memref<4x16x8x128xf32, #tpu.memory_space<vmem>>, vector<1x1x8x128xf32>
    %1157 = vector.shape_cast %1156 : vector<1x1x8x128xf32> to vector<8x128xf32>
    %1158 = arith.maximumf %1155, %1157 : vector<8x128xf32>
    %c3_678 = arith.constant 3 : index
    %c13_679 = arith.constant 13 : index
    %c0_680 = arith.constant 0 : index
    %c0_681 = arith.constant 0 : index
    %1159 = vector.load %arg7[%c3_678, %c13_679, %c0_680, %c0_681] : memref<4x16x8x128xf32, #tpu.memory_space<vmem>>, vector<1x1x8x128xf32>
    %1160 = vector.shape_cast %1159 : vector<1x1x8x128xf32> to vector<8x128xf32>
    %1161 = arith.maximumf %1158, %1160 : vector<8x128xf32>
    %c3_682 = arith.constant 3 : index
    %c14_683 = arith.constant 14 : index
    %c0_684 = arith.constant 0 : index
    %c0_685 = arith.constant 0 : index
    %1162 = vector.load %arg7[%c3_682, %c14_683, %c0_684, %c0_685] : memref<4x16x8x128xf32, #tpu.memory_space<vmem>>, vector<1x1x8x128xf32>
    %1163 = vector.shape_cast %1162 : vector<1x1x8x128xf32> to vector<8x128xf32>
    %1164 = arith.maximumf %1161, %1163 : vector<8x128xf32>
    %c3_686 = arith.constant 3 : index
    %c15_687 = arith.constant 15 : index
    %c0_688 = arith.constant 0 : index
    %c0_689 = arith.constant 0 : index
    %1165 = vector.load %arg7[%c3_686, %c15_687, %c0_688, %c0_689] : memref<4x16x8x128xf32, #tpu.memory_space<vmem>>, vector<1x1x8x128xf32>
    %1166 = vector.shape_cast %1165 : vector<1x1x8x128xf32> to vector<8x128xf32>
    %1167 = arith.maximumf %1164, %1166 : vector<8x128xf32>
    %1168 = math.floor %174 : vector<8x128xf32>
    %cst_690 = arith.constant 1.000000e+00 : f32
    %1169 = vector.broadcast %cst_690 : f32 to vector<8x128xf32>
    %1170 = arith.addf %1168, %1169 : vector<8x128xf32>
    %1171 = arith.subf %1170, %174 : vector<8x128xf32>
    %cst_691 = arith.constant 1.000000e+00 : f32
    %1172 = vector.broadcast %cst_691 : f32 to vector<8x128xf32>
    %1173 = arith.subf %1172, %1171 : vector<8x128xf32>
    %cst_692 = arith.constant 0.000000e+00 : f32
    %1174 = vector.broadcast %cst_692 : f32 to vector<8x128xf32>
    %cst_693 = arith.constant 0.000000e+00 : f32
    %1175 = vector.broadcast %cst_693 : f32 to vector<8x128xf32>
    %c3_694 = arith.constant 3 : index
    %c0_695 = arith.constant 0 : index
    %c0_696 = arith.constant 0 : index
    %c0_697 = arith.constant 0 : index
    %1176 = vector.load %arg7[%c3_694, %c0_695, %c0_696, %c0_697] : memref<4x16x8x128xf32, #tpu.memory_space<vmem>>, vector<1x1x8x128xf32>
    %1177 = vector.shape_cast %1176 : vector<1x1x8x128xf32> to vector<8x128xf32>
    %1178 = arith.subf %1177, %1167 : vector<8x128xf32>
    %1179 = math.exp %1178 : vector<8x128xf32>
    %1180 = arith.addf %1174, %1179 : vector<8x128xf32>
    %cst_698 = arith.constant 0.000000e+00 : f32
    %1181 = vector.broadcast %cst_698 : f32 to vector<8x128xf32>
    %1182 = arith.cmpf oeq, %1168, %1181 : vector<8x128xf32>
    %cst_699 = arith.constant 0.000000e+00 : f32
    %1183 = vector.broadcast %cst_699 : f32 to vector<8x128xf32>
    %1184 = arith.select %1182, %1171, %1183 : vector<8x128xi1>, vector<8x128xf32>
    %cst_700 = arith.constant -1.000000e+00 : f32
    %1185 = vector.broadcast %cst_700 : f32 to vector<8x128xf32>
    %1186 = arith.cmpf oeq, %1168, %1185 : vector<8x128xf32>
    %cst_701 = arith.constant 0.000000e+00 : f32
    %1187 = vector.broadcast %cst_701 : f32 to vector<8x128xf32>
    %1188 = arith.select %1186, %1173, %1187 : vector<8x128xi1>, vector<8x128xf32>
    %1189 = arith.addf %1184, %1188 : vector<8x128xf32>
    %1190 = arith.mulf %1189, %1177 : vector<8x128xf32>
    %1191 = arith.addf %1175, %1190 : vector<8x128xf32>
    %c3_702 = arith.constant 3 : index
    %c1_703 = arith.constant 1 : index
    %c0_704 = arith.constant 0 : index
    %c0_705 = arith.constant 0 : index
    %1192 = vector.load %arg7[%c3_702, %c1_703, %c0_704, %c0_705] : memref<4x16x8x128xf32, #tpu.memory_space<vmem>>, vector<1x1x8x128xf32>
    %1193 = vector.shape_cast %1192 : vector<1x1x8x128xf32> to vector<8x128xf32>
    %1194 = arith.subf %1193, %1167 : vector<8x128xf32>
    %1195 = math.exp %1194 : vector<8x128xf32>
    %1196 = arith.addf %1180, %1195 : vector<8x128xf32>
    %cst_706 = arith.constant 1.000000e+00 : f32
    %1197 = vector.broadcast %cst_706 : f32 to vector<8x128xf32>
    %1198 = arith.cmpf oeq, %1168, %1197 : vector<8x128xf32>
    %cst_707 = arith.constant 0.000000e+00 : f32
    %1199 = vector.broadcast %cst_707 : f32 to vector<8x128xf32>
    %1200 = arith.select %1198, %1171, %1199 : vector<8x128xi1>, vector<8x128xf32>
    %cst_708 = arith.constant 0.000000e+00 : f32
    %1201 = vector.broadcast %cst_708 : f32 to vector<8x128xf32>
    %1202 = arith.cmpf oeq, %1168, %1201 : vector<8x128xf32>
    %cst_709 = arith.constant 0.000000e+00 : f32
    %1203 = vector.broadcast %cst_709 : f32 to vector<8x128xf32>
    %1204 = arith.select %1202, %1173, %1203 : vector<8x128xi1>, vector<8x128xf32>
    %1205 = arith.addf %1200, %1204 : vector<8x128xf32>
    %1206 = arith.mulf %1205, %1193 : vector<8x128xf32>
    %1207 = arith.addf %1191, %1206 : vector<8x128xf32>
    %c3_710 = arith.constant 3 : index
    %c2_711 = arith.constant 2 : index
    %c0_712 = arith.constant 0 : index
    %c0_713 = arith.constant 0 : index
    %1208 = vector.load %arg7[%c3_710, %c2_711, %c0_712, %c0_713] : memref<4x16x8x128xf32, #tpu.memory_space<vmem>>, vector<1x1x8x128xf32>
    %1209 = vector.shape_cast %1208 : vector<1x1x8x128xf32> to vector<8x128xf32>
    %1210 = arith.subf %1209, %1167 : vector<8x128xf32>
    %1211 = math.exp %1210 : vector<8x128xf32>
    %1212 = arith.addf %1196, %1211 : vector<8x128xf32>
    %cst_714 = arith.constant 2.000000e+00 : f32
    %1213 = vector.broadcast %cst_714 : f32 to vector<8x128xf32>
    %1214 = arith.cmpf oeq, %1168, %1213 : vector<8x128xf32>
    %cst_715 = arith.constant 0.000000e+00 : f32
    %1215 = vector.broadcast %cst_715 : f32 to vector<8x128xf32>
    %1216 = arith.select %1214, %1171, %1215 : vector<8x128xi1>, vector<8x128xf32>
    %cst_716 = arith.constant 1.000000e+00 : f32
    %1217 = vector.broadcast %cst_716 : f32 to vector<8x128xf32>
    %1218 = arith.cmpf oeq, %1168, %1217 : vector<8x128xf32>
    %cst_717 = arith.constant 0.000000e+00 : f32
    %1219 = vector.broadcast %cst_717 : f32 to vector<8x128xf32>
    %1220 = arith.select %1218, %1173, %1219 : vector<8x128xi1>, vector<8x128xf32>
    %1221 = arith.addf %1216, %1220 : vector<8x128xf32>
    %1222 = arith.mulf %1221, %1209 : vector<8x128xf32>
    %1223 = arith.addf %1207, %1222 : vector<8x128xf32>
    %c3_718 = arith.constant 3 : index
    %c3_719 = arith.constant 3 : index
    %c0_720 = arith.constant 0 : index
    %c0_721 = arith.constant 0 : index
    %1224 = vector.load %arg7[%c3_718, %c3_719, %c0_720, %c0_721] : memref<4x16x8x128xf32, #tpu.memory_space<vmem>>, vector<1x1x8x128xf32>
    %1225 = vector.shape_cast %1224 : vector<1x1x8x128xf32> to vector<8x128xf32>
    %1226 = arith.subf %1225, %1167 : vector<8x128xf32>
    %1227 = math.exp %1226 : vector<8x128xf32>
    %1228 = arith.addf %1212, %1227 : vector<8x128xf32>
    %cst_722 = arith.constant 3.000000e+00 : f32
    %1229 = vector.broadcast %cst_722 : f32 to vector<8x128xf32>
    %1230 = arith.cmpf oeq, %1168, %1229 : vector<8x128xf32>
    %cst_723 = arith.constant 0.000000e+00 : f32
    %1231 = vector.broadcast %cst_723 : f32 to vector<8x128xf32>
    %1232 = arith.select %1230, %1171, %1231 : vector<8x128xi1>, vector<8x128xf32>
    %cst_724 = arith.constant 2.000000e+00 : f32
    %1233 = vector.broadcast %cst_724 : f32 to vector<8x128xf32>
    %1234 = arith.cmpf oeq, %1168, %1233 : vector<8x128xf32>
    %cst_725 = arith.constant 0.000000e+00 : f32
    %1235 = vector.broadcast %cst_725 : f32 to vector<8x128xf32>
    %1236 = arith.select %1234, %1173, %1235 : vector<8x128xi1>, vector<8x128xf32>
    %1237 = arith.addf %1232, %1236 : vector<8x128xf32>
    %1238 = arith.mulf %1237, %1225 : vector<8x128xf32>
    %1239 = arith.addf %1223, %1238 : vector<8x128xf32>
    %c3_726 = arith.constant 3 : index
    %c4_727 = arith.constant 4 : index
    %c0_728 = arith.constant 0 : index
    %c0_729 = arith.constant 0 : index
    %1240 = vector.load %arg7[%c3_726, %c4_727, %c0_728, %c0_729] : memref<4x16x8x128xf32, #tpu.memory_space<vmem>>, vector<1x1x8x128xf32>
    %1241 = vector.shape_cast %1240 : vector<1x1x8x128xf32> to vector<8x128xf32>
    %1242 = arith.subf %1241, %1167 : vector<8x128xf32>
    %1243 = math.exp %1242 : vector<8x128xf32>
    %1244 = arith.addf %1228, %1243 : vector<8x128xf32>
    %cst_730 = arith.constant 4.000000e+00 : f32
    %1245 = vector.broadcast %cst_730 : f32 to vector<8x128xf32>
    %1246 = arith.cmpf oeq, %1168, %1245 : vector<8x128xf32>
    %cst_731 = arith.constant 0.000000e+00 : f32
    %1247 = vector.broadcast %cst_731 : f32 to vector<8x128xf32>
    %1248 = arith.select %1246, %1171, %1247 : vector<8x128xi1>, vector<8x128xf32>
    %cst_732 = arith.constant 3.000000e+00 : f32
    %1249 = vector.broadcast %cst_732 : f32 to vector<8x128xf32>
    %1250 = arith.cmpf oeq, %1168, %1249 : vector<8x128xf32>
    %cst_733 = arith.constant 0.000000e+00 : f32
    %1251 = vector.broadcast %cst_733 : f32 to vector<8x128xf32>
    %1252 = arith.select %1250, %1173, %1251 : vector<8x128xi1>, vector<8x128xf32>
    %1253 = arith.addf %1248, %1252 : vector<8x128xf32>
    %1254 = arith.mulf %1253, %1241 : vector<8x128xf32>
    %1255 = arith.addf %1239, %1254 : vector<8x128xf32>
    %c3_734 = arith.constant 3 : index
    %c5_735 = arith.constant 5 : index
    %c0_736 = arith.constant 0 : index
    %c0_737 = arith.constant 0 : index
    %1256 = vector.load %arg7[%c3_734, %c5_735, %c0_736, %c0_737] : memref<4x16x8x128xf32, #tpu.memory_space<vmem>>, vector<1x1x8x128xf32>
    %1257 = vector.shape_cast %1256 : vector<1x1x8x128xf32> to vector<8x128xf32>
    %1258 = arith.subf %1257, %1167 : vector<8x128xf32>
    %1259 = math.exp %1258 : vector<8x128xf32>
    %1260 = arith.addf %1244, %1259 : vector<8x128xf32>
    %cst_738 = arith.constant 5.000000e+00 : f32
    %1261 = vector.broadcast %cst_738 : f32 to vector<8x128xf32>
    %1262 = arith.cmpf oeq, %1168, %1261 : vector<8x128xf32>
    %cst_739 = arith.constant 0.000000e+00 : f32
    %1263 = vector.broadcast %cst_739 : f32 to vector<8x128xf32>
    %1264 = arith.select %1262, %1171, %1263 : vector<8x128xi1>, vector<8x128xf32>
    %cst_740 = arith.constant 4.000000e+00 : f32
    %1265 = vector.broadcast %cst_740 : f32 to vector<8x128xf32>
    %1266 = arith.cmpf oeq, %1168, %1265 : vector<8x128xf32>
    %cst_741 = arith.constant 0.000000e+00 : f32
    %1267 = vector.broadcast %cst_741 : f32 to vector<8x128xf32>
    %1268 = arith.select %1266, %1173, %1267 : vector<8x128xi1>, vector<8x128xf32>
    %1269 = arith.addf %1264, %1268 : vector<8x128xf32>
    %1270 = arith.mulf %1269, %1257 : vector<8x128xf32>
    %1271 = arith.addf %1255, %1270 : vector<8x128xf32>
    %c3_742 = arith.constant 3 : index
    %c6_743 = arith.constant 6 : index
    %c0_744 = arith.constant 0 : index
    %c0_745 = arith.constant 0 : index
    %1272 = vector.load %arg7[%c3_742, %c6_743, %c0_744, %c0_745] : memref<4x16x8x128xf32, #tpu.memory_space<vmem>>, vector<1x1x8x128xf32>
    %1273 = vector.shape_cast %1272 : vector<1x1x8x128xf32> to vector<8x128xf32>
    %1274 = arith.subf %1273, %1167 : vector<8x128xf32>
    %1275 = math.exp %1274 : vector<8x128xf32>
    %1276 = arith.addf %1260, %1275 : vector<8x128xf32>
    %cst_746 = arith.constant 6.000000e+00 : f32
    %1277 = vector.broadcast %cst_746 : f32 to vector<8x128xf32>
    %1278 = arith.cmpf oeq, %1168, %1277 : vector<8x128xf32>
    %cst_747 = arith.constant 0.000000e+00 : f32
    %1279 = vector.broadcast %cst_747 : f32 to vector<8x128xf32>
    %1280 = arith.select %1278, %1171, %1279 : vector<8x128xi1>, vector<8x128xf32>
    %cst_748 = arith.constant 5.000000e+00 : f32
    %1281 = vector.broadcast %cst_748 : f32 to vector<8x128xf32>
    %1282 = arith.cmpf oeq, %1168, %1281 : vector<8x128xf32>
    %cst_749 = arith.constant 0.000000e+00 : f32
    %1283 = vector.broadcast %cst_749 : f32 to vector<8x128xf32>
    %1284 = arith.select %1282, %1173, %1283 : vector<8x128xi1>, vector<8x128xf32>
    %1285 = arith.addf %1280, %1284 : vector<8x128xf32>
    %1286 = arith.mulf %1285, %1273 : vector<8x128xf32>
    %1287 = arith.addf %1271, %1286 : vector<8x128xf32>
    %c3_750 = arith.constant 3 : index
    %c7_751 = arith.constant 7 : index
    %c0_752 = arith.constant 0 : index
    %c0_753 = arith.constant 0 : index
    %1288 = vector.load %arg7[%c3_750, %c7_751, %c0_752, %c0_753] : memref<4x16x8x128xf32, #tpu.memory_space<vmem>>, vector<1x1x8x128xf32>
    %1289 = vector.shape_cast %1288 : vector<1x1x8x128xf32> to vector<8x128xf32>
    %1290 = arith.subf %1289, %1167 : vector<8x128xf32>
    %1291 = math.exp %1290 : vector<8x128xf32>
    %1292 = arith.addf %1276, %1291 : vector<8x128xf32>
    %cst_754 = arith.constant 7.000000e+00 : f32
    %1293 = vector.broadcast %cst_754 : f32 to vector<8x128xf32>
    %1294 = arith.cmpf oeq, %1168, %1293 : vector<8x128xf32>
    %cst_755 = arith.constant 0.000000e+00 : f32
    %1295 = vector.broadcast %cst_755 : f32 to vector<8x128xf32>
    %1296 = arith.select %1294, %1171, %1295 : vector<8x128xi1>, vector<8x128xf32>
    %cst_756 = arith.constant 6.000000e+00 : f32
    %1297 = vector.broadcast %cst_756 : f32 to vector<8x128xf32>
    %1298 = arith.cmpf oeq, %1168, %1297 : vector<8x128xf32>
    %cst_757 = arith.constant 0.000000e+00 : f32
    %1299 = vector.broadcast %cst_757 : f32 to vector<8x128xf32>
    %1300 = arith.select %1298, %1173, %1299 : vector<8x128xi1>, vector<8x128xf32>
    %1301 = arith.addf %1296, %1300 : vector<8x128xf32>
    %1302 = arith.mulf %1301, %1289 : vector<8x128xf32>
    %1303 = arith.addf %1287, %1302 : vector<8x128xf32>
    %c3_758 = arith.constant 3 : index
    %c8_759 = arith.constant 8 : index
    %c0_760 = arith.constant 0 : index
    %c0_761 = arith.constant 0 : index
    %1304 = vector.load %arg7[%c3_758, %c8_759, %c0_760, %c0_761] : memref<4x16x8x128xf32, #tpu.memory_space<vmem>>, vector<1x1x8x128xf32>
    %1305 = vector.shape_cast %1304 : vector<1x1x8x128xf32> to vector<8x128xf32>
    %1306 = arith.subf %1305, %1167 : vector<8x128xf32>
    %1307 = math.exp %1306 : vector<8x128xf32>
    %1308 = arith.addf %1292, %1307 : vector<8x128xf32>
    %cst_762 = arith.constant 8.000000e+00 : f32
    %1309 = vector.broadcast %cst_762 : f32 to vector<8x128xf32>
    %1310 = arith.cmpf oeq, %1168, %1309 : vector<8x128xf32>
    %cst_763 = arith.constant 0.000000e+00 : f32
    %1311 = vector.broadcast %cst_763 : f32 to vector<8x128xf32>
    %1312 = arith.select %1310, %1171, %1311 : vector<8x128xi1>, vector<8x128xf32>
    %cst_764 = arith.constant 7.000000e+00 : f32
    %1313 = vector.broadcast %cst_764 : f32 to vector<8x128xf32>
    %1314 = arith.cmpf oeq, %1168, %1313 : vector<8x128xf32>
    %cst_765 = arith.constant 0.000000e+00 : f32
    %1315 = vector.broadcast %cst_765 : f32 to vector<8x128xf32>
    %1316 = arith.select %1314, %1173, %1315 : vector<8x128xi1>, vector<8x128xf32>
    %1317 = arith.addf %1312, %1316 : vector<8x128xf32>
    %1318 = arith.mulf %1317, %1305 : vector<8x128xf32>
    %1319 = arith.addf %1303, %1318 : vector<8x128xf32>
    %c3_766 = arith.constant 3 : index
    %c9_767 = arith.constant 9 : index
    %c0_768 = arith.constant 0 : index
    %c0_769 = arith.constant 0 : index
    %1320 = vector.load %arg7[%c3_766, %c9_767, %c0_768, %c0_769] : memref<4x16x8x128xf32, #tpu.memory_space<vmem>>, vector<1x1x8x128xf32>
    %1321 = vector.shape_cast %1320 : vector<1x1x8x128xf32> to vector<8x128xf32>
    %1322 = arith.subf %1321, %1167 : vector<8x128xf32>
    %1323 = math.exp %1322 : vector<8x128xf32>
    %1324 = arith.addf %1308, %1323 : vector<8x128xf32>
    %cst_770 = arith.constant 9.000000e+00 : f32
    %1325 = vector.broadcast %cst_770 : f32 to vector<8x128xf32>
    %1326 = arith.cmpf oeq, %1168, %1325 : vector<8x128xf32>
    %cst_771 = arith.constant 0.000000e+00 : f32
    %1327 = vector.broadcast %cst_771 : f32 to vector<8x128xf32>
    %1328 = arith.select %1326, %1171, %1327 : vector<8x128xi1>, vector<8x128xf32>
    %cst_772 = arith.constant 8.000000e+00 : f32
    %1329 = vector.broadcast %cst_772 : f32 to vector<8x128xf32>
    %1330 = arith.cmpf oeq, %1168, %1329 : vector<8x128xf32>
    %cst_773 = arith.constant 0.000000e+00 : f32
    %1331 = vector.broadcast %cst_773 : f32 to vector<8x128xf32>
    %1332 = arith.select %1330, %1173, %1331 : vector<8x128xi1>, vector<8x128xf32>
    %1333 = arith.addf %1328, %1332 : vector<8x128xf32>
    %1334 = arith.mulf %1333, %1321 : vector<8x128xf32>
    %1335 = arith.addf %1319, %1334 : vector<8x128xf32>
    %c3_774 = arith.constant 3 : index
    %c10_775 = arith.constant 10 : index
    %c0_776 = arith.constant 0 : index
    %c0_777 = arith.constant 0 : index
    %1336 = vector.load %arg7[%c3_774, %c10_775, %c0_776, %c0_777] : memref<4x16x8x128xf32, #tpu.memory_space<vmem>>, vector<1x1x8x128xf32>
    %1337 = vector.shape_cast %1336 : vector<1x1x8x128xf32> to vector<8x128xf32>
    %1338 = arith.subf %1337, %1167 : vector<8x128xf32>
    %1339 = math.exp %1338 : vector<8x128xf32>
    %1340 = arith.addf %1324, %1339 : vector<8x128xf32>
    %cst_778 = arith.constant 1.000000e+01 : f32
    %1341 = vector.broadcast %cst_778 : f32 to vector<8x128xf32>
    %1342 = arith.cmpf oeq, %1168, %1341 : vector<8x128xf32>
    %cst_779 = arith.constant 0.000000e+00 : f32
    %1343 = vector.broadcast %cst_779 : f32 to vector<8x128xf32>
    %1344 = arith.select %1342, %1171, %1343 : vector<8x128xi1>, vector<8x128xf32>
    %cst_780 = arith.constant 9.000000e+00 : f32
    %1345 = vector.broadcast %cst_780 : f32 to vector<8x128xf32>
    %1346 = arith.cmpf oeq, %1168, %1345 : vector<8x128xf32>
    %cst_781 = arith.constant 0.000000e+00 : f32
    %1347 = vector.broadcast %cst_781 : f32 to vector<8x128xf32>
    %1348 = arith.select %1346, %1173, %1347 : vector<8x128xi1>, vector<8x128xf32>
    %1349 = arith.addf %1344, %1348 : vector<8x128xf32>
    %1350 = arith.mulf %1349, %1337 : vector<8x128xf32>
    %1351 = arith.addf %1335, %1350 : vector<8x128xf32>
    %c3_782 = arith.constant 3 : index
    %c11_783 = arith.constant 11 : index
    %c0_784 = arith.constant 0 : index
    %c0_785 = arith.constant 0 : index
    %1352 = vector.load %arg7[%c3_782, %c11_783, %c0_784, %c0_785] : memref<4x16x8x128xf32, #tpu.memory_space<vmem>>, vector<1x1x8x128xf32>
    %1353 = vector.shape_cast %1352 : vector<1x1x8x128xf32> to vector<8x128xf32>
    %1354 = arith.subf %1353, %1167 : vector<8x128xf32>
    %1355 = math.exp %1354 : vector<8x128xf32>
    %1356 = arith.addf %1340, %1355 : vector<8x128xf32>
    %cst_786 = arith.constant 1.100000e+01 : f32
    %1357 = vector.broadcast %cst_786 : f32 to vector<8x128xf32>
    %1358 = arith.cmpf oeq, %1168, %1357 : vector<8x128xf32>
    %cst_787 = arith.constant 0.000000e+00 : f32
    %1359 = vector.broadcast %cst_787 : f32 to vector<8x128xf32>
    %1360 = arith.select %1358, %1171, %1359 : vector<8x128xi1>, vector<8x128xf32>
    %cst_788 = arith.constant 1.000000e+01 : f32
    %1361 = vector.broadcast %cst_788 : f32 to vector<8x128xf32>
    %1362 = arith.cmpf oeq, %1168, %1361 : vector<8x128xf32>
    %cst_789 = arith.constant 0.000000e+00 : f32
    %1363 = vector.broadcast %cst_789 : f32 to vector<8x128xf32>
    %1364 = arith.select %1362, %1173, %1363 : vector<8x128xi1>, vector<8x128xf32>
    %1365 = arith.addf %1360, %1364 : vector<8x128xf32>
    %1366 = arith.mulf %1365, %1353 : vector<8x128xf32>
    %1367 = arith.addf %1351, %1366 : vector<8x128xf32>
    %c3_790 = arith.constant 3 : index
    %c12_791 = arith.constant 12 : index
    %c0_792 = arith.constant 0 : index
    %c0_793 = arith.constant 0 : index
    %1368 = vector.load %arg7[%c3_790, %c12_791, %c0_792, %c0_793] : memref<4x16x8x128xf32, #tpu.memory_space<vmem>>, vector<1x1x8x128xf32>
    %1369 = vector.shape_cast %1368 : vector<1x1x8x128xf32> to vector<8x128xf32>
    %1370 = arith.subf %1369, %1167 : vector<8x128xf32>
    %1371 = math.exp %1370 : vector<8x128xf32>
    %1372 = arith.addf %1356, %1371 : vector<8x128xf32>
    %cst_794 = arith.constant 1.200000e+01 : f32
    %1373 = vector.broadcast %cst_794 : f32 to vector<8x128xf32>
    %1374 = arith.cmpf oeq, %1168, %1373 : vector<8x128xf32>
    %cst_795 = arith.constant 0.000000e+00 : f32
    %1375 = vector.broadcast %cst_795 : f32 to vector<8x128xf32>
    %1376 = arith.select %1374, %1171, %1375 : vector<8x128xi1>, vector<8x128xf32>
    %cst_796 = arith.constant 1.100000e+01 : f32
    %1377 = vector.broadcast %cst_796 : f32 to vector<8x128xf32>
    %1378 = arith.cmpf oeq, %1168, %1377 : vector<8x128xf32>
    %cst_797 = arith.constant 0.000000e+00 : f32
    %1379 = vector.broadcast %cst_797 : f32 to vector<8x128xf32>
    %1380 = arith.select %1378, %1173, %1379 : vector<8x128xi1>, vector<8x128xf32>
    %1381 = arith.addf %1376, %1380 : vector<8x128xf32>
    %1382 = arith.mulf %1381, %1369 : vector<8x128xf32>
    %1383 = arith.addf %1367, %1382 : vector<8x128xf32>
    %c3_798 = arith.constant 3 : index
    %c13_799 = arith.constant 13 : index
    %c0_800 = arith.constant 0 : index
    %c0_801 = arith.constant 0 : index
    %1384 = vector.load %arg7[%c3_798, %c13_799, %c0_800, %c0_801] : memref<4x16x8x128xf32, #tpu.memory_space<vmem>>, vector<1x1x8x128xf32>
    %1385 = vector.shape_cast %1384 : vector<1x1x8x128xf32> to vector<8x128xf32>
    %1386 = arith.subf %1385, %1167 : vector<8x128xf32>
    %1387 = math.exp %1386 : vector<8x128xf32>
    %1388 = arith.addf %1372, %1387 : vector<8x128xf32>
    %cst_802 = arith.constant 1.300000e+01 : f32
    %1389 = vector.broadcast %cst_802 : f32 to vector<8x128xf32>
    %1390 = arith.cmpf oeq, %1168, %1389 : vector<8x128xf32>
    %cst_803 = arith.constant 0.000000e+00 : f32
    %1391 = vector.broadcast %cst_803 : f32 to vector<8x128xf32>
    %1392 = arith.select %1390, %1171, %1391 : vector<8x128xi1>, vector<8x128xf32>
    %cst_804 = arith.constant 1.200000e+01 : f32
    %1393 = vector.broadcast %cst_804 : f32 to vector<8x128xf32>
    %1394 = arith.cmpf oeq, %1168, %1393 : vector<8x128xf32>
    %cst_805 = arith.constant 0.000000e+00 : f32
    %1395 = vector.broadcast %cst_805 : f32 to vector<8x128xf32>
    %1396 = arith.select %1394, %1173, %1395 : vector<8x128xi1>, vector<8x128xf32>
    %1397 = arith.addf %1392, %1396 : vector<8x128xf32>
    %1398 = arith.mulf %1397, %1385 : vector<8x128xf32>
    %1399 = arith.addf %1383, %1398 : vector<8x128xf32>
    %c3_806 = arith.constant 3 : index
    %c14_807 = arith.constant 14 : index
    %c0_808 = arith.constant 0 : index
    %c0_809 = arith.constant 0 : index
    %1400 = vector.load %arg7[%c3_806, %c14_807, %c0_808, %c0_809] : memref<4x16x8x128xf32, #tpu.memory_space<vmem>>, vector<1x1x8x128xf32>
    %1401 = vector.shape_cast %1400 : vector<1x1x8x128xf32> to vector<8x128xf32>
    %1402 = arith.subf %1401, %1167 : vector<8x128xf32>
    %1403 = math.exp %1402 : vector<8x128xf32>
    %1404 = arith.addf %1388, %1403 : vector<8x128xf32>
    %cst_810 = arith.constant 1.400000e+01 : f32
    %1405 = vector.broadcast %cst_810 : f32 to vector<8x128xf32>
    %1406 = arith.cmpf oeq, %1168, %1405 : vector<8x128xf32>
    %cst_811 = arith.constant 0.000000e+00 : f32
    %1407 = vector.broadcast %cst_811 : f32 to vector<8x128xf32>
    %1408 = arith.select %1406, %1171, %1407 : vector<8x128xi1>, vector<8x128xf32>
    %cst_812 = arith.constant 1.300000e+01 : f32
    %1409 = vector.broadcast %cst_812 : f32 to vector<8x128xf32>
    %1410 = arith.cmpf oeq, %1168, %1409 : vector<8x128xf32>
    %cst_813 = arith.constant 0.000000e+00 : f32
    %1411 = vector.broadcast %cst_813 : f32 to vector<8x128xf32>
    %1412 = arith.select %1410, %1173, %1411 : vector<8x128xi1>, vector<8x128xf32>
    %1413 = arith.addf %1408, %1412 : vector<8x128xf32>
    %1414 = arith.mulf %1413, %1401 : vector<8x128xf32>
    %1415 = arith.addf %1399, %1414 : vector<8x128xf32>
    %c3_814 = arith.constant 3 : index
    %c15_815 = arith.constant 15 : index
    %c0_816 = arith.constant 0 : index
    %c0_817 = arith.constant 0 : index
    %1416 = vector.load %arg7[%c3_814, %c15_815, %c0_816, %c0_817] : memref<4x16x8x128xf32, #tpu.memory_space<vmem>>, vector<1x1x8x128xf32>
    %1417 = vector.shape_cast %1416 : vector<1x1x8x128xf32> to vector<8x128xf32>
    %1418 = arith.subf %1417, %1167 : vector<8x128xf32>
    %1419 = math.exp %1418 : vector<8x128xf32>
    %1420 = arith.addf %1404, %1419 : vector<8x128xf32>
    %cst_818 = arith.constant 1.500000e+01 : f32
    %1421 = vector.broadcast %cst_818 : f32 to vector<8x128xf32>
    %1422 = arith.cmpf oeq, %1168, %1421 : vector<8x128xf32>
    %cst_819 = arith.constant 0.000000e+00 : f32
    %1423 = vector.broadcast %cst_819 : f32 to vector<8x128xf32>
    %1424 = arith.select %1422, %1171, %1423 : vector<8x128xi1>, vector<8x128xf32>
    %cst_820 = arith.constant 1.400000e+01 : f32
    %1425 = vector.broadcast %cst_820 : f32 to vector<8x128xf32>
    %1426 = arith.cmpf oeq, %1168, %1425 : vector<8x128xf32>
    %cst_821 = arith.constant 0.000000e+00 : f32
    %1427 = vector.broadcast %cst_821 : f32 to vector<8x128xf32>
    %1428 = arith.select %1426, %1173, %1427 : vector<8x128xi1>, vector<8x128xf32>
    %1429 = arith.addf %1424, %1428 : vector<8x128xf32>
    %1430 = arith.mulf %1429, %1417 : vector<8x128xf32>
    %1431 = arith.addf %1415, %1430 : vector<8x128xf32>
    %1432 = math.log %1420 : vector<8x128xf32>
    %1433 = arith.addf %1167, %1432 : vector<8x128xf32>
    %1434 = arith.subf %1433, %1431 : vector<8x128xf32>
    %1435 = arith.addf %1120, %1434 : vector<8x128xf32>
    %cst_822 = arith.constant 2.500000e-01 : f32
    %1436 = vector.broadcast %cst_822 : f32 to vector<8x128xf32>
    %1437 = arith.mulf %1435, %1436 : vector<8x128xf32>
    %c0_823 = arith.constant 0 : index
    %c0_824 = arith.constant 0 : index
    %1438 = vector.load %arg11[%c0_823, %c0_824] : memref<8x128xf32, #tpu.memory_space<vmem>>, vector<8x128xf32>
    %cst_825 = arith.constant 5.000000e-01 : f32
    %1439 = vector.broadcast %cst_825 : f32 to vector<8x128xf32>
    %1440 = arith.cmpf ogt, %3, %1439 : vector<8x128xf32>
    %1441 = arith.mulf %1437, %5 : vector<8x128xf32>
    %cst_826 = arith.constant 0.000000e+00 : f32
    %1442 = vector.broadcast %cst_826 : f32 to vector<8x128xf32>
    %1443 = arith.select %1440, %1441, %1442 : vector<8x128xi1>, vector<8x128xf32>
    %1444 = arith.addf %1438, %1443 : vector<8x128xf32>
    %c0_827 = arith.constant 0 : index
    %c0_828 = arith.constant 0 : index
    %1445 = vector.load %arg11[%c0_827, %c0_828] : memref<8x128xf32, #tpu.memory_space<vmem>>, vector<8x128xf32>
    tpu.vector_store %arg11[%c0_827, %c0_828], %1444 {strides = array<i32>} : memref<8x128xf32, #tpu.memory_space<vmem>>, vector<8x128xf32>,
    %c1_i32 = arith.constant 1 : i32
    %1446 = arith.cmpi eq, %arg0, %c1_i32 : i32
    %1447 = arith.extui %1446 : i1 to i32
    %c0_i32_829 = arith.constant 0 : i32
    %1448 = arith.cmpi ne, %1447, %c0_i32_829 : i32
    scf.if %1448 {
      %c0_830 = arith.constant 0 : index
      %1449 = memref.load %arg1[%c0_830] : memref<1xf32, #tpu.memory_space<smem>>
      %cst_831 = arith.constant 1.000000e+00 : f32
      %1450 = arith.divf %cst_831, %1449 : f32
      %c0_832 = arith.constant 0 : index
      %c0_833 = arith.constant 0 : index
      %1451 = vector.load %arg10[%c0_832, %c0_833] : memref<8x128xf32, #tpu.memory_space<vmem>>, vector<8x128xf32>
      %1452 = vector.shape_cast %1451 : vector<8x128xf32> to vector<1x8x128xf32>
      %cst_834 = arith.constant dense<0.000000e+00> : vector<1xf32>
      %1453 = vector.multi_reduction <add>, %1452, %cst_834 [1, 2] : vector<1x8x128xf32> to vector<1xf32>
      %1454 = vector.shape_cast %1453 : vector<1xf32> to vector<1x1x1xf32>
      %1455 = vector.extract %1454[0, 0, 0] : f32 from vector<1x1x1xf32>
      %1456 = arith.mulf %1455, %1450 : f32
      %c0_835 = arith.constant 0 : index
      %c0_836 = arith.constant 0 : index
      %1457 = memref.load %arg8[%c0_835, %c0_836] : memref<1x1xf32, #tpu.memory_space<smem>>
      memref.store %1456, %arg8[%c0_835, %c0_836] : memref<1x1xf32, #tpu.memory_space<smem>>
      %c0_837 = arith.constant 0 : index
      %c0_838 = arith.constant 0 : index
      %1458 = vector.load %arg11[%c0_837, %c0_838] : memref<8x128xf32, #tpu.memory_space<vmem>>, vector<8x128xf32>
      %1459 = vector.shape_cast %1458 : vector<8x128xf32> to vector<1x8x128xf32>
      %cst_839 = arith.constant dense<0.000000e+00> : vector<1xf32>
      %1460 = vector.multi_reduction <add>, %1459, %cst_839 [1, 2] : vector<1x8x128xf32> to vector<1xf32>
      %1461 = vector.shape_cast %1460 : vector<1xf32> to vector<1x1x1xf32>
      %1462 = vector.extract %1461[0, 0, 0] : f32 from vector<1x1x1xf32>
      %1463 = arith.mulf %1462, %1450 : f32
      %c0_840 = arith.constant 0 : index
      %c0_841 = arith.constant 0 : index
      %1464 = memref.load %arg9[%c0_840, %c0_841] : memref<1x1xf32, #tpu.memory_space<smem>>
      memref.store %1463, %arg9[%c0_840, %c0_841] : memref<1x1xf32, #tpu.memory_space<smem>>
    } else {
    }
    return
  }
  func.func @transform_0(%arg0: i32) -> i32 {
    %c0_i32 = arith.constant 0 : i32
    %c0_i32_0 = arith.constant 0 : i32
    return %c0_i32 : i32
  }
  func.func @transform_1(%arg0: i32) -> (i32, i32, i32) {
    %c0_i32 = arith.constant 0 : i32
    %c0_i32_0 = arith.constant 0 : i32
    %c0_i32_1 = arith.constant 0 : i32
    return %c0_i32, %arg0, %c0_i32_0 : i32, i32, i32
  }
  func.func @transform_2(%arg0: i32) -> (i32, i32, i32) {
    %c0_i32 = arith.constant 0 : i32
    %c0_i32_0 = arith.constant 0 : i32
    %c0_i32_1 = arith.constant 0 : i32
    return %c0_i32, %arg0, %c0_i32_0 : i32, i32, i32
  }
  func.func @transform_3(%arg0: i32) -> (i32, i32, i32) {
    %c0_i32 = arith.constant 0 : i32
    %c0_i32_0 = arith.constant 0 : i32
    %c0_i32_1 = arith.constant 0 : i32
    return %c0_i32, %arg0, %c0_i32_0 : i32, i32, i32
  }
  func.func @transform_4(%arg0: i32) -> (i32, i32, i32) {
    %c0_i32 = arith.constant 0 : i32
    %c0_i32_0 = arith.constant 0 : i32
    %c0_i32_1 = arith.constant 0 : i32
    return %c0_i32, %arg0, %c0_i32_0 : i32, i32, i32
  }
  func.func @transform_5(%arg0: i32) -> (i32, i32) {
    %c0_i32 = arith.constant 0 : i32
    %c0_i32_0 = arith.constant 0 : i32
    return %arg0, %c0_i32 : i32, i32
  }
  func.func @transform_6(%arg0: i32) -> (i32, i32, i32, i32) {
    %c0_i32 = arith.constant 0 : i32
    %c0_i32_0 = arith.constant 0 : i32
    %c0_i32_1 = arith.constant 0 : i32
    %c0_i32_2 = arith.constant 0 : i32
    return %c0_i32, %c0_i32_0, %arg0, %c0_i32_1 : i32, i32, i32, i32
  }
  func.func @transform_7(%arg0: i32) -> (i32, i32) {
    %c0_i32 = arith.constant 0 : i32
    %c0_i32_0 = arith.constant 0 : i32
    %c0_i32_1 = arith.constant 0 : i32
    return %c0_i32, %c0_i32_0 : i32, i32
  }
  func.func @transform_8(%arg0: i32) -> (i32, i32) {
    %c0_i32 = arith.constant 0 : i32
    %c0_i32_0 = arith.constant 0 : i32
    %c0_i32_1 = arith.constant 0 : i32
    return %c0_i32, %c0_i32_0 : i32, i32
  }
}

</mosaic_0001>

<llo_original>
// kernel: rotated_bbox_loss.1
$region0: #{rotated_bbox_loss.1}
  #allocation0 [shape = 'u32[]', space=smem, size = 0x4, offset = 0x4, fixed_abs, tag = 'smem constant byte address 0x4 - core index']
  #allocation1 [shape = 'u32[144,128]{1,0:T(1,128)}', space=vmem, size = 0x12000, scoped, tag = 'internal scratch']
  #allocation2 [shape = 'f32[8,128]{1,0:T(8,128)}', space=vmem, size = 0x1000, scoped, tag = 'scratch operand']
  #allocation3 [shape = 'f32[8,128]{1,0:T(8,128)}', space=vmem, size = 0x1000, scoped, tag = 'scratch operand']
  #allocation4 [shape = 'f32[1]{0:T(128)S(6)}', space=smem, size = 0x200, scoped, tag = 'scoped memory for rotated_bbox_loss.1']
  %s0 = inlined_call_operand.<no memory space> [shape: f32[1], index: 0, kind: input, shape index: {}]
  %s1 = inlined_call_operand.vmem [shape: f32[5,16,128], index: 1, kind: input, shape index: {}]
  %s2 = inlined_call_operand.vmem [shape: f32[5,16,128], index: 2, kind: input, shape index: {}]
  %s3 = inlined_call_operand.vmem [shape: f32[2,16,128], index: 3, kind: input, shape index: {}]
  %s4 = inlined_call_operand.vmem [shape: f32[4,16,128], index: 4, kind: input, shape index: {}]
  %s5 = inlined_call_operand.vmem [shape: f32[16,128], index: 5, kind: input, shape index: {}]
  %s6 = inlined_call_operand.vmem [shape: f32[4,16,16,128], index: 6, kind: input, shape index: {}]
  %s7 = inlined_call_operand.hbm [shape: f32[1,1], index: 7, kind: output, shape index: {0}]
  %s8 = inlined_call_operand.hbm [shape: f32[1,1], index: 8, kind: output, shape index: {1}]
  %9 = xla_tuple %s7, %s8
  %s10 = sld [smem:[#allocation0]]
  $region267: #{rotated_bbox_loss.1} parent=0
    _
  %s12 = ssub.s32 1, %s10
  %s13 = scalar_select 0, %s12, %s10
  %14 = sst [smem:[#allocation4]] %s0
  $region1: #{rotated_bbox_loss.1} parent=0
    #allocation5 [shape = 'u8[40960]{0}', space=vmem, size = 0xa000, scoped, tag = 'input window, operand 1']
    #allocation6 [shape = 'u8[40960]{0}', space=vmem, size = 0xa000, scoped, tag = 'input window, operand 2']
    #allocation7 [shape = 'u8[16384]{0}', space=vmem, size = 0x4000, scoped, tag = 'input window, operand 3']
    #allocation8 [shape = 'u8[32768]{0}', space=vmem, size = 0x8000, scoped, tag = 'input window, operand 4']
    #allocation9 [shape = 'u8[524288]{0}', space=vmem, size = 0x80000, scoped, tag = 'input window, operand 6']
    #allocation10 [shape = 'u8[512]{0}', space=smem, size = 0x200, scoped, tag = 'output window, operand 0, single buffered']
    #allocation11 [shape = 's32[2]{0}', space=sflag, size = 0x8, scoped, tag = 'scoped memory for rotated_bbox_loss.1']
    #allocation12 [shape = 'u8[512]{0}', space=smem, size = 0x200, scoped, tag = 'output window, operand 1, single buffered']
    #allocation13 [shape = 's32[1]{0}', space=sflag, size = 0x4, scoped, tag = 'scoped memory for rotated_bbox_loss.1']
    %15 = vsyncpa [#allocation11], 0
    %16 = vsyncpa [#allocation13], 0
    loop: start=0, step=1, limit=4
    $region2: #{rotated_bbox_loss.1} parent=1 // loop_pre_header
      _
    $region3: #{rotated_bbox_loss.1} parent=1 // loop_header
      %s18 = sphi 0, %s22
      %p19 = scmp.ge.s32.totalorder %s18, 4
      %s26 = sphi 0, %s26
      %s28 = sphi 0, %s26
      %s29 = sphi 0, %s28
      %s43 = sphi 0, %s29
      %s49 = sphi 0, %s51
      %s52 = sphi 0, %s49
      %s53 = sphi 0, %s52
      %s69 = sphi 0, %s53
      %s75 = sphi 0, %s77
      %s78 = sphi 0, %s75
      %s79 = sphi 0, %s78
      %s95 = sphi 0, %s79
      %s101 = sphi 0, %s103
      %s104 = sphi 0, %s101
      %s105 = sphi 0, %s104
      %s121 = sphi 0, %s105
      %s127 = sphi 0, %s129
      %s130 = sphi 0, %s127
      %s131 = sphi 0, %s130
      %s147 = sphi 0, %s131
      %s153 = sphi 0, %s155
      %s156 = sphi 0, %s153
      %s157 = sphi 0, %s156
      %s173 = sphi 0, %s157
      %s179 = sphi 0, %s181
      %s182 = sphi 0, %s179
      %s183 = sphi 0, %s182
      %s199 = sphi 0, %s183
      %s203 = sphi 0, %s203
      %s205 = sphi 0, %s203
      %s206 = sphi 0, %s205
      %s220 = sphi 0, %s206
      %s224 = sphi 0, %s224
      %s226 = sphi 0, %s224
      %s227 = sphi 0, %s226
      %s241 = sphi 0, %s227
    $region4: #{rotated_bbox_loss.1} parent=1 // loop_header_branch
      %21 = sbr.rel (%p19) target = $region8
    $region5: #{rotated_bbox_loss.1} parent=1 // loop_body
      %s23 = ssub.s32 %s18, 1
      %s24 = ssub.s32 %s18, 2
      %s25 = sadd.s32 %s18, 1
      %s27 = sadd.s32 %s26, 1
      %p30 = scmp.eq.s32.totalorder %s18, 1
      %p31 = scmp.ne.s32.totalorder %s26, %s28
      %p32 = scmp.eq.s32.totalorder %s18, 0
      %p33 = por %p31, %p32
      %p34 = scmp.ne.s32.totalorder %s26, %s28
      %p35 = scmp.eq.s32.totalorder %s23, 1
      %p36 = por %p34, %p35
      %p37 = scmp.ne.s32.totalorder %s28, %s29
      %p38 = scmp.eq.s32.totalorder %s23, 0
      %p39 = por %p37, %p38
      %p40 = scmp.ne.s32.totalorder %s28, %s29
      %p41 = scmp.eq.s32.totalorder %s24, 1
      %p42 = por %p40, %p41
      %p44 = scmp.ne.s32.totalorder %s29, %s43
      %p45 = scmp.eq.s32.totalorder %s24, 0
      %p46 = por %p44, %p45
      %s47 = ssub.s32 %s18, %s25
      %p48 = scmp.eq.s32.totalorder %s47, 0
      %s50 = sadd.s32 %s49, 1
      %s51 = scalar_select %p48, %s49, %s50
      %p54 = pneg %p48
      %p55 = scmp.eq.s32.totalorder %s18, 1
      %p56 = por %p54, %p55
      %p57 = scmp.ne.s32.totalorder %s49, %s52
      %p58 = scmp.eq.s32.totalorder %s18, 0
      %p59 = por %p57, %p58
      %p60 = scmp.ne.s32.totalorder %s49, %s52
      %p61 = scmp.eq.s32.totalorder %s23, 1
      %p62 = por %p60, %p61
      %p63 = scmp.ne.s32.totalorder %s52, %s53
      %p64 = scmp.eq.s32.totalorder %s23, 0
      %p65 = por %p63, %p64
      %p66 = scmp.ne.s32.totalorder %s52, %s53
      %p67 = scmp.eq.s32.totalorder %s24, 1
      %p68 = por %p66, %p67
      %p70 = scmp.ne.s32.totalorder %s53, %s69
      %p71 = scmp.eq.s32.totalorder %s24, 0
      %p72 = por %p70, %p71
      %s73 = ssub.s32 %s18, %s25
      %p74 = scmp.eq.s32.totalorder %s73, 0
      %s76 = sadd.s32 %s75, 1
      %s77 = scalar_select %p74, %s75, %s76
      %p80 = pneg %p74
      %p81 = scmp.eq.s32.totalorder %s18, 1
      %p82 = por %p80, %p81
      %p83 = scmp.ne.s32.totalorder %s75, %s78
      %p84 = scmp.eq.s32.totalorder %s18, 0
      %p85 = por %p83, %p84
      %p86 = scmp.ne.s32.totalorder %s75, %s78
      %p87 = scmp.eq.s32.totalorder %s23, 1
      %p88 = por %p86, %p87
      %p89 = scmp.ne.s32.totalorder %s78, %s79
      %p90 = scmp.eq.s32.totalorder %s23, 0
      %p91 = por %p89, %p90
      %p92 = scmp.ne.s32.totalorder %s78, %s79
      %p93 = scmp.eq.s32.totalorder %s24, 1
      %p94 = por %p92, %p93
      %p96 = scmp.ne.s32.totalorder %s79, %s95
      %p97 = scmp.eq.s32.totalorder %s24, 0
      %p98 = por %p96, %p97
      %s99 = ssub.s32 %s18, %s25
      %p100 = scmp.eq.s32.totalorder %s99, 0
      %s102 = sadd.s32 %s101, 1
      %s103 = scalar_select %p100, %s101, %s102
      %p106 = pneg %p100
      %p107 = scmp.eq.s32.totalorder %s18, 1
      %p108 = por %p106, %p107
      %p109 = scmp.ne.s32.totalorder %s101, %s104
      %p110 = scmp.eq.s32.totalorder %s18, 0
      %p111 = por %p109, %p110
      %p112 = scmp.ne.s32.totalorder %s101, %s104
      %p113 = scmp.eq.s32.totalorder %s23, 1
      %p114 = por %p112, %p113
      %p115 = scmp.ne.s32.totalorder %s104, %s105
      %p116 = scmp.eq.s32.totalorder %s23, 0
      %p117 = por %p115, %p116
      %p118 = scmp.ne.s32.totalorder %s104, %s105
      %p119 = scmp.eq.s32.totalorder %s24, 1
      %p120 = por %p118, %p119
      %p122 = scmp.ne.s32.totalorder %s105, %s121
      %p123 = scmp.eq.s32.totalorder %s24, 0
      %p124 = por %p122, %p123
      %s125 = ssub.s32 %s18, %s25
      %p126 = scmp.eq.s32.totalorder %s125, 0
      %s128 = sadd.s32 %s127, 1
      %s129 = scalar_select %p126, %s127, %s128
      %p132 = pneg %p126
      %p133 = scmp.eq.s32.totalorder %s18, 1
      %p134 = por %p132, %p133
      %p135 = scmp.ne.s32.totalorder %s127, %s130
      %p136 = scmp.eq.s32.totalorder %s18, 0
      %p137 = por %p135, %p136
      %p138 = scmp.ne.s32.totalorder %s127, %s130
      %p139 = scmp.eq.s32.totalorder %s23, 1
      %p140 = por %p138, %p139
      %p141 = scmp.ne.s32.totalorder %s130, %s131
      %p142 = scmp.eq.s32.totalorder %s23, 0
      %p143 = por %p141, %p142
      %p144 = scmp.ne.s32.totalorder %s130, %s131
      %p145 = scmp.eq.s32.totalorder %s24, 1
      %p146 = por %p144, %p145
      %p148 = scmp.ne.s32.totalorder %s131, %s147
      %p149 = scmp.eq.s32.totalorder %s24, 0
      %p150 = por %p148, %p149
      %s151 = ssub.s32 %s18, %s25
      %p152 = scmp.eq.s32.totalorder %s151, 0
      %s154 = sadd.s32 %s153, 1
      %s155 = scalar_select %p152, %s153, %s154
      %p158 = pneg %p152
      %p159 = scmp.eq.s32.totalorder %s18, 1
      %p160 = por %p158, %p159
      %p161 = scmp.ne.s32.totalorder %s153, %s156
      %p162 = scmp.eq.s32.totalorder %s18, 0
      %p163 = por %p161, %p162
      %p164 = scmp.ne.s32.totalorder %s153, %s156
      %p165 = scmp.eq.s32.totalorder %s23, 1
      %p166 = por %p164, %p165
      %p167 = scmp.ne.s32.totalorder %s156, %s157
      %p168 = scmp.eq.s32.totalorder %s23, 0
      %p169 = por %p167, %p168
      %p170 = scmp.ne.s32.totalorder %s156, %s157
      %p171 = scmp.eq.s32.totalorder %s24, 1
      %p172 = por %p170, %p171
      %p174 = scmp.ne.s32.totalorder %s157, %s173
      %p175 = scmp.eq.s32.totalorder %s24, 0
      %p176 = por %p174, %p175
      %s177 = ssub.s32 %s18, %s25
      %p178 = scmp.eq.s32.totalorder %s177, 0
      %s180 = sadd.s32 %s179, 1
      %s181 = scalar_select %p178, %s179, %s180
      %p184 = pneg %p178
      %p185 = scmp.eq.s32.totalorder %s18, 1
      %p186 = por %p184, %p185
      %p187 = scmp.ne.s32.totalorder %s179, %s182
      %p188 = scmp.eq.s32.totalorder %s18, 0
      %p189 = por %p187, %p188
      %p190 = scmp.ne.s32.totalorder %s179, %s182
      %p191 = scmp.eq.s32.totalorder %s23, 1
      %p192 = por %p190, %p191
      %p193 = scmp.ne.s32.totalorder %s182, %s183
      %p194 = scmp.eq.s32.totalorder %s23, 0
      %p195 = por %p193, %p194
      %p196 = scmp.ne.s32.totalorder %s182, %s183
      %p197 = scmp.eq.s32.totalorder %s24, 1
      %p198 = por %p196, %p197
      %p200 = scmp.ne.s32.totalorder %s183, %s199
      %p201 = scmp.eq.s32.totalorder %s24, 0
      %p202 = por %p200, %p201
      %s204 = sadd.s32 %s203, 1
      %p207 = scmp.eq.s32.totalorder %s18, 1
      %p208 = scmp.ne.s32.totalorder %s203, %s205
      %p209 = scmp.eq.s32.totalorder %s18, 0
      %p210 = por %p208, %p209
      %p211 = scmp.ne.s32.totalorder %s203, %s205
      %p212 = scmp.eq.s32.totalorder %s23, 1
      %p213 = por %p211, %p212
      %p214 = scmp.ne.s32.totalorder %s205, %s206
      %p215 = scmp.eq.s32.totalorder %s23, 0
      %p216 = por %p214, %p215
      %p217 = scmp.ne.s32.totalorder %s205, %s206
      %p218 = scmp.eq.s32.totalorder %s24, 1
      %p219 = por %p217, %p218
      %p221 = scmp.ne.s32.totalorder %s206, %s220
      %p222 = scmp.eq.s32.totalorder %s24, 0
      %p223 = por %p221, %p222
      %s225 = sadd.s32 %s224, 1
      %p228 = scmp.eq.s32.totalorder %s18, 1
      %p229 = scmp.ne.s32.totalorder %s224, %s226
      %p230 = scmp.eq.s32.totalorder %s18, 0
      %p231 = por %p229, %p230
      %p232 = scmp.ne.s32.totalorder %s224, %s226
      %p233 = scmp.eq.s32.totalorder %s23, 1
      %p234 = por %p232, %p233
      %p235 = scmp.ne.s32.totalorder %s226, %s227
      %p236 = scmp.eq.s32.totalorder %s23, 0
      %p237 = por %p235, %p236
      %p238 = scmp.ne.s32.totalorder %s226, %s227
      %p239 = scmp.eq.s32.totalorder %s24, 1
      %p240 = por %p238, %p239
      %p242 = scmp.ne.s32.totalorder %s227, %s241
      %p243 = scmp.eq.s32.totalorder %s24, 0
      %p244 = por %p242, %p243
      %p245 = scmp.le.s32.totalorder 1, %s18
      %p246 = scmp.lt.s32.totalorder %s18, 3
      %p247 = pnand %p245, %p246
      %p248 = pneg %p247
      // Predicated region
      $region9: #{rotated_bbox_loss.1} parent=5 // pred_check
        _
      $region10: #{rotated_bbox_loss.1} parent=5 // pred_check_branch
        %250 = sbr.rel (%p247) target = $region12
      $region11: #{rotated_bbox_loss.1} parent=5 // pred_region
        %s251 = ssub.s32 %s18, 1
        // Predicated region
        $region13: #{rotated_bbox_loss.1} parent=11 // pred_check
          %p252 = pneg %p39
        $region14: #{rotated_bbox_loss.1} parent=11 // pred_check_branch
          %254 = sbr.rel (%p252) target = $region16
        $region15: #{rotated_bbox_loss.1} parent=11 // pred_region
          _
        $region16: #{rotated_bbox_loss.1} parent=11 // pred_fallthru
          _
      $region12: #{rotated_bbox_loss.1} parent=5 // pred_fallthru
        _
      %p255 = scmp.lt.s32.totalorder %s18, 2
      // Predicated region
      $region17: #{rotated_bbox_loss.1} parent=5 // pred_check
        %p256 = pneg %p255
      $region18: #{rotated_bbox_loss.1} parent=5 // pred_check_branch
        %258 = sbr.rel (%p256) target = $region20
      $region19: #{rotated_bbox_loss.1} parent=5 // pred_region
        // Predicated region
        $region21: #{rotated_bbox_loss.1} parent=19 // pred_check
          %p259 = pneg %p59
        $region22: #{rotated_bbox_loss.1} parent=19 // pred_check_branch
          %261 = sbr.rel (%p259) target = $region24
        $region23: #{rotated_bbox_loss.1} parent=19 // pred_region
          %s262 = sand.u32 %s49, 1
          %s263 = sand.u32 %s49, 1
          %s264 = smul.addr %s263, 40
          %s265 = scalar_lea.vmem [#allocation5], %s264
          %s266 = smul.addr %s18, 8
          %s267 = scalar_lea.vmem %s1, %s266
          // Predicated region
          $region25: #{rotated_bbox_loss.1} parent=23 // pred_check
            _
          $region26: #{rotated_bbox_loss.1} parent=23 // pred_check_branch
            %269 = sbr.rel (0) target = $region28
          $region27: #{rotated_bbox_loss.1} parent=23 // pred_region
            // Predicated region
            $region29: #{rotated_bbox_loss.1} parent=27 // pred_check
              _
            $region30: #{rotated_bbox_loss.1} parent=27 // pred_check_branch
              %271 = sbr.rel (0) target = $region32
            $region31: #{rotated_bbox_loss.1} parent=27 // pred_region
              // Predicated region
              $region44: #{rotated_bbox_loss.1} parent=31 // pred_check
                _
              $region45: #{rotated_bbox_loss.1} parent=31 // pred_check_branch
                %295 = sbr.rel (0) target = $region47
              $region46: #{rotated_bbox_loss.1} parent=31 // pred_region
                loop: start=0, step=1, limit=1
                $region48: #{rotated_bbox_loss.1} parent=46 // loop_pre_header
                  _
                $region49: #{rotated_bbox_loss.1} parent=46 // loop_header
                  %s297 = sphi 0, %s301
                  %p298 = scmp.ge.s32.totalorder %s297, 1
                  %s302 = sphi %s267, %s267
                  %s303 = sphi %s265, %s265
                $region50: #{rotated_bbox_loss.1} parent=46 // loop_header_branch
                  %300 = sbr.rel (%p298) target = $region54
                $region51: #{rotated_bbox_loss.1} parent=46 // loop_body
                  %v304 = vld [vmem:[%s302] sm:$0xff]
                  %305 = vst [vmem:[%s303] sm:$0xff] %v304
                  %v306 = vld [vmem:[%s302 + $0x10] sm:$0xff]
                  %307 = vst [vmem:[%s303 + $0x8] sm:$0xff] %v306
                  %v308 = vld [vmem:[%s302 + $0x20] sm:$0xff]
                  %309 = vst [vmem:[%s303 + $0x10] sm:$0xff] %v308
                  %v310 = vld [vmem:[%s302 + $0x30] sm:$0xff]
                  %311 = vst [vmem:[%s303 + $0x18] sm:$0xff] %v310
                  %v312 = vld [vmem:[%s302 + $0x40] sm:$0xff]
                  %313 = vst [vmem:[%s303 + $0x20] sm:$0xff] %v312
                $region52: #{rotated_bbox_loss.1} parent=46 // loop_footer
                  %s301 = sadd.s32 1, %s297
                $region53: #{rotated_bbox_loss.1} parent=46 // loop_footer_branch
                  %296 = sbr.rel target = $region49
                $region54: #{rotated_bbox_loss.1} parent=46 // loop_exit
                  _
              $region47: #{rotated_bbox_loss.1} parent=31 // pred_fallthru
                _
              // Predicated region
              $region55: #{rotated_bbox_loss.1} parent=31 // pred_check
                _
              $region56: #{rotated_bbox_loss.1} parent=31 // pred_check_branch
                %315 = sbr.rel target = $region58
              $region57: #{rotated_bbox_loss.1} parent=31 // pred_region
                _
              $region58: #{rotated_bbox_loss.1} parent=31 // pred_fallthru
                _
            $region32: #{rotated_bbox_loss.1} parent=27 // pred_fallthru
              _
            // Predicated region
            $region33: #{rotated_bbox_loss.1} parent=27 // pred_check
              _
            $region34: #{rotated_bbox_loss.1} parent=27 // pred_check_branch
              %273 = sbr.rel target = $region36
            $region35: #{rotated_bbox_loss.1} parent=27 // pred_region
              %s275 = ssub.s32 256, 1
              loop: start=0, step=1, limit=1
              $region37: #{rotated_bbox_loss.1} parent=35 // loop_pre_header
                _
              $region38: #{rotated_bbox_loss.1} parent=35 // loop_header
                %s277 = sphi 0, %s281
                %p278 = scmp.ge.s32.totalorder %s277, 1
                %s282 = sphi %s267, %s267
                %s283 = sphi %s265, %s265
              $region39: #{rotated_bbox_loss.1} parent=35 // loop_header_branch
                %280 = sbr.rel (%p278) target = $region43
              $region40: #{rotated_bbox_loss.1} parent=35 // loop_body
                %v284 = vld [vmem:[%s282] sm:%s275]
                %285 = vst [vmem:[%s283] sm:%s275] %v284
                %v286 = vld [vmem:[%s282 + $0x10] sm:%s275]
                %287 = vst [vmem:[%s283 + $0x8] sm:%s275] %v286
                %v288 = vld [vmem:[%s282 + $0x20] sm:%s275]
                %289 = vst [vmem:[%s283 + $0x10] sm:%s275] %v288
                %v290 = vld [vmem:[%s282 + $0x30] sm:%s275]
                %291 = vst [vmem:[%s283 + $0x18] sm:%s275] %v290
                %v292 = vld [vmem:[%s282 + $0x40] sm:%s275]
                %293 = vst [vmem:[%s283 + $0x20] sm:%s275] %v292
              $region41: #{rotated_bbox_loss.1} parent=35 // loop_footer
                %s281 = sadd.s32 1, %s277
              $region42: #{rotated_bbox_loss.1} parent=35 // loop_footer_branch
                %276 = sbr.rel target = $region38
              $region43: #{rotated_bbox_loss.1} parent=35 // loop_exit
                _
            $region36: #{rotated_bbox_loss.1} parent=27 // pred_fallthru
              _
          $region28: #{rotated_bbox_loss.1} parent=23 // pred_fallthru
            _
          %316 = vnop
        $region24: #{rotated_bbox_loss.1} parent=19 // pred_fallthru
          _
        // Predicated region
        $region59: #{rotated_bbox_loss.1} parent=19 // pred_check
          %p317 = pneg %p85
        $region60: #{rotated_bbox_loss.1} parent=19 // pred_check_branch
          %319 = sbr.rel (%p317) target = $region62
        $region61: #{rotated_bbox_loss.1} parent=19 // pred_region
          %s320 = sand.u32 %s75, 1
          %s321 = sand.u32 %s75, 1
          %s322 = smul.addr %s321, 40
          %s323 = scalar_lea.vmem [#allocation6], %s322
          %s324 = smul.addr %s18, 8
          %s325 = scalar_lea.vmem %s2, %s324
          // Predicated region
          $region63: #{rotated_bbox_loss.1} parent=61 // pred_check
            _
          $region64: #{rotated_bbox_loss.1} parent=61 // pred_check_branch
            %327 = sbr.rel (0) target = $region66
          $region65: #{rotated_bbox_loss.1} parent=61 // pred_region
            // Predicated region
            $region67: #{rotated_bbox_loss.1} parent=65 // pred_check
              _
            $region68: #{rotated_bbox_loss.1} parent=65 // pred_check_branch
              %329 = sbr.rel (0) target = $region70
            $region69: #{rotated_bbox_loss.1} parent=65 // pred_region
              // Predicated region
              $region82: #{rotated_bbox_loss.1} parent=69 // pred_check
                _
              $region83: #{rotated_bbox_loss.1} parent=69 // pred_check_branch
                %353 = sbr.rel (0) target = $region85
              $region84: #{rotated_bbox_loss.1} parent=69 // pred_region
                loop: start=0, step=1, limit=1
                $region86: #{rotated_bbox_loss.1} parent=84 // loop_pre_header
                  _
                $region87: #{rotated_bbox_loss.1} parent=84 // loop_header
                  %s355 = sphi 0, %s359
                  %p356 = scmp.ge.s32.totalorder %s355, 1
                  %s360 = sphi %s325, %s325
                  %s361 = sphi %s323, %s323
                $region88: #{rotated_bbox_loss.1} parent=84 // loop_header_branch
                  %358 = sbr.rel (%p356) target = $region92
                $region89: #{rotated_bbox_loss.1} parent=84 // loop_body
                  %v362 = vld [vmem:[%s360] sm:$0xff]
                  %363 = vst [vmem:[%s361] sm:$0xff] %v362
                  %v364 = vld [vmem:[%s360 + $0x10] sm:$0xff]
                  %365 = vst [vmem:[%s361 + $0x8] sm:$0xff] %v364
                  %v366 = vld [vmem:[%s360 + $0x20] sm:$0xff]
                  %367 = vst [vmem:[%s361 + $0x10] sm:$0xff] %v366
                  %v368 = vld [vmem:[%s360 + $0x30] sm:$0xff]
                  %369 = vst [vmem:[%s361 + $0x18] sm:$0xff] %v368
                  %v370 = vld [vmem:[%s360 + $0x40] sm:$0xff]
                  %371 = vst [vmem:[%s361 + $0x20] sm:$0xff] %v370
                $region90: #{rotated_bbox_loss.1} parent=84 // loop_footer
                  %s359 = sadd.s32 1, %s355
                $region91: #{rotated_bbox_loss.1} parent=84 // loop_footer_branch
                  %354 = sbr.rel target = $region87
                $region92: #{rotated_bbox_loss.1} parent=84 // loop_exit
                  _
              $region85: #{rotated_bbox_loss.1} parent=69 // pred_fallthru
                _
              // Predicated region
              $region93: #{rotated_bbox_loss.1} parent=69 // pred_check
                _
              $region94: #{rotated_bbox_loss.1} parent=69 // pred_check_branch
                %373 = sbr.rel target = $region96
              $region95: #{rotated_bbox_loss.1} parent=69 // pred_region
                _
              $region96: #{rotated_bbox_loss.1} parent=69 // pred_fallthru
                _
            $region70: #{rotated_bbox_loss.1} parent=65 // pred_fallthru
              _
            // Predicated region
            $region71: #{rotated_bbox_loss.1} parent=65 // pred_check
              _
            $region72: #{rotated_bbox_loss.1} parent=65 // pred_check_branch
              %331 = sbr.rel target = $region74
            $region73: #{rotated_bbox_loss.1} parent=65 // pred_region
              %s333 = ssub.s32 256, 1
              loop: start=0, step=1, limit=1
              $region75: #{rotated_bbox_loss.1} parent=73 // loop_pre_header
                _
              $region76: #{rotated_bbox_loss.1} parent=73 // loop_header
                %s335 = sphi 0, %s339
                %p336 = scmp.ge.s32.totalorder %s335, 1
                %s340 = sphi %s325, %s325
                %s341 = sphi %s323, %s323
              $region77: #{rotated_bbox_loss.1} parent=73 // loop_header_branch
                %338 = sbr.rel (%p336) target = $region81
              $region78: #{rotated_bbox_loss.1} parent=73 // loop_body
                %v342 = vld [vmem:[%s340] sm:%s333]
                %343 = vst [vmem:[%s341] sm:%s333] %v342
                %v344 = vld [vmem:[%s340 + $0x10] sm:%s333]
                %345 = vst [vmem:[%s341 + $0x8] sm:%s333] %v344
                %v346 = vld [vmem:[%s340 + $0x20] sm:%s333]
                %347 = vst [vmem:[%s341 + $0x10] sm:%s333] %v346
                %v348 = vld [vmem:[%s340 + $0x30] sm:%s333]
                %349 = vst [vmem:[%s341 + $0x18] sm:%s333] %v348
                %v350 = vld [vmem:[%s340 + $0x40] sm:%s333]
                %351 = vst [vmem:[%s341 + $0x20] sm:%s333] %v350
              $region79: #{rotated_bbox_loss.1} parent=73 // loop_footer
                %s339 = sadd.s32 1, %s335
              $region80: #{rotated_bbox_loss.1} parent=73 // loop_footer_branch
                %334 = sbr.rel target = $region76
              $region81: #{rotated_bbox_loss.1} parent=73 // loop_exit
                _
            $region74: #{rotated_bbox_loss.1} parent=65 // pred_fallthru
              _
          $region66: #{rotated_bbox_loss.1} parent=61 // pred_fallthru
            _
          %374 = vnop
        $region62: #{rotated_bbox_loss.1} parent=19 // pred_fallthru
          _
        // Predicated region
        $region97: #{rotated_bbox_loss.1} parent=19 // pred_check
          %p375 = pneg %p111
        $region98: #{rotated_bbox_loss.1} parent=19 // pred_check_branch
          %377 = sbr.rel (%p375) target = $region100
        $region99: #{rotated_bbox_loss.1} parent=19 // pred_region
          %s378 = sand.u32 %s101, 1
          %s379 = sand.u32 %s101, 1
          %s380 = smul.addr %s379, 16
          %s381 = scalar_lea.vmem [#allocation7], %s380
          %s382 = smul.addr %s18, 8
          %s383 = scalar_lea.vmem %s3, %s382
          // Predicated region
          $region101: #{rotated_bbox_loss.1} parent=99 // pred_check
            _
          $region102: #{rotated_bbox_loss.1} parent=99 // pred_check_branch
            %385 = sbr.rel (0) target = $region104
          $region103: #{rotated_bbox_loss.1} parent=99 // pred_region
            // Predicated region
            $region105: #{rotated_bbox_loss.1} parent=103 // pred_check
              _
            $region106: #{rotated_bbox_loss.1} parent=103 // pred_check_branch
              %387 = sbr.rel (0) target = $region108
            $region107: #{rotated_bbox_loss.1} parent=103 // pred_region
              // Predicated region
              $region120: #{rotated_bbox_loss.1} parent=107 // pred_check
                _
              $region121: #{rotated_bbox_loss.1} parent=107 // pred_check_branch
                %405 = sbr.rel (0) target = $region123
              $region122: #{rotated_bbox_loss.1} parent=107 // pred_region
                loop: start=0, step=1, limit=1
                $region124: #{rotated_bbox_loss.1} parent=122 // loop_pre_header
                  _
                $region125: #{rotated_bbox_loss.1} parent=122 // loop_header
                  %s407 = sphi 0, %s411
                  %p408 = scmp.ge.s32.totalorder %s407, 1
                  %s412 = sphi %s383, %s383
                  %s413 = sphi %s381, %s381
                $region126: #{rotated_bbox_loss.1} parent=122 // loop_header_branch
                  %410 = sbr.rel (%p408) target = $region130
                $region127: #{rotated_bbox_loss.1} parent=122 // loop_body
                  %v414 = vld [vmem:[%s412] sm:$0xff]
                  %415 = vst [vmem:[%s413] sm:$0xff] %v414
                  %v416 = vld [vmem:[%s412 + $0x10] sm:$0xff]
                  %417 = vst [vmem:[%s413 + $0x8] sm:$0xff] %v416
                $region128: #{rotated_bbox_loss.1} parent=122 // loop_footer
                  %s411 = sadd.s32 1, %s407
                $region129: #{rotated_bbox_loss.1} parent=122 // loop_footer_branch
                  %406 = sbr.rel target = $region125
                $region130: #{rotated_bbox_loss.1} parent=122 // loop_exit
                  _
              $region123: #{rotated_bbox_loss.1} parent=107 // pred_fallthru
                _
              // Predicated region
              $region131: #{rotated_bbox_loss.1} parent=107 // pred_check
                _
              $region132: #{rotated_bbox_loss.1} parent=107 // pred_check_branch
                %419 = sbr.rel target = $region134
              $region133: #{rotated_bbox_loss.1} parent=107 // pred_region
                _
              $region134: #{rotated_bbox_loss.1} parent=107 // pred_fallthru
                _
            $region108: #{rotated_bbox_loss.1} parent=103 // pred_fallthru
              _
            // Predicated region
            $region109: #{rotated_bbox_loss.1} parent=103 // pred_check
              _
            $region110: #{rotated_bbox_loss.1} parent=103 // pred_check_branch
              %389 = sbr.rel target = $region112
            $region111: #{rotated_bbox_loss.1} parent=103 // pred_region
              %s391 = ssub.s32 256, 1
              loop: start=0, step=1, limit=1
              $region113: #{rotated_bbox_loss.1} parent=111 // loop_pre_header
                _
              $region114: #{rotated_bbox_loss.1} parent=111 // loop_header
                %s393 = sphi 0, %s397
                %p394 = scmp.ge.s32.totalorder %s393, 1
                %s398 = sphi %s383, %s383
                %s399 = sphi %s381, %s381
              $region115: #{rotated_bbox_loss.1} parent=111 // loop_header_branch
                %396 = sbr.rel (%p394) target = $region119
              $region116: #{rotated_bbox_loss.1} parent=111 // loop_body
                %v400 = vld [vmem:[%s398] sm:%s391]
                %401 = vst [vmem:[%s399] sm:%s391] %v400
                %v402 = vld [vmem:[%s398 + $0x10] sm:%s391]
                %403 = vst [vmem:[%s399 + $0x8] sm:%s391] %v402
              $region117: #{rotated_bbox_loss.1} parent=111 // loop_footer
                %s397 = sadd.s32 1, %s393
              $region118: #{rotated_bbox_loss.1} parent=111 // loop_footer_branch
                %392 = sbr.rel target = $region114
              $region119: #{rotated_bbox_loss.1} parent=111 // loop_exit
                _
            $region112: #{rotated_bbox_loss.1} parent=103 // pred_fallthru
              _
          $region104: #{rotated_bbox_loss.1} parent=99 // pred_fallthru
            _
          %420 = vnop
        $region100: #{rotated_bbox_loss.1} parent=19 // pred_fallthru
          _
        // Predicated region
        $region135: #{rotated_bbox_loss.1} parent=19 // pred_check
          %p421 = pneg %p137
        $region136: #{rotated_bbox_loss.1} parent=19 // pred_check_branch
          %423 = sbr.rel (%p421) target = $region138
        $region137: #{rotated_bbox_loss.1} parent=19 // pred_region
          %s424 = sand.u32 %s127, 1
          %s425 = sand.u32 %s127, 1
          %s426 = smul.addr %s425, 32
          %s427 = scalar_lea.vmem [#allocation8], %s426
          %s428 = smul.addr %s18, 8
          %s429 = scalar_lea.vmem %s4, %s428
          // Predicated region
          $region139: #{rotated_bbox_loss.1} parent=137 // pred_check
            _
          $region140: #{rotated_bbox_loss.1} parent=137 // pred_check_branch
            %431 = sbr.rel (0) target = $region142
          $region141: #{rotated_bbox_loss.1} parent=137 // pred_region
            // Predicated region
            $region143: #{rotated_bbox_loss.1} parent=141 // pred_check
              _
            $region144: #{rotated_bbox_loss.1} parent=141 // pred_check_branch
              %433 = sbr.rel (0) target = $region146
            $region145: #{rotated_bbox_loss.1} parent=141 // pred_region
              // Predicated region
              $region158: #{rotated_bbox_loss.1} parent=145 // pred_check
                _
              $region159: #{rotated_bbox_loss.1} parent=145 // pred_check_branch
                %455 = sbr.rel (0) target = $region161
              $region160: #{rotated_bbox_loss.1} parent=145 // pred_region
                loop: start=0, step=1, limit=1
                $region162: #{rotated_bbox_loss.1} parent=160 // loop_pre_header
                  _
                $region163: #{rotated_bbox_loss.1} parent=160 // loop_header
                  %s457 = sphi 0, %s461
                  %p458 = scmp.ge.s32.totalorder %s457, 1
                  %s462 = sphi %s429, %s429
                  %s463 = sphi %s427, %s427
                $region164: #{rotated_bbox_loss.1} parent=160 // loop_header_branch
                  %460 = sbr.rel (%p458) target = $region168
                $region165: #{rotated_bbox_loss.1} parent=160 // loop_body
                  %v464 = vld [vmem:[%s462] sm:$0xff]
                  %465 = vst [vmem:[%s463] sm:$0xff] %v464
                  %v466 = vld [vmem:[%s462 + $0x10] sm:$0xff]
                  %467 = vst [vmem:[%s463 + $0x8] sm:$0xff] %v466
                  %v468 = vld [vmem:[%s462 + $0x20] sm:$0xff]
                  %469 = vst [vmem:[%s463 + $0x10] sm:$0xff] %v468
                  %v470 = vld [vmem:[%s462 + $0x30] sm:$0xff]
                  %471 = vst [vmem:[%s463 + $0x18] sm:$0xff] %v470
                $region166: #{rotated_bbox_loss.1} parent=160 // loop_footer
                  %s461 = sadd.s32 1, %s457
                $region167: #{rotated_bbox_loss.1} parent=160 // loop_footer_branch
                  %456 = sbr.rel target = $region163
                $region168: #{rotated_bbox_loss.1} parent=160 // loop_exit
                  _
              $region161: #{rotated_bbox_loss.1} parent=145 // pred_fallthru
                _
              // Predicated region
              $region169: #{rotated_bbox_loss.1} parent=145 // pred_check
                _
              $region170: #{rotated_bbox_loss.1} parent=145 // pred_check_branch
                %473 = sbr.rel target = $region172
              $region171: #{rotated_bbox_loss.1} parent=145 // pred_region
                _
              $region172: #{rotated_bbox_loss.1} parent=145 // pred_fallthru
                _
            $region146: #{rotated_bbox_loss.1} parent=141 // pred_fallthru
              _
            // Predicated region
            $region147: #{rotated_bbox_loss.1} parent=141 // pred_check
              _
            $region148: #{rotated_bbox_loss.1} parent=141 // pred_check_branch
              %435 = sbr.rel target = $region150
            $region149: #{rotated_bbox_loss.1} parent=141 // pred_region
              %s437 = ssub.s32 256, 1
              loop: start=0, step=1, limit=1
              $region151: #{rotated_bbox_loss.1} parent=149 // loop_pre_header
                _
              $region152: #{rotated_bbox_loss.1} parent=149 // loop_header
                %s439 = sphi 0, %s443
                %p440 = scmp.ge.s32.totalorder %s439, 1
                %s444 = sphi %s429, %s429
                %s445 = sphi %s427, %s427
              $region153: #{rotated_bbox_loss.1} parent=149 // loop_header_branch
                %442 = sbr.rel (%p440) target = $region157
              $region154: #{rotated_bbox_loss.1} parent=149 // loop_body
                %v446 = vld [vmem:[%s444] sm:%s437]
                %447 = vst [vmem:[%s445] sm:%s437] %v446
                %v448 = vld [vmem:[%s444 + $0x10] sm:%s437]
                %449 = vst [vmem:[%s445 + $0x8] sm:%s437] %v448
                %v450 = vld [vmem:[%s444 + $0x20] sm:%s437]
                %451 = vst [vmem:[%s445 + $0x10] sm:%s437] %v450
                %v452 = vld [vmem:[%s444 + $0x30] sm:%s437]
                %453 = vst [vmem:[%s445 + $0x18] sm:%s437] %v452
              $region155: #{rotated_bbox_loss.1} parent=149 // loop_footer
                %s443 = sadd.s32 1, %s439
              $region156: #{rotated_bbox_loss.1} parent=149 // loop_footer_branch
                %438 = sbr.rel target = $region152
              $region157: #{rotated_bbox_loss.1} parent=149 // loop_exit
                _
            $region150: #{rotated_bbox_loss.1} parent=141 // pred_fallthru
              _
          $region142: #{rotated_bbox_loss.1} parent=137 // pred_fallthru
            _
          %474 = vnop
        $region138: #{rotated_bbox_loss.1} parent=19 // pred_fallthru
          _
        // Predicated region
        $region173: #{rotated_bbox_loss.1} parent=19 // pred_check
          %p475 = pneg %p163
        $region174: #{rotated_bbox_loss.1} parent=19 // pred_check_branch
          %477 = sbr.rel (%p475) target = $region176
        $region175: #{rotated_bbox_loss.1} parent=19 // pred_region
          %p478 = scmp.lt.s32.totalorder %s18, 1
          %s479 = scalar_select %p478, %s18, 1
          %s480 = smul.addr %s479, 8
          %s481 = scalar_lea.vmem %s5, %s480
        $region176: #{rotated_bbox_loss.1} parent=19 // pred_fallthru
          _
        // Predicated region
        $region177: #{rotated_bbox_loss.1} parent=19 // pred_check
          %p482 = pneg %p189
        $region178: #{rotated_bbox_loss.1} parent=19 // pred_check_branch
          %484 = sbr.rel (%p482) target = $region180
        $region179: #{rotated_bbox_loss.1} parent=19 // pred_region
          %s485 = sand.u32 %s179, 1
          %s486 = sand.u32 %s179, 1
          %s487 = smul.addr %s486, 512
          %s488 = scalar_lea.vmem [#allocation9], %s487
          %s489 = smul.addr %s18, 8
          %s490 = scalar_lea.vmem %s6, %s489
          // Predicated region
          $region181: #{rotated_bbox_loss.1} parent=179 // pred_check
            _
          $region182: #{rotated_bbox_loss.1} parent=179 // pred_check_branch
            %492 = sbr.rel (0) target = $region184
          $region183: #{rotated_bbox_loss.1} parent=179 // pred_region
            // Predicated region
            $region185: #{rotated_bbox_loss.1} parent=183 // pred_check
              _
            $region186: #{rotated_bbox_loss.1} parent=183 // pred_check_branch
              %494 = sbr.rel (0) target = $region188
            $region187: #{rotated_bbox_loss.1} parent=183 // pred_region
              // Predicated region
              $region200: #{rotated_bbox_loss.1} parent=187 // pred_check
                _
              $region201: #{rotated_bbox_loss.1} parent=187 // pred_check_branch
                %636 = sbr.rel (0) target = $region203
              $region202: #{rotated_bbox_loss.1} parent=187 // pred_region
                loop: start=0, step=1, limit=1
                $region204: #{rotated_bbox_loss.1} parent=202 // loop_pre_header
                  _
                $region205: #{rotated_bbox_loss.1} parent=202 // loop_header
                  %s638 = sphi 0, %s642
                  %p639 = scmp.ge.s32.totalorder %s638, 1
                  %s643 = sphi %s490, %s490
                  %s644 = sphi %s488, %s488
                $region206: #{rotated_bbox_loss.1} parent=202 // loop_header_branch
                  %641 = sbr.rel (%p639) target = $region210
                $region207: #{rotated_bbox_loss.1} parent=202 // loop_body
                  %v645 = vld [vmem:[%s643] sm:$0xff]
                  %646 = vst [vmem:[%s644] sm:$0xff] %v645
                  %v647 = vld [vmem:[%s643 + $0x10] sm:$0xff]
                  %648 = vst [vmem:[%s644 + $0x8] sm:$0xff] %v647
                  %v649 = vld [vmem:[%s643 + $0x20] sm:$0xff]
                  %650 = vst [vmem:[%s644 + $0x10] sm:$0xff] %v649
                  %v651 = vld [vmem:[%s643 + $0x30] sm:$0xff]
                  %652 = vst [vmem:[%s644 + $0x18] sm:$0xff] %v651
                  %v653 = vld [vmem:[%s643 + $0x40] sm:$0xff]
                  %654 = vst [vmem:[%s644 + $0x20] sm:$0xff] %v653
                  %v655 = vld [vmem:[%s643 + $0x50] sm:$0xff]
                  %656 = vst [vmem:[%s644 + $0x28] sm:$0xff] %v655
                  %v657 = vld [vmem:[%s643 + $0x60] sm:$0xff]
                  %658 = vst [vmem:[%s644 + $0x30] sm:$0xff] %v657
                  %v659 = vld [vmem:[%s643 + $0x70] sm:$0xff]
                  %660 = vst [vmem:[%s644 + $0x38] sm:$0xff] %v659
                  %v661 = vld [vmem:[%s643 + $0x80] sm:$0xff]
                  %662 = vst [vmem:[%s644 + $0x40] sm:$0xff] %v661
                  %v663 = vld [vmem:[%s643 + $0x90] sm:$0xff]
                  %664 = vst [vmem:[%s644 + $0x48] sm:$0xff] %v663
                  %v665 = vld [vmem:[%s643 + $0xa0] sm:$0xff]
                  %666 = vst [vmem:[%s644 + $0x50] sm:$0xff] %v665
                  %v667 = vld [vmem:[%s643 + $0xb0] sm:$0xff]
                  %668 = vst [vmem:[%s644 + $0x58] sm:$0xff] %v667
                  %v669 = vld [vmem:[%s643 + $0xc0] sm:$0xff]
                  %670 = vst [vmem:[%s644 + $0x60] sm:$0xff] %v669
                  %v671 = vld [vmem:[%s643 + $0xd0] sm:$0xff]
                  %672 = vst [vmem:[%s644 + $0x68] sm:$0xff] %v671
                  %v673 = vld [vmem:[%s643 + $0xe0] sm:$0xff]
                  %674 = vst [vmem:[%s644 + $0x70] sm:$0xff] %v673
                  %v675 = vld [vmem:[%s643 + $0xf0] sm:$0xff]
                  %676 = vst [vmem:[%s644 + $0x78] sm:$0xff] %v675
                  %v677 = vld [vmem:[%s643 + $0x100] sm:$0xff]
                  %678 = vst [vmem:[%s644 + $0x80] sm:$0xff] %v677
                  %v679 = vld [vmem:[%s643 + $0x110] sm:$0xff]
                  %680 = vst [vmem:[%s644 + $0x88] sm:$0xff] %v679
                  %v681 = vld [vmem:[%s643 + $0x120] sm:$0xff]
                  %682 = vst [vmem:[%s644 + $0x90] sm:$0xff] %v681
                  %v683 = vld [vmem:[%s643 + $0x130] sm:$0xff]
                  %684 = vst [vmem:[%s644 + $0x98] sm:$0xff] %v683
                  %v685 = vld [vmem:[%s643 + $0x140] sm:$0xff]
                  %686 = vst [vmem:[%s644 + $0xa0] sm:$0xff] %v685
                  %v687 = vld [vmem:[%s643 + $0x150] sm:$0xff]
                  %688 = vst [vmem:[%s644 + $0xa8] sm:$0xff] %v687
                  %v689 = vld [vmem:[%s643 + $0x160] sm:$0xff]
                  %690 = vst [vmem:[%s644 + $0xb0] sm:$0xff] %v689
                  %v691 = vld [vmem:[%s643 + $0x170] sm:$0xff]
                  %692 = vst [vmem:[%s644 + $0xb8] sm:$0xff] %v691
                  %v693 = vld [vmem:[%s643 + $0x180] sm:$0xff]
                  %694 = vst [vmem:[%s644 + $0xc0] sm:$0xff] %v693
                  %v695 = vld [vmem:[%s643 + $0x190] sm:$0xff]
                  %696 = vst [vmem:[%s644 + $0xc8] sm:$0xff] %v695
                  %v697 = vld [vmem:[%s643 + $0x1a0] sm:$0xff]
                  %698 = vst [vmem:[%s644 + $0xd0] sm:$0xff] %v697
                  %v699 = vld [vmem:[%s643 + $0x1b0] sm:$0xff]
                  %700 = vst [vmem:[%s644 + $0xd8] sm:$0xff] %v699
                  %v701 = vld [vmem:[%s643 + $0x1c0] sm:$0xff]
                  %702 = vst [vmem:[%s644 + $0xe0] sm:$0xff] %v701
                  %v703 = vld [vmem:[%s643 + $0x1d0] sm:$0xff]
                  %704 = vst [vmem:[%s644 + $0xe8] sm:$0xff] %v703
                  %v705 = vld [vmem:[%s643 + $0x1e0] sm:$0xff]
                  %706 = vst [vmem:[%s644 + $0xf0] sm:$0xff] %v705
                  %v707 = vld [vmem:[%s643 + $0x1f0] sm:$0xff]
                  %708 = vst [vmem:[%s644 + $0xf8] sm:$0xff] %v707
                  %v709 = vld [vmem:[%s643 + $0x200] sm:$0xff]
                  %710 = vst [vmem:[%s644 + $0x100] sm:$0xff] %v709
                  %v711 = vld [vmem:[%s643 + $0x210] sm:$0xff]
                  %712 = vst [vmem:[%s644 + $0x108] sm:$0xff] %v711
                  %v713 = vld [vmem:[%s643 + $0x220] sm:$0xff]
                  %714 = vst [vmem:[%s644 + $0x110] sm:$0xff] %v713
                  %v715 = vld [vmem:[%s643 + $0x230] sm:$0xff]
                  %716 = vst [vmem:[%s644 + $0x118] sm:$0xff] %v715
                  %v717 = vld [vmem:[%s643 + $0x240] sm:$0xff]
                  %718 = vst [vmem:[%s644 + $0x120] sm:$0xff] %v717
                  %v719 = vld [vmem:[%s643 + $0x250] sm:$0xff]
                  %720 = vst [vmem:[%s644 + $0x128] sm:$0xff] %v719
                  %v721 = vld [vmem:[%s643 + $0x260] sm:$0xff]
                  %722 = vst [vmem:[%s644 + $0x130] sm:$0xff] %v721
                  %v723 = vld [vmem:[%s643 + $0x270] sm:$0xff]
                  %724 = vst [vmem:[%s644 + $0x138] sm:$0xff] %v723
                  %v725 = vld [vmem:[%s643 + $0x280] sm:$0xff]
                  %726 = vst [vmem:[%s644 + $0x140] sm:$0xff] %v725
                  %v727 = vld [vmem:[%s643 + $0x290] sm:$0xff]
                  %728 = vst [vmem:[%s644 + $0x148] sm:$0xff] %v727
                  %v729 = vld [vmem:[%s643 + $0x2a0] sm:$0xff]
                  %730 = vst [vmem:[%s644 + $0x150] sm:$0xff] %v729
                  %v731 = vld [vmem:[%s643 + $0x2b0] sm:$0xff]
                  %732 = vst [vmem:[%s644 + $0x158] sm:$0xff] %v731
                  %v733 = vld [vmem:[%s643 + $0x2c0] sm:$0xff]
                  %734 = vst [vmem:[%s644 + $0x160] sm:$0xff] %v733
                  %v735 = vld [vmem:[%s643 + $0x2d0] sm:$0xff]
                  %736 = vst [vmem:[%s644 + $0x168] sm:$0xff] %v735
                  %v737 = vld [vmem:[%s643 + $0x2e0] sm:$0xff]
                  %738 = vst [vmem:[%s644 + $0x170] sm:$0xff] %v737
                  %v739 = vld [vmem:[%s643 + $0x2f0] sm:$0xff]
                  %740 = vst [vmem:[%s644 + $0x178] sm:$0xff] %v739
                  %v741 = vld [vmem:[%s643 + $0x300] sm:$0xff]
                  %742 = vst [vmem:[%s644 + $0x180] sm:$0xff] %v741
                  %v743 = vld [vmem:[%s643 + $0x310] sm:$0xff]
                  %744 = vst [vmem:[%s644 + $0x188] sm:$0xff] %v743
                  %v745 = vld [vmem:[%s643 + $0x320] sm:$0xff]
                  %746 = vst [vmem:[%s644 + $0x190] sm:$0xff] %v745
                  %v747 = vld [vmem:[%s643 + $0x330] sm:$0xff]
                  %748 = vst [vmem:[%s644 + $0x198] sm:$0xff] %v747
                  %v749 = vld [vmem:[%s643 + $0x340] sm:$0xff]
                  %750 = vst [vmem:[%s644 + $0x1a0] sm:$0xff] %v749
                  %v751 = vld [vmem:[%s643 + $0x350] sm:$0xff]
                  %752 = vst [vmem:[%s644 + $0x1a8] sm:$0xff] %v751
                  %v753 = vld [vmem:[%s643 + $0x360] sm:$0xff]
                  %754 = vst [vmem:[%s644 + $0x1b0] sm:$0xff] %v753
                  %v755 = vld [vmem:[%s643 + $0x370] sm:$0xff]
                  %756 = vst [vmem:[%s644 + $0x1b8] sm:$0xff] %v755
                  %v757 = vld [vmem:[%s643 + $0x380] sm:$0xff]
                  %758 = vst [vmem:[%s644 + $0x1c0] sm:$0xff] %v757
                  %v759 = vld [vmem:[%s643 + $0x390] sm:$0xff]
                  %760 = vst [vmem:[%s644 + $0x1c8] sm:$0xff] %v759
                  %v761 = vld [vmem:[%s643 + $0x3a0] sm:$0xff]
                  %762 = vst [vmem:[%s644 + $0x1d0] sm:$0xff] %v761
                  %v763 = vld [vmem:[%s643 + $0x3b0] sm:$0xff]
                  %764 = vst [vmem:[%s644 + $0x1d8] sm:$0xff] %v763
                  %v765 = vld [vmem:[%s643 + $0x3c0] sm:$0xff]
                  %766 = vst [vmem:[%s644 + $0x1e0] sm:$0xff] %v765
                  %v767 = vld [vmem:[%s643 + $0x3d0] sm:$0xff]
                  %768 = vst [vmem:[%s644 + $0x1e8] sm:$0xff] %v767
                  %v769 = vld [vmem:[%s643 + $0x3e0] sm:$0xff]
                  %770 = vst [vmem:[%s644 + $0x1f0] sm:$0xff] %v769
                  %v771 = vld [vmem:[%s643 + $0x3f0] sm:$0xff]
                  %772 = vst [vmem:[%s644 + $0x1f8] sm:$0xff] %v771
                $region208: #{rotated_bbox_loss.1} parent=202 // loop_footer
                  %s642 = sadd.s32 1, %s638
                $region209: #{rotated_bbox_loss.1} parent=202 // loop_footer_branch
                  %637 = sbr.rel target = $region205
                $region210: #{rotated_bbox_loss.1} parent=202 // loop_exit
                  _
              $region203: #{rotated_bbox_loss.1} parent=187 // pred_fallthru
                _
              // Predicated region
              $region211: #{rotated_bbox_loss.1} parent=187 // pred_check
                _
              $region212: #{rotated_bbox_loss.1} parent=187 // pred_check_branch
                %774 = sbr.rel target = $region214
              $region213: #{rotated_bbox_loss.1} parent=187 // pred_region
                _
              $region214: #{rotated_bbox_loss.1} parent=187 // pred_fallthru
                _
            $region188: #{rotated_bbox_loss.1} parent=183 // pred_fallthru
              _
            // Predicated region
            $region189: #{rotated_bbox_loss.1} parent=183 // pred_check
              _
            $region190: #{rotated_bbox_loss.1} parent=183 // pred_check_branch
              %496 = sbr.rel target = $region192
            $region191: #{rotated_bbox_loss.1} parent=183 // pred_region
              %s498 = ssub.s32 256, 1
              loop: start=0, step=1, limit=1
              $region193: #{rotated_bbox_loss.1} parent=191 // loop_pre_header
                _
              $region194: #{rotated_bbox_loss.1} parent=191 // loop_header
                %s500 = sphi 0, %s504
                %p501 = scmp.ge.s32.totalorder %s500, 1
                %s505 = sphi %s490, %s490
                %s506 = sphi %s488, %s488
              $region195: #{rotated_bbox_loss.1} parent=191 // loop_header_branch
                %503 = sbr.rel (%p501) target = $region199
              $region196: #{rotated_bbox_loss.1} parent=191 // loop_body
                %v507 = vld [vmem:[%s505] sm:%s498]
                %508 = vst [vmem:[%s506] sm:%s498] %v507
                %v509 = vld [vmem:[%s505 + $0x10] sm:%s498]
                %510 = vst [vmem:[%s506 + $0x8] sm:%s498] %v509
                %v511 = vld [vmem:[%s505 + $0x20] sm:%s498]
                %512 = vst [vmem:[%s506 + $0x10] sm:%s498] %v511
                %v513 = vld [vmem:[%s505 + $0x30] sm:%s498]
                %514 = vst [vmem:[%s506 + $0x18] sm:%s498] %v513
                %v515 = vld [vmem:[%s505 + $0x40] sm:%s498]
                %516 = vst [vmem:[%s506 + $0x20] sm:%s498] %v515
                %v517 = vld [vmem:[%s505 + $0x50] sm:%s498]
                %518 = vst [vmem:[%s506 + $0x28] sm:%s498] %v517
                %v519 = vld [vmem:[%s505 + $0x60] sm:%s498]
                %520 = vst [vmem:[%s506 + $0x30] sm:%s498] %v519
                %v521 = vld [vmem:[%s505 + $0x70] sm:%s498]
                %522 = vst [vmem:[%s506 + $0x38] sm:%s498] %v521
                %v523 = vld [vmem:[%s505 + $0x80] sm:%s498]
                %524 = vst [vmem:[%s506 + $0x40] sm:%s498] %v523
                %v525 = vld [vmem:[%s505 + $0x90] sm:%s498]
                %526 = vst [vmem:[%s506 + $0x48] sm:%s498] %v525
                %v527 = vld [vmem:[%s505 + $0xa0] sm:%s498]
                %528 = vst [vmem:[%s506 + $0x50] sm:%s498] %v527
                %v529 = vld [vmem:[%s505 + $0xb0] sm:%s498]
                %530 = vst [vmem:[%s506 + $0x58] sm:%s498] %v529
                %v531 = vld [vmem:[%s505 + $0xc0] sm:%s498]
                %532 = vst [vmem:[%s506 + $0x60] sm:%s498] %v531
                %v533 = vld [vmem:[%s505 + $0xd0] sm:%s498]
                %534 = vst [vmem:[%s506 + $0x68] sm:%s498] %v533
                %v535 = vld [vmem:[%s505 + $0xe0] sm:%s498]
                %536 = vst [vmem:[%s506 + $0x70] sm:%s498] %v535
                %v537 = vld [vmem:[%s505 + $0xf0] sm:%s498]
                %538 = vst [vmem:[%s506 + $0x78] sm:%s498] %v537
                %v539 = vld [vmem:[%s505 + $0x100] sm:%s498]
                %540 = vst [vmem:[%s506 + $0x80] sm:%s498] %v539
                %v541 = vld [vmem:[%s505 + $0x110] sm:%s498]
                %542 = vst [vmem:[%s506 + $0x88] sm:%s498] %v541
                %v543 = vld [vmem:[%s505 + $0x120] sm:%s498]
                %544 = vst [vmem:[%s506 + $0x90] sm:%s498] %v543
                %v545 = vld [vmem:[%s505 + $0x130] sm:%s498]
                %546 = vst [vmem:[%s506 + $0x98] sm:%s498] %v545
                %v547 = vld [vmem:[%s505 + $0x140] sm:%s498]
                %548 = vst [vmem:[%s506 + $0xa0] sm:%s498] %v547
                %v549 = vld [vmem:[%s505 + $0x150] sm:%s498]
                %550 = vst [vmem:[%s506 + $0xa8] sm:%s498] %v549
                %v551 = vld [vmem:[%s505 + $0x160] sm:%s498]
                %552 = vst [vmem:[%s506 + $0xb0] sm:%s498] %v551
                %v553 = vld [vmem:[%s505 + $0x170] sm:%s498]
                %554 = vst [vmem:[%s506 + $0xb8] sm:%s498] %v553
                %v555 = vld [vmem:[%s505 + $0x180] sm:%s498]
                %556 = vst [vmem:[%s506 + $0xc0] sm:%s498] %v555
                %v557 = vld [vmem:[%s505 + $0x190] sm:%s498]
                %558 = vst [vmem:[%s506 + $0xc8] sm:%s498] %v557
                %v559 = vld [vmem:[%s505 + $0x1a0] sm:%s498]
                %560 = vst [vmem:[%s506 + $0xd0] sm:%s498] %v559
                %v561 = vld [vmem:[%s505 + $0x1b0] sm:%s498]
                %562 = vst [vmem:[%s506 + $0xd8] sm:%s498] %v561
                %v563 = vld [vmem:[%s505 + $0x1c0] sm:%s498]
                %564 = vst [vmem:[%s506 + $0xe0] sm:%s498] %v563
                %v565 = vld [vmem:[%s505 + $0x1d0] sm:%s498]
                %566 = vst [vmem:[%s506 + $0xe8] sm:%s498] %v565
                %v567 = vld [vmem:[%s505 + $0x1e0] sm:%s498]
                %568 = vst [vmem:[%s506 + $0xf0] sm:%s498] %v567
                %v569 = vld [vmem:[%s505 + $0x1f0] sm:%s498]
                %570 = vst [vmem:[%s506 + $0xf8] sm:%s498] %v569
                %v571 = vld [vmem:[%s505 + $0x200] sm:%s498]
                %572 = vst [vmem:[%s506 + $0x100] sm:%s498] %v571
                %v573 = vld [vmem:[%s505 + $0x210] sm:%s498]
                %574 = vst [vmem:[%s506 + $0x108] sm:%s498] %v573
                %v575 = vld [vmem:[%s505 + $0x220] sm:%s498]
                %576 = vst [vmem:[%s506 + $0x110] sm:%s498] %v575
                %v577 = vld [vmem:[%s505 + $0x230] sm:%s498]
                %578 = vst [vmem:[%s506 + $0x118] sm:%s498] %v577
                %v579 = vld [vmem:[%s505 + $0x240] sm:%s498]
                %580 = vst [vmem:[%s506 + $0x120] sm:%s498] %v579
                %v581 = vld [vmem:[%s505 + $0x250] sm:%s498]
                %582 = vst [vmem:[%s506 + $0x128] sm:%s498] %v581
                %v583 = vld [vmem:[%s505 + $0x260] sm:%s498]
                %584 = vst [vmem:[%s506 + $0x130] sm:%s498] %v583
                %v585 = vld [vmem:[%s505 + $0x270] sm:%s498]
                %586 = vst [vmem:[%s506 + $0x138] sm:%s498] %v585
                %v587 = vld [vmem:[%s505 + $0x280] sm:%s498]
                %588 = vst [vmem:[%s506 + $0x140] sm:%s498] %v587
                %v589 = vld [vmem:[%s505 + $0x290] sm:%s498]
                %590 = vst [vmem:[%s506 + $0x148] sm:%s498] %v589
                %v591 = vld [vmem:[%s505 + $0x2a0] sm:%s498]
                %592 = vst [vmem:[%s506 + $0x150] sm:%s498] %v591
                %v593 = vld [vmem:[%s505 + $0x2b0] sm:%s498]
                %594 = vst [vmem:[%s506 + $0x158] sm:%s498] %v593
                %v595 = vld [vmem:[%s505 + $0x2c0] sm:%s498]
                %596 = vst [vmem:[%s506 + $0x160] sm:%s498] %v595
                %v597 = vld [vmem:[%s505 + $0x2d0] sm:%s498]
                %598 = vst [vmem:[%s506 + $0x168] sm:%s498] %v597
                %v599 = vld [vmem:[%s505 + $0x2e0] sm:%s498]
                %600 = vst [vmem:[%s506 + $0x170] sm:%s498] %v599
                %v601 = vld [vmem:[%s505 + $0x2f0] sm:%s498]
                %602 = vst [vmem:[%s506 + $0x178] sm:%s498] %v601
                %v603 = vld [vmem:[%s505 + $0x300] sm:%s498]
                %604 = vst [vmem:[%s506 + $0x180] sm:%s498] %v603
                %v605 = vld [vmem:[%s505 + $0x310] sm:%s498]
                %606 = vst [vmem:[%s506 + $0x188] sm:%s498] %v605
                %v607 = vld [vmem:[%s505 + $0x320] sm:%s498]
                %608 = vst [vmem:[%s506 + $0x190] sm:%s498] %v607
                %v609 = vld [vmem:[%s505 + $0x330] sm:%s498]
                %610 = vst [vmem:[%s506 + $0x198] sm:%s498] %v609
                %v611 = vld [vmem:[%s505 + $0x340] sm:%s498]
                %612 = vst [vmem:[%s506 + $0x1a0] sm:%s498] %v611
                %v613 = vld [vmem:[%s505 + $0x350] sm:%s498]
                %614 = vst [vmem:[%s506 + $0x1a8] sm:%s498] %v613
                %v615 = vld [vmem:[%s505 + $0x360] sm:%s498]
                %616 = vst [vmem:[%s506 + $0x1b0] sm:%s498] %v615
                %v617 = vld [vmem:[%s505 + $0x370] sm:%s498]
                %618 = vst [vmem:[%s506 + $0x1b8] sm:%s498] %v617
                %v619 = vld [vmem:[%s505 + $0x380] sm:%s498]
                %620 = vst [vmem:[%s506 + $0x1c0] sm:%s498] %v619
                %v621 = vld [vmem:[%s505 + $0x390] sm:%s498]
                %622 = vst [vmem:[%s506 + $0x1c8] sm:%s498] %v621
                %v623 = vld [vmem:[%s505 + $0x3a0] sm:%s498]
                %624 = vst [vmem:[%s506 + $0x1d0] sm:%s498] %v623
                %v625 = vld [vmem:[%s505 + $0x3b0] sm:%s498]
                %626 = vst [vmem:[%s506 + $0x1d8] sm:%s498] %v625
                %v627 = vld [vmem:[%s505 + $0x3c0] sm:%s498]
                %628 = vst [vmem:[%s506 + $0x1e0] sm:%s498] %v627
                %v629 = vld [vmem:[%s505 + $0x3d0] sm:%s498]
                %630 = vst [vmem:[%s506 + $0x1e8] sm:%s498] %v629
                %v631 = vld [vmem:[%s505 + $0x3e0] sm:%s498]
                %632 = vst [vmem:[%s506 + $0x1f0] sm:%s498] %v631
                %v633 = vld [vmem:[%s505 + $0x3f0] sm:%s498]
                %634 = vst [vmem:[%s506 + $0x1f8] sm:%s498] %v633
              $region197: #{rotated_bbox_loss.1} parent=191 // loop_footer
                %s504 = sadd.s32 1, %s500
              $region198: #{rotated_bbox_loss.1} parent=191 // loop_footer_branch
                %499 = sbr.rel target = $region194
              $region199: #{rotated_bbox_loss.1} parent=191 // loop_exit
                _
            $region192: #{rotated_bbox_loss.1} parent=183 // pred_fallthru
              _
          $region184: #{rotated_bbox_loss.1} parent=179 // pred_fallthru
            _
          %775 = vnop
        $region180: #{rotated_bbox_loss.1} parent=19 // pred_fallthru
          _
      $region20: #{rotated_bbox_loss.1} parent=5 // pred_fallthru
        _
      %p776 = scmp.le.s32.totalorder 1, %s18
      %p777 = scmp.lt.s32.totalorder %s18, 3
      %p778 = pnand %p776, %p777
      %p779 = pneg %p778
      // Predicated region
      $region215: #{rotated_bbox_loss.1} parent=5 // pred_check
        _
      $region216: #{rotated_bbox_loss.1} parent=5 // pred_check_branch
        %781 = sbr.rel (%p778) target = $region218
      $region217: #{rotated_bbox_loss.1} parent=5 // pred_region
        %s782 = ssub.s32 %s18, 1
        %s783 = sand.u32 %s52, 1
        %s784 = sand.u32 %s52, 1
        %s785 = smul.addr %s784, 40
        %s786 = scalar_lea.vmem [#allocation5], %s785
        // Predicated region
        $region219: #{rotated_bbox_loss.1} parent=217 // pred_check
          %p787 = pneg %p65
        $region220: #{rotated_bbox_loss.1} parent=217 // pred_check_branch
          %789 = sbr.rel (%p787) target = $region222
        $region221: #{rotated_bbox_loss.1} parent=217 // pred_region
          _
        $region222: #{rotated_bbox_loss.1} parent=217 // pred_fallthru
          _
        %s790 = sand.u32 %s78, 1
        %s791 = sand.u32 %s78, 1
        %s792 = smul.addr %s791, 40
        %s793 = scalar_lea.vmem [#allocation6], %s792
        // Predicated region
        $region223: #{rotated_bbox_loss.1} parent=217 // pred_check
          %p794 = pneg %p91
        $region224: #{rotated_bbox_loss.1} parent=217 // pred_check_branch
          %796 = sbr.rel (%p794) target = $region226
        $region225: #{rotated_bbox_loss.1} parent=217 // pred_region
          _
        $region226: #{rotated_bbox_loss.1} parent=217 // pred_fallthru
          _
        %s797 = sand.u32 %s104, 1
        %s798 = sand.u32 %s104, 1
        %s799 = smul.addr %s798, 16
        %s800 = scalar_lea.vmem [#allocation7], %s799
        // Predicated region
        $region227: #{rotated_bbox_loss.1} parent=217 // pred_check
          %p801 = pneg %p117
        $region228: #{rotated_bbox_loss.1} parent=217 // pred_check_branch
          %803 = sbr.rel (%p801) target = $region230
        $region229: #{rotated_bbox_loss.1} parent=217 // pred_region
          _
        $region230: #{rotated_bbox_loss.1} parent=217 // pred_fallthru
          _
        %s804 = sand.u32 %s130, 1
        %s805 = sand.u32 %s130, 1
        %s806 = smul.addr %s805, 32
        %s807 = scalar_lea.vmem [#allocation8], %s806
        // Predicated region
        $region231: #{rotated_bbox_loss.1} parent=217 // pred_check
          %p808 = pneg %p143
        $region232: #{rotated_bbox_loss.1} parent=217 // pred_check_branch
          %810 = sbr.rel (%p808) target = $region234
        $region233: #{rotated_bbox_loss.1} parent=217 // pred_region
          _
        $region234: #{rotated_bbox_loss.1} parent=217 // pred_fallthru
          _
        %s811 = sand.u32 %s182, 1
        %s812 = sand.u32 %s182, 1
        %s813 = smul.addr %s812, 512
        %s814 = scalar_lea.vmem [#allocation9], %s813
        // Predicated region
        $region235: #{rotated_bbox_loss.1} parent=217 // pred_check
          %p815 = pneg %p195
        $region236: #{rotated_bbox_loss.1} parent=217 // pred_check_branch
          %817 = sbr.rel (%p815) target = $region238
        $region237: #{rotated_bbox_loss.1} parent=217 // pred_region
          _
        $region238: #{rotated_bbox_loss.1} parent=217 // pred_fallthru
          _
        %p818 = pneg %p39
        %p819 = pneg %p36
        %s820 = sand.u32 %s52, 1
        %s821 = sand.u32 %s52, 1
        %s822 = smul.addr %s821, 40
        %s823 = scalar_lea.vmem [#allocation5], %s822
        %p824 = pneg %p65
        %p825 = pneg %p62
        %s826 = sand.u32 %s78, 1
        %s827 = sand.u32 %s78, 1
        %s828 = smul.addr %s827, 40
        %s829 = scalar_lea.vmem [#allocation6], %s828
        %p830 = pneg %p91
        %p831 = pneg %p88
        %s832 = sand.u32 %s104, 1
        %s833 = sand.u32 %s104, 1
        %s834 = smul.addr %s833, 16
        %s835 = scalar_lea.vmem [#allocation7], %s834
        %p836 = pneg %p117
        %p837 = pneg %p114
        %s838 = sand.u32 %s130, 1
        %s839 = sand.u32 %s130, 1
        %s840 = smul.addr %s839, 32
        %s841 = scalar_lea.vmem [#allocation8], %s840
        %p842 = pneg %p143
        %p843 = pneg %p140
        %p844 = scmp.lt.s32.totalorder %s23, 1
        %s845 = scalar_select %p844, %s23, 1
        %s846 = smul.addr %s845, 8
        %s847 = scalar_lea.vmem %s5, %s846
        %p848 = pneg %p169
        %p849 = pneg %p166
        %s850 = sand.u32 %s182, 1
        %s851 = sand.u32 %s182, 1
        %s852 = smul.addr %s851, 512
        %s853 = scalar_lea.vmem [#allocation9], %s852
        %p854 = pneg %p195
        %p855 = pneg %p192
        %p856 = pneg %p216
        %p857 = pneg %p213
        %p858 = pneg %p237
        %p859 = pneg %p234
        %p860 = scmp.lt.s32.totalorder %s23, 1
        %s861 = scalar_select %p860, %s23, 1
        %s862 = smul.addr %s861, 8
        %s863 = scalar_lea.vmem %s5, %s862
        %p864 = scmp.eq.s32.totalorder %s23, 0
        // Predicated region
        $region239: #{rotated_bbox_loss.1} parent=217 // pred_check
          %p865 = pneg %p864
        $region240: #{rotated_bbox_loss.1} parent=217 // pred_check_branch
          %867 = sbr.rel (%p865) target = $region242
        $region241: #{rotated_bbox_loss.1} parent=217 // pred_region
          %868 = vst [vmem:[#allocation2] sm:$0xff] 0.0
          %869 = vst [vmem:[#allocation3] sm:$0xff] 0.0
        $region242: #{rotated_bbox_loss.1} parent=217 // pred_fallthru
          _
        %v870 = vld [vmem:[%s863] sm:$0xff]
        %v871 = vld [vmem:[%s807] sm:$0xff]
        %v872 = vld [vmem:[%s807 + $0x8] sm:$0xff]
        %v873 = vld [vmem:[%s807 + $0x10] sm:$0xff]
        %v874 = vld [vmem:[%s807 + $0x18] sm:$0xff]
        %v875 = vadd.f32 %v871, %v872
        %v876 = vadd.f32 %v875, %v873
        %v877 = vadd.f32 %v876, %v874
        %v878 = vld [vmem:[%s786] sm:$0xff]
        %v879 = vld [vmem:[%s786 + $0x8] sm:$0xff]
        %v880 = vld [vmem:[%s786 + $0x10] sm:$0xff]
        %v881 = vld [vmem:[%s786 + $0x18] sm:$0xff]
        %v882 = vld [vmem:[%s786 + $0x20] sm:$0xff]
        %v883 = vld [vmem:[%s793] sm:$0xff]
        %v884 = vld [vmem:[%s793 + $0x8] sm:$0xff]
        %v885 = vld [vmem:[%s793 + $0x10] sm:$0xff]
        %v886 = vld [vmem:[%s793 + $0x18] sm:$0xff]
        %v887 = vld [vmem:[%s793 + $0x20] sm:$0xff]
        %v888 = vmul.f32 %v880, %v880
        %v889 = vmul.f32 %v888, 0.083333336
        %v890 = vmul.f32 %v881, %v881
        %v891 = vmul.f32 %v890, 0.083333336
        %v892 = vand.u32 2147483647, %v882
        %vm893 = vcmp.le.f32.partialorder %v892, 0.7853982
        %vm894 = vcmp.lt.s32.totalorder %v882, 0
        %v895 = vand.u32 %v882, 2139095040
        %v896 = vshrl.u32 %v895, 23
        %v897 = vsub.s32 %v896, 127
        %v898 = vand.u32 2147483647, %v882
        %v899 = vand.u32 %v898, 8388607
        %v900 = vor.u32 %v899, 8388608
        %v901 = vsub.s32 0, %v900
        %v902 = vadd.s32 %v897, 1
        %vm903 = vcmp.gt.s32.totalorder %v902, 0
        %v904 = vsel %vm903, %v902, 0
        %v905 = vshrl.u32 %v904, 5
        %v906 = vand.u32 %v904, 31
        %v907 = vsub.s32 32, %v906
        %v908 = vshrl.u32 683565275, %v907
        %v909 = vshll.u32 683565275, %v906
        %v910 = vshrl.u32 2475754826, %v907
        %v911 = vor.u32 %v909, %v910
        %v912 = vshll.u32 2475754826, %v906
        %v913 = vshrl.u32 2131351028, %v907
        %v914 = vor.u32 %v912, %v913
        %v915 = vshll.u32 2131351028, %v906
        %v916 = vshrl.u32 2102212464, %v907
        %v917 = vor.u32 %v915, %v916
        %v918 = vshll.u32 2102212464, %v906
        %v919 = vshrl.u32 920167782, %v907
        %v920 = vor.u32 %v918, %v919
        %v921 = vshll.u32 920167782, %v906
        %v922 = vshrl.u32 1326507024, %v907
        %v923 = vor.u32 %v921, %v922
        %vm924 = vcmp.lt.s32.totalorder %v905, 1
        %vm925 = vcmp.lt.s32.totalorder %v905, 2
        %vm926 = vcmp.lt.s32.totalorder %v905, 3
        %vm927 = vcmp.lt.s32.totalorder %v905, 4
        %v928 = vsel %vm924, %v908, %v911
        %v929 = vsel %vm927, %v917, 2102212464
        %v930 = vsel %vm926, %v914, %v929
        %v931 = vsel %vm925, %v928, %v930
        %v932 = vsel %vm924, %v911, %v914
        %v933 = vsel %vm927, %v920, 920167782
        %v934 = vsel %vm926, %v917, %v933
        %v935 = vsel %vm925, %v932, %v934
        %v936 = vsel %vm924, %v914, %v917
        %v937 = vsel %vm927, %v923, 1326507024
        %v938 = vsel %vm926, %v920, %v937
        %v939 = vsel %vm925, %v936, %v938
        %v940 = vshll.u32 %v900, 8
        %v941 = vmul.u32.u64.compose %v940, %v939
        %v942 = vextract.low.u32 %v941
        %v943 = vextract.high.u32 %v941
        %v944 = vmul.u32.u64.compose %v940, %v935
        %v945 = vextract.low.u32 %v944
        %v946 = vextract.high.u32 %v944
        %v947 = vmul.u32 %v940, %v931
        %v948 = vadd.s32 %v943, %v945
        %vm949 = vc.u32 %v943, %v945
        %v950 = vadd.s32 %v946, 1
        %v951 = vsel %vm949, %v950, %v946
        %v952 = vadd.s32 %v947, %v951
        %v953 = vadd.s32 %v952, 536870912
        %v954 = vshrl.u32 %v953, 30
        %v955 = vshll.u32 %v954, 30
        %v956 = vsub.s32 %v952, %v955
        %vm957 = vcmp.lt.s32.totalorder %v956, 0
        %v958 = vsub.s32 0, %v956
        %v959 = vsel %vm957, %v958, %v956
        %v960 = vclz %v959
        %v961 = vsub.s32 %v960, 2
        %vm962 = vcmp.gt.s32.totalorder 0, %v961
        %v963 = vsel %vm962, 0, %v961
        %v964 = vsub.s32 32, %v963
        %v965 = vshll.u32 %v956, %v963
        %v966 = vshrl.u32 %v948, %v964
        %v967 = vor.u32 %v965, %v966
        %v968 = vsub.s32 4294967266, %v963
        %v969 = vadd.s32 %v968, 127
        %v970 = vshll.u32 %v969, 23
        %v971 = vor.u32 4788187, %v970
        %v972 = vand.u32 2147483647, %v971
        %v974 = vcvt.s32.f32 %v967
        %v975 = vmul.f32 %v974, %v972
        %v976 = vxor.u32 %v975, 2147483648
        %v977 = vsel %vm894, %v976, %v975
        %v978 = vsub.s32 4, %v954
        %v979 = vsel %vm894, %v978, %v954
        %v980 = vsel %vm893, %v882, %v977
        %v981 = vsel %vm893, 0, %v979
        %v982 = vcosq.f32.pop %v980
        %v983 = vsinq.f32.pop %v980
        %vm984 = vweird.f32 %v882
        %v985 = vand.u32 %v981, 3
        %vm986 = vcmp.lt.s32.totalorder %v985, 2
        %vm987 = vcmp.eq.s32.totalorder %v985, 0
        %v988 = vxor.u32 %v983, 2147483648
        %v989 = vsel %vm987, %v982, %v988
        %vm990 = vcmp.eq.s32.totalorder %v985, 2
        %v991 = vxor.u32 %v982, 2147483648
        %v992 = vsel %vm990, %v991, %v983
        %v993 = vsel %vm986, %v989, %v992
        %v994 = vsel %vm984, nan, %v993
        %v995 = vand.u32 2147483647, %v882
        %vm996 = vcmp.le.f32.partialorder %v995, 0.7853982
        %vm997 = vcmp.lt.s32.totalorder %v882, 0
        %v998 = vand.u32 %v882, 2139095040
        %v999 = vshrl.u32 %v998, 23
        %v1000 = vsub.s32 %v999, 127
        %v1001 = vand.u32 2147483647, %v882
        %v1002 = vand.u32 %v1001, 8388607
        %v1003 = vor.u32 %v1002, 8388608
        %v1004 = vsub.s32 0, %v1003
        %v1005 = vadd.s32 %v1000, 1
        %vm1006 = vcmp.gt.s32.totalorder %v1005, 0
        %v1007 = vsel %vm1006, %v1005, 0
        %v1008 = vshrl.u32 %v1007, 5
        %v1009 = vand.u32 %v1007, 31
        %v1010 = vsub.s32 32, %v1009
        %v1011 = vshrl.u32 683565275, %v1010
        %v1012 = vshll.u32 683565275, %v1009
        %v1013 = vshrl.u32 2475754826, %v1010
        %v1014 = vor.u32 %v1012, %v1013
        %v1015 = vshll.u32 2475754826, %v1009
        %v1016 = vshrl.u32 2131351028, %v1010
        %v1017 = vor.u32 %v1015, %v1016
        %v1018 = vshll.u32 2131351028, %v1009
        %v1019 = vshrl.u32 2102212464, %v1010
        %v1020 = vor.u32 %v1018, %v1019
        %v1021 = vshll.u32 2102212464, %v1009
        %v1022 = vshrl.u32 920167782, %v1010
        %v1023 = vor.u32 %v1021, %v1022
        %v1024 = vshll.u32 920167782, %v1009
        %v1025 = vshrl.u32 1326507024, %v1010
        %v1026 = vor.u32 %v1024, %v1025
        %vm1027 = vcmp.lt.s32.totalorder %v1008, 1
        %vm1028 = vcmp.lt.s32.totalorder %v1008, 2
        %vm1029 = vcmp.lt.s32.totalorder %v1008, 3
        %vm1030 = vcmp.lt.s32.totalorder %v1008, 4
        %v1031 = vsel %vm1027, %v1011, %v1014
        %v1032 = vsel %vm1030, %v1020, 2102212464
        %v1033 = vsel %vm1029, %v1017, %v1032
        %v1034 = vsel %vm1028, %v1031, %v1033
        %v1035 = vsel %vm1027, %v1014, %v1017
        %v1036 = vsel %vm1030, %v1023, 920167782
        %v1037 = vsel %vm1029, %v1020, %v1036
        %v1038 = vsel %vm1028, %v1035, %v1037
        %v1039 = vsel %vm1027, %v1017, %v1020
        %v1040 = vsel %vm1030, %v1026, 1326507024
        %v1041 = vsel %vm1029, %v1023, %v1040
        %v1042 = vsel %vm1028, %v1039, %v1041
        %v1043 = vshll.u32 %v1003, 8
        %v1044 = vmul.u32.u64.compose %v1043, %v1042
        %v1045 = vextract.low.u32 %v1044
        %v1046 = vextract.high.u32 %v1044
        %v1047 = vmul.u32.u64.compose %v1043, %v1038
        %v1048 = vextract.low.u32 %v1047
        %v1049 = vextract.high.u32 %v1047
        %v1050 = vmul.u32 %v1043, %v1034
        %v1051 = vadd.s32 %v1046, %v1048
        %vm1052 = vc.u32 %v1046, %v1048
        %v1053 = vadd.s32 %v1049, 1
        %v1054 = vsel %vm1052, %v1053, %v1049
        %v1055 = vadd.s32 %v1050, %v1054
        %v1056 = vadd.s32 %v1055, 536870912
        %v1057 = vshrl.u32 %v1056, 30
        %v1058 = vshll.u32 %v1057, 30
        %v1059 = vsub.s32 %v1055, %v1058
        %vm1060 = vcmp.lt.s32.totalorder %v1059, 0
        %v1061 = vsub.s32 0, %v1059
        %v1062 = vsel %vm1060, %v1061, %v1059
        %v1063 = vclz %v1062
        %v1064 = vsub.s32 %v1063, 2
        %vm1065 = vcmp.gt.s32.totalorder 0, %v1064
        %v1066 = vsel %vm1065, 0, %v1064
        %v1067 = vsub.s32 32, %v1066
        %v1068 = vshll.u32 %v1059, %v1066
        %v1069 = vshrl.u32 %v1051, %v1067
        %v1070 = vor.u32 %v1068, %v1069
        %v1071 = vsub.s32 4294967266, %v1066
        %v1072 = vadd.s32 %v1071, 127
        %v1073 = vshll.u32 %v1072, 23
        %v1074 = vor.u32 4788187, %v1073
        %v1075 = vand.u32 2147483647, %v1074
        %v1077 = vcvt.s32.f32 %v1070
        %v1078 = vmul.f32 %v1077, %v1075
        %v1079 = vxor.u32 %v1078, 2147483648
        %v1080 = vsel %vm997, %v1079, %v1078
        %v1081 = vsub.s32 4, %v1057
        %v1082 = vsel %vm997, %v1081, %v1057
        %v1083 = vsel %vm996, %v882, %v1080
        %v1084 = vsel %vm996, 0, %v1082
        %v1085 = vcosq.f32.pop %v1083
        %v1086 = vsinq.f32.pop %v1083
        %vm1087 = vweird.f32 %v882
        %v1088 = vadd.s32 %v1084, 3
        %v1089 = vand.u32 %v1088, 3
        %vm1090 = vcmp.lt.s32.totalorder %v1089, 2
        %vm1091 = vcmp.eq.s32.totalorder %v1089, 0
        %v1092 = vxor.u32 %v1086, 2147483648
        %v1093 = vsel %vm1091, %v1085, %v1092
        %vm1094 = vcmp.eq.s32.totalorder %v1089, 2
        %v1095 = vxor.u32 %v1085, 2147483648
        %v1096 = vsel %vm1094, %v1095, %v1086
        %v1097 = vsel %vm1090, %v1093, %v1096
        %v1098 = vsel %vm1087, nan, %v1097
        %v1099 = vmul.f32 %v889, %v994
        %v1100 = vmul.f32 %v1099, %v994
        %v1101 = vmul.f32 %v891, %v1098
        %v1102 = vmul.f32 %v1101, %v1098
        %v1103 = vadd.f32 %v1100, %v1102
        %v1104 = vmul.f32 %v889, %v1098
        %v1105 = vmul.f32 %v1104, %v1098
        %v1106 = vmul.f32 %v891, %v994
        %v1107 = vmul.f32 %v1106, %v994
        %v1108 = vadd.f32 %v1105, %v1107
        %v1109 = vsub.f32 %v889, %v891
        %v1110 = vmul.f32 %v1109, %v994
        %v1111 = vmul.f32 %v1110, %v1098
        %v1112 = vmul.f32 %v885, %v885
        %v1113 = vmul.f32 %v1112, 0.083333336
        %v1114 = vmul.f32 %v886, %v886
        %v1115 = vmul.f32 %v1114, 0.083333336
        %v1116 = vand.u32 2147483647, %v887
        %vm1117 = vcmp.le.f32.partialorder %v1116, 0.7853982
        %vm1118 = vcmp.lt.s32.totalorder %v887, 0
        %v1119 = vand.u32 %v887, 2139095040
        %v1120 = vshrl.u32 %v1119, 23
        %v1121 = vsub.s32 %v1120, 127
        %v1122 = vand.u32 2147483647, %v887
        %v1123 = vand.u32 %v1122, 8388607
        %v1124 = vor.u32 %v1123, 8388608
        %v1125 = vsub.s32 0, %v1124
        %v1126 = vadd.s32 %v1121, 1
        %vm1127 = vcmp.gt.s32.totalorder %v1126, 0
        %v1128 = vsel %vm1127, %v1126, 0
        %v1129 = vshrl.u32 %v1128, 5
        %v1130 = vand.u32 %v1128, 31
        %v1131 = vsub.s32 32, %v1130
        %v1132 = vshrl.u32 683565275, %v1131
        %v1133 = vshll.u32 683565275, %v1130
        %v1134 = vshrl.u32 2475754826, %v1131
        %v1135 = vor.u32 %v1133, %v1134
        %v1136 = vshll.u32 2475754826, %v1130
        %v1137 = vshrl.u32 2131351028, %v1131
        %v1138 = vor.u32 %v1136, %v1137
        %v1139 = vshll.u32 2131351028, %v1130
        %v1140 = vshrl.u32 2102212464, %v1131
        %v1141 = vor.u32 %v1139, %v1140
        %v1142 = vshll.u32 2102212464, %v1130
        %v1143 = vshrl.u32 920167782, %v1131
        %v1144 = vor.u32 %v1142, %v1143
        %v1145 = vshll.u32 920167782, %v1130
        %v1146 = vshrl.u32 1326507024, %v1131
        %v1147 = vor.u32 %v1145, %v1146
        %vm1148 = vcmp.lt.s32.totalorder %v1129, 1
        %vm1149 = vcmp.lt.s32.totalorder %v1129, 2
        %vm1150 = vcmp.lt.s32.totalorder %v1129, 3
        %vm1151 = vcmp.lt.s32.totalorder %v1129, 4
        %v1152 = vsel %vm1148, %v1132, %v1135
        %v1153 = vsel %vm1151, %v1141, 2102212464
        %v1154 = vsel %vm1150, %v1138, %v1153
        %v1155 = vsel %vm1149, %v1152, %v1154
        %v1156 = vsel %vm1148, %v1135, %v1138
        %v1157 = vsel %vm1151, %v1144, 920167782
        %v1158 = vsel %vm1150, %v1141, %v1157
        %v1159 = vsel %vm1149, %v1156, %v1158
        %v1160 = vsel %vm1148, %v1138, %v1141
        %v1161 = vsel %vm1151, %v1147, 1326507024
        %v1162 = vsel %vm1150, %v1144, %v1161
        %v1163 = vsel %vm1149, %v1160, %v1162
        %v1164 = vshll.u32 %v1124, 8
        %v1165 = vmul.u32.u64.compose %v1164, %v1163
        %v1166 = vextract.low.u32 %v1165
        %v1167 = vextract.high.u32 %v1165
        %v1168 = vmul.u32.u64.compose %v1164, %v1159
        %v1169 = vextract.low.u32 %v1168
        %v1170 = vextract.high.u32 %v1168
        %v1171 = vmul.u32 %v1164, %v1155
        %v1172 = vadd.s32 %v1167, %v1169
        %vm1173 = vc.u32 %v1167, %v1169
        %v1174 = vadd.s32 %v1170, 1
        %v1175 = vsel %vm1173, %v1174, %v1170
        %v1176 = vadd.s32 %v1171, %v1175
        %v1177 = vadd.s32 %v1176, 536870912
        %v1178 = vshrl.u32 %v1177, 30
        %v1179 = vshll.u32 %v1178, 30
        %v1180 = vsub.s32 %v1176, %v1179
        %vm1181 = vcmp.lt.s32.totalorder %v1180, 0
        %v1182 = vsub.s32 0, %v1180
        %v1183 = vsel %vm1181, %v1182, %v1180
        %v1184 = vclz %v1183
        %v1185 = vsub.s32 %v1184, 2
        %vm1186 = vcmp.gt.s32.totalorder 0, %v1185
        %v1187 = vsel %vm1186, 0, %v1185
        %v1188 = vsub.s32 32, %v1187
        %v1189 = vshll.u32 %v1180, %v1187
        %v1190 = vshrl.u32 %v1172, %v1188
        %v1191 = vor.u32 %v1189, %v1190
        %v1192 = vsub.s32 4294967266, %v1187
        %v1193 = vadd.s32 %v1192, 127
        %v1194 = vshll.u32 %v1193, 23
        %v1195 = vor.u32 4788187, %v1194
        %v1196 = vand.u32 2147483647, %v1195
        %v1198 = vcvt.s32.f32 %v1191
        %v1199 = vmul.f32 %v1198, %v1196
        %v1200 = vxor.u32 %v1199, 2147483648
        %v1201 = vsel %vm1118, %v1200, %v1199
        %v1202 = vsub.s32 4, %v1178
        %v1203 = vsel %vm1118, %v1202, %v1178
        %v1204 = vsel %vm1117, %v887, %v1201
        %v1205 = vsel %vm1117, 0, %v1203
        %v1206 = vcosq.f32.pop %v1204
        %v1207 = vsinq.f32.pop %v1204
        %vm1208 = vweird.f32 %v887
        %v1209 = vand.u32 %v1205, 3
        %vm1210 = vcmp.lt.s32.totalorder %v1209, 2
        %vm1211 = vcmp.eq.s32.totalorder %v1209, 0
        %v1212 = vxor.u32 %v1207, 2147483648
        %v1213 = vsel %vm1211, %v1206, %v1212
        %vm1214 = vcmp.eq.s32.totalorder %v1209, 2
        %v1215 = vxor.u32 %v1206, 2147483648
        %v1216 = vsel %vm1214, %v1215, %v1207
        %v1217 = vsel %vm1210, %v1213, %v1216
        %v1218 = vsel %vm1208, nan, %v1217
        %v1219 = vand.u32 2147483647, %v887
        %vm1220 = vcmp.le.f32.partialorder %v1219, 0.7853982
        %vm1221 = vcmp.lt.s32.totalorder %v887, 0
        %v1222 = vand.u32 %v887, 2139095040
        %v1223 = vshrl.u32 %v1222, 23
        %v1224 = vsub.s32 %v1223, 127
        %v1225 = vand.u32 2147483647, %v887
        %v1226 = vand.u32 %v1225, 8388607
        %v1227 = vor.u32 %v1226, 8388608
        %v1228 = vsub.s32 0, %v1227
        %v1229 = vadd.s32 %v1224, 1
        %vm1230 = vcmp.gt.s32.totalorder %v1229, 0
        %v1231 = vsel %vm1230, %v1229, 0
        %v1232 = vshrl.u32 %v1231, 5
        %v1233 = vand.u32 %v1231, 31
        %v1234 = vsub.s32 32, %v1233
        %v1235 = vshrl.u32 683565275, %v1234
        %v1236 = vshll.u32 683565275, %v1233
        %v1237 = vshrl.u32 2475754826, %v1234
        %v1238 = vor.u32 %v1236, %v1237
        %v1239 = vshll.u32 2475754826, %v1233
        %v1240 = vshrl.u32 2131351028, %v1234
        %v1241 = vor.u32 %v1239, %v1240
        %v1242 = vshll.u32 2131351028, %v1233
        %v1243 = vshrl.u32 2102212464, %v1234
        %v1244 = vor.u32 %v1242, %v1243
        %v1245 = vshll.u32 2102212464, %v1233
        %v1246 = vshrl.u32 920167782, %v1234
        %v1247 = vor.u32 %v1245, %v1246
        %v1248 = vshll.u32 920167782, %v1233
        %v1249 = vshrl.u32 1326507024, %v1234
        %v1250 = vor.u32 %v1248, %v1249
        %vm1251 = vcmp.lt.s32.totalorder %v1232, 1
        %vm1252 = vcmp.lt.s32.totalorder %v1232, 2
        %vm1253 = vcmp.lt.s32.totalorder %v1232, 3
        %vm1254 = vcmp.lt.s32.totalorder %v1232, 4
        %v1255 = vsel %vm1251, %v1235, %v1238
        %v1256 = vsel %vm1254, %v1244, 2102212464
        %v1257 = vsel %vm1253, %v1241, %v1256
        %v1258 = vsel %vm1252, %v1255, %v1257
        %v1259 = vsel %vm1251, %v1238, %v1241
        %v1260 = vsel %vm1254, %v1247, 920167782
        %v1261 = vsel %vm1253, %v1244, %v1260
        %v1262 = vsel %vm1252, %v1259, %v1261
        %v1263 = vsel %vm1251, %v1241, %v1244
        %v1264 = vsel %vm1254, %v1250, 1326507024
        %v1265 = vsel %vm1253, %v1247, %v1264
        %v1266 = vsel %vm1252, %v1263, %v1265
        %v1267 = vshll.u32 %v1227, 8
        %v1268 = vmul.u32.u64.compose %v1267, %v1266
        %v1269 = vextract.low.u32 %v1268
        %v1270 = vextract.high.u32 %v1268
        %v1271 = vmul.u32.u64.compose %v1267, %v1262
        %v1272 = vextract.low.u32 %v1271
        %v1273 = vextract.high.u32 %v1271
        %v1274 = vmul.u32 %v1267, %v1258
        %v1275 = vadd.s32 %v1270, %v1272
        %vm1276 = vc.u32 %v1270, %v1272
        %v1277 = vadd.s32 %v1273, 1
        %v1278 = vsel %vm1276, %v1277, %v1273
        %v1279 = vadd.s32 %v1274, %v1278
        %v1280 = vadd.s32 %v1279, 536870912
        %v1281 = vshrl.u32 %v1280, 30
        %v1282 = vshll.u32 %v1281, 30
        %v1283 = vsub.s32 %v1279, %v1282
        %vm1284 = vcmp.lt.s32.totalorder %v1283, 0
        %v1285 = vsub.s32 0, %v1283
        %v1286 = vsel %vm1284, %v1285, %v1283
        %v1287 = vclz %v1286
        %v1288 = vsub.s32 %v1287, 2
        %vm1289 = vcmp.gt.s32.totalorder 0, %v1288
        %v1290 = vsel %vm1289, 0, %v1288
        %v1291 = vsub.s32 32, %v1290
        %v1292 = vshll.u32 %v1283, %v1290
        %v1293 = vshrl.u32 %v1275, %v1291
        %v1294 = vor.u32 %v1292, %v1293
        %v1295 = vsub.s32 4294967266, %v1290
        %v1296 = vadd.s32 %v1295, 127
        %v1297 = vshll.u32 %v1296, 23
        %v1298 = vor.u32 4788187, %v1297
        %v1299 = vand.u32 2147483647, %v1298
        %v1301 = vcvt.s32.f32 %v1294
        %v1302 = vmul.f32 %v1301, %v1299
        %v1303 = vxor.u32 %v1302, 2147483648
        %v1304 = vsel %vm1221, %v1303, %v1302
        %v1305 = vsub.s32 4, %v1281
        %v1306 = vsel %vm1221, %v1305, %v1281
        %v1307 = vsel %vm1220, %v887, %v1304
        %v1308 = vsel %vm1220, 0, %v1306
        %v1309 = vcosq.f32.pop %v1307
        %v1310 = vsinq.f32.pop %v1307
        %vm1311 = vweird.f32 %v887
        %v1312 = vadd.s32 %v1308, 3
        %v1313 = vand.u32 %v1312, 3
        %vm1314 = vcmp.lt.s32.totalorder %v1313, 2
        %vm1315 = vcmp.eq.s32.totalorder %v1313, 0
        %v1316 = vxor.u32 %v1310, 2147483648
        %v1317 = vsel %vm1315, %v1309, %v1316
        %vm1318 = vcmp.eq.s32.totalorder %v1313, 2
        %v1319 = vxor.u32 %v1309, 2147483648
        %v1320 = vsel %vm1318, %v1319, %v1310
        %v1321 = vsel %vm1314, %v1317, %v1320
        %v1322 = vsel %vm1311, nan, %v1321
        %v1323 = vmul.f32 %v1113, %v1218
        %v1324 = vmul.f32 %v1323, %v1218
        %v1325 = vmul.f32 %v1115, %v1322
        %v1326 = vmul.f32 %v1325, %v1322
        %v1327 = vadd.f32 %v1324, %v1326
        %v1328 = vmul.f32 %v1113, %v1322
        %v1329 = vmul.f32 %v1328, %v1322
        %v1330 = vmul.f32 %v1115, %v1218
        %v1331 = vmul.f32 %v1330, %v1218
        %v1332 = vadd.f32 %v1329, %v1331
        %v1333 = vsub.f32 %v1113, %v1115
        %v1334 = vmul.f32 %v1333, %v1218
        %v1335 = vmul.f32 %v1334, %v1322
        %v1336 = vadd.f32 %v1103, %v1327
        %v1337 = vadd.f32 %v1108, %v1332
        %v1338 = vadd.f32 %v1111, %v1335
        %v1339 = vmul.f32 %v1336, %v1337
        %v1340 = vmul.f32 %v1338, %v1338
        %v1341 = vsub.f32 %v1339, %v1340
        %v1342 = vadd.f32 %v1341, 1e-07
        %v1343 = vrcp.pop %v1342
        %v1344 = vmul.f32 1.0, %v1343
        %v1345 = vsub.f32 %v879, %v884
        %v1346 = vmul.f32 %v1336, %v1345
        %v1347 = vmul.f32 %v1346, %v1345
        %v1348 = vsub.f32 %v878, %v883
        %v1349 = vmul.f32 %v1337, %v1348
        %v1350 = vmul.f32 %v1349, %v1348
        %v1351 = vadd.f32 %v1347, %v1350
        %v1352 = vmul.f32 %v1351, %v1344
        %v1353 = vmul.f32 %v1352, 0.25
        %v1354 = vsub.f32 %v883, %v878
        %v1355 = vmul.f32 %v1338, %v1354
        %v1356 = vmul.f32 %v1355, %v1345
        %v1357 = vmul.f32 %v1356, %v1344
        %v1358 = vmul.f32 %v1357, 0.5
        %v1359 = vmul.f32 %v1103, %v1108
        %v1360 = vmul.f32 %v1111, %v1111
        %v1361 = vsub.f32 %v1359, %v1360
        %v1362 = vmax.f32 %v1361, 0.0
        %v1363 = vmul.f32 %v1327, %v1332
        %v1364 = vmul.f32 %v1335, %v1335
        %v1365 = vsub.f32 %v1363, %v1364
        %v1366 = vmax.f32 %v1365, 0.0
        %v1367 = vmul.f32 %v1362, %v1366
        %v1368 = vrsqrt.pop %v1367
        %v1369 = vmul.f32 %v1367, %v1368
        %vm1370 = vcmp.eq.f32.partialorder %v1367, inf
        %v1371 = vsel %vm1370, %v1367, %v1369
        %vm1372 = vcmp.eq.f32.partialorder %v1367, 0.0
        %v1373 = vand.u32 %v1367, 2147483648
        %v1374 = vsel %vm1372, %v1373, %v1371
        %v1375 = vmul.f32 %v1374, 4.0
        %v1376 = vadd.f32 %v1375, 1e-07
        %v1377 = vrcp.pop %v1376
        %v1378 = vmul.f32 %v1341, %v1377
        %v1379 = vadd.f32 %v1378, 1e-07
        %v1380 = vlog2.pop %v1379
        %v1381 = vmul.f32 %v1380, 0.6931472
        %v1382 = vmul.f32 %v1381, 0.5
        %v1383 = vadd.f32 %v1353, %v1358
        %v1384 = vadd.f32 %v1383, %v1382
        %v1385 = vmax.f32 %v1384, 1e-07
        %v1386 = vmin.f32 %v1385, 100.0
        %v1387 = vsub.f32 0.0, %v1386
        %v1388 = vmul.f32 %v1387, 1.442695
        %v1389 = vpow.pop %v1388
        %v1390 = vsub.f32 1.0, %v1389
        %v1391 = vadd.f32 %v1390, 1e-07
        %v1392 = vrsqrt.pop %v1391
        %v1393 = vmul.f32 %v1391, %v1392
        %vm1394 = vcmp.eq.f32.partialorder %v1391, inf
        %v1395 = vsel %vm1394, %v1391, %v1393
        %vm1396 = vcmp.eq.f32.partialorder %v1391, 0.0
        %v1397 = vand.u32 %v1391, 2147483648
        %v1398 = vsel %vm1396, %v1397, %v1395
        %v1399 = vld [vmem:[#allocation2] sm:$0xff]
        %vm1400 = vcmp.gt.f32.partialorder %v870, 0.5
        %v1401 = vmul.f32 %v1398, %v877
        %v1402 = vsel %vm1400, %v1401, 0.0
        %v1403 = vadd.f32 %v1399, %v1402
        %1404 = vst [vmem:[#allocation2] sm:$0xff] %v1403
        %v1405 = vld [vmem:[%s800] sm:$0xff]
        %s1406 = scalar_lea.vmem %s800, 8 [#allocation7]
        %v1407 = vld [vmem:[%s1406] sm:$0xff]
        %v1408 = vmul.f32 %v885, 0.5
        %v1409 = vmul.f32 %v886, 0.5
        %v1410 = vsub.f32 %v883, %v1408
        %v1411 = vsub.f32 %v1405, %v1410
        %v1412 = vmax.f32 %v1411, 0.0
        %v1413 = vmin.f32 %v1412, 14.99
        %v1414 = vsub.f32 %v884, %v1409
        %v1415 = vsub.f32 %v1407, %v1414
        %v1416 = vmax.f32 %v1415, 0.0
        %v1417 = vmin.f32 %v1416, 14.99
        %v1418 = vadd.f32 %v883, %v1408
        %v1419 = vsub.f32 %v1418, %v1405
        %v1420 = vmax.f32 %v1419, 0.0
        %v1421 = vmin.f32 %v1420, 14.99
        %v1422 = vadd.f32 %v884, %v1409
        %v1423 = vsub.f32 %v1422, %v1407
        %v1424 = vmax.f32 %v1423, 0.0
        %v1425 = vmin.f32 %v1424, 14.99
        %v1426 = vld [vmem:[%s814] sm:$0xff]
        %s1427 = scalar_lea.vmem %s814, 8 [#allocation9]
        %v1428 = vld [vmem:[%s1427] sm:$0xff]
        %v1429 = vmax.f32 %v1426, %v1428
        %s1430 = scalar_lea.vmem %s814, 16 [#allocation9]
        %v1431 = vld [vmem:[%s1430] sm:$0xff]
        %v1432 = vmax.f32 %v1429, %v1431
        %s1433 = scalar_lea.vmem %s814, 24 [#allocation9]
        %v1434 = vld [vmem:[%s1433] sm:$0xff]
        %v1435 = vmax.f32 %v1432, %v1434
        %s1436 = scalar_lea.vmem %s814, 32 [#allocation9]
        %v1437 = vld [vmem:[%s1436] sm:$0xff]
        %v1438 = vmax.f32 %v1435, %v1437
        %s1439 = scalar_lea.vmem %s814, 40 [#allocation9]
        %v1440 = vld [vmem:[%s1439] sm:$0xff]
        %v1441 = vmax.f32 %v1438, %v1440
        %s1442 = scalar_lea.vmem %s814, 48 [#allocation9]
        %v1443 = vld [vmem:[%s1442] sm:$0xff]
        %v1444 = vmax.f32 %v1441, %v1443
        %s1445 = scalar_lea.vmem %s814, 56 [#allocation9]
        %v1446 = vld [vmem:[%s1445] sm:$0xff]
        %v1447 = vmax.f32 %v1444, %v1446
        %s1448 = scalar_lea.vmem %s814, 64 [#allocation9]
        %v1449 = vld [vmem:[%s1448] sm:$0xff]
        %v1450 = vmax.f32 %v1447, %v1449
        %s1451 = scalar_lea.vmem %s814, 72 [#allocation9]
        %v1452 = vld [vmem:[%s1451] sm:$0xff]
        %v1453 = vmax.f32 %v1450, %v1452
        %s1454 = scalar_lea.vmem %s814, 80 [#allocation9]
        %v1455 = vld [vmem:[%s1454] sm:$0xff]
        %v1456 = vmax.f32 %v1453, %v1455
        %s1457 = scalar_lea.vmem %s814, 88 [#allocation9]
        %v1458 = vld [vmem:[%s1457] sm:$0xff]
        %v1459 = vmax.f32 %v1456, %v1458
        %s1460 = scalar_lea.vmem %s814, 96 [#allocation9]
        %v1461 = vld [vmem:[%s1460] sm:$0xff]
        %v1462 = vmax.f32 %v1459, %v1461
        %s1463 = scalar_lea.vmem %s814, 104 [#allocation9]
        %v1464 = vld [vmem:[%s1463] sm:$0xff]
        %v1465 = vmax.f32 %v1462, %v1464
        %s1466 = scalar_lea.vmem %s814, 112 [#allocation9]
        %v1467 = vld [vmem:[%s1466] sm:$0xff]
        %v1468 = vmax.f32 %v1465, %v1467
        %s1469 = scalar_lea.vmem %s814, 120 [#allocation9]
        %v1470 = vld [vmem:[%s1469] sm:$0xff]
        %v1471 = vmax.f32 %v1468, %v1470
        %v1472 = vfloor.f32 %v1413
        %v1473 = vadd.f32 %v1472, 1.0
        %v1474 = vsub.f32 %v1473, %v1413
        %v1475 = vsub.f32 1.0, %v1474
        %v1476 = vsub.f32 %v1426, %v1471
        %v1477 = vmul.f32 %v1476, 1.442695
        %v1478 = vpow.pop %v1477
        %v1479 = vadd.f32 %v1478, 0.0
        %vm1480 = vcmp.eq.f32.partialorder %v1472, 0.0
        %v1481 = vsel %vm1480, %v1474, 0.0
        %vm1482 = vcmp.eq.f32.partialorder %v1472, -1.0
        %v1483 = vsel %vm1482, %v1475, 0.0
        %v1484 = vadd.f32 %v1481, %v1483
        %v1485 = vmul.f32 %v1484, %v1426
        %v1486 = vadd.f32 %v1485, 0.0
        %v1487 = vsub.f32 %v1428, %v1471
        %v1488 = vmul.f32 %v1487, 1.442695
        %v1489 = vpow.pop %v1488
        %v1490 = vadd.f32 %v1479, %v1489
        %vm1491 = vcmp.eq.f32.partialorder %v1472, 1.0
        %v1492 = vsel %vm1491, %v1474, 0.0
        %v1493 = vsel %vm1480, %v1475, 0.0
        %v1494 = vadd.f32 %v1492, %v1493
        %v1495 = vmul.f32 %v1494, %v1428
        %v1496 = vadd.f32 %v1486, %v1495
        %v1497 = vsub.f32 %v1431, %v1471
        %v1498 = vmul.f32 %v1497, 1.442695
        %v1499 = vpow.pop %v1498
        %v1500 = vadd.f32 %v1490, %v1499
        %vm1501 = vcmp.eq.f32.partialorder %v1472, 2.0
        %v1502 = vsel %vm1501, %v1474, 0.0
        %v1503 = vsel %vm1491, %v1475, 0.0
        %v1504 = vadd.f32 %v1502, %v1503
        %v1505 = vmul.f32 %v1504, %v1431
        %v1506 = vadd.f32 %v1496, %v1505
        %v1507 = vsub.f32 %v1434, %v1471
        %v1508 = vmul.f32 %v1507, 1.442695
        %v1509 = vpow.pop %v1508
        %v1510 = vadd.f32 %v1500, %v1509
        %vm1511 = vcmp.eq.f32.partialorder %v1472, 3.0
        %v1512 = vsel %vm1511, %v1474, 0.0
        %v1513 = vsel %vm1501, %v1475, 0.0
        %v1514 = vadd.f32 %v1512, %v1513
        %v1515 = vmul.f32 %v1514, %v1434
        %v1516 = vadd.f32 %v1506, %v1515
        %v1517 = vsub.f32 %v1437, %v1471
        %v1518 = vmul.f32 %v1517, 1.442695
        %v1519 = vpow.pop %v1518
        %v1520 = vadd.f32 %v1510, %v1519
        %vm1521 = vcmp.eq.f32.partialorder %v1472, 4.0
        %v1522 = vsel %vm1521, %v1474, 0.0
        %v1523 = vsel %vm1511, %v1475, 0.0
        %v1524 = vadd.f32 %v1522, %v1523
        %v1525 = vmul.f32 %v1524, %v1437
        %v1526 = vadd.f32 %v1516, %v1525
        %v1527 = vsub.f32 %v1440, %v1471
        %v1528 = vmul.f32 %v1527, 1.442695
        %v1529 = vpow.pop %v1528
        %v1530 = vadd.f32 %v1520, %v1529
        %vm1531 = vcmp.eq.f32.partialorder %v1472, 5.0
        %v1532 = vsel %vm1531, %v1474, 0.0
        %v1533 = vsel %vm1521, %v1475, 0.0
        %v1534 = vadd.f32 %v1532, %v1533
        %v1535 = vmul.f32 %v1534, %v1440
        %v1536 = vadd.f32 %v1526, %v1535
        %v1537 = vsub.f32 %v1443, %v1471
        %v1538 = vmul.f32 %v1537, 1.442695
        %v1539 = vpow.pop %v1538
        %v1540 = vadd.f32 %v1530, %v1539
        %vm1541 = vcmp.eq.f32.partialorder %v1472, 6.0
        %v1542 = vsel %vm1541, %v1474, 0.0
        %v1543 = vsel %vm1531, %v1475, 0.0
        %v1544 = vadd.f32 %v1542, %v1543
        %v1545 = vmul.f32 %v1544, %v1443
        %v1546 = vadd.f32 %v1536, %v1545
        %v1547 = vsub.f32 %v1446, %v1471
        %v1548 = vmul.f32 %v1547, 1.442695
        %v1549 = vpow.pop %v1548
        %v1550 = vadd.f32 %v1540, %v1549
        %vm1551 = vcmp.eq.f32.partialorder %v1472, 7.0
        %v1552 = vsel %vm1551, %v1474, 0.0
        %v1553 = vsel %vm1541, %v1475, 0.0
        %v1554 = vadd.f32 %v1552, %v1553
        %v1555 = vmul.f32 %v1554, %v1446
        %v1556 = vadd.f32 %v1546, %v1555
        %v1557 = vsub.f32 %v1449, %v1471
        %v1558 = vmul.f32 %v1557, 1.442695
        %v1559 = vpow.pop %v1558
        %v1560 = vadd.f32 %v1550, %v1559
        %vm1561 = vcmp.eq.f32.partialorder %v1472, 8.0
        %v1562 = vsel %vm1561, %v1474, 0.0
        %v1563 = vsel %vm1551, %v1475, 0.0
        %v1564 = vadd.f32 %v1562, %v1563
        %v1565 = vmul.f32 %v1564, %v1449
        %v1566 = vadd.f32 %v1556, %v1565
        %v1567 = vsub.f32 %v1452, %v1471
        %v1568 = vmul.f32 %v1567, 1.442695
        %v1569 = vpow.pop %v1568
        %v1570 = vadd.f32 %v1560, %v1569
        %vm1571 = vcmp.eq.f32.partialorder %v1472, 9.0
        %v1572 = vsel %vm1571, %v1474, 0.0
        %v1573 = vsel %vm1561, %v1475, 0.0
        %v1574 = vadd.f32 %v1572, %v1573
        %v1575 = vmul.f32 %v1574, %v1452
        %v1576 = vadd.f32 %v1566, %v1575
        %v1577 = vsub.f32 %v1455, %v1471
        %v1578 = vmul.f32 %v1577, 1.442695
        %v1579 = vpow.pop %v1578
        %v1580 = vadd.f32 %v1570, %v1579
        %vm1581 = vcmp.eq.f32.partialorder %v1472, 10.0
        %v1582 = vsel %vm1581, %v1474, 0.0
        %v1583 = vsel %vm1571, %v1475, 0.0
        %v1584 = vadd.f32 %v1582, %v1583
        %v1585 = vmul.f32 %v1584, %v1455
        %v1586 = vadd.f32 %v1576, %v1585
        %v1587 = vsub.f32 %v1458, %v1471
        %v1588 = vmul.f32 %v1587, 1.442695
        %v1589 = vpow.pop %v1588
        %v1590 = vadd.f32 %v1580, %v1589
        %vm1591 = vcmp.eq.f32.partialorder %v1472, 11.0
        %v1592 = vsel %vm1591, %v1474, 0.0
        %v1593 = vsel %vm1581, %v1475, 0.0
        %v1594 = vadd.f32 %v1592, %v1593
        %v1595 = vmul.f32 %v1594, %v1458
        %v1596 = vadd.f32 %v1586, %v1595
        %v1597 = vsub.f32 %v1461, %v1471
        %v1598 = vmul.f32 %v1597, 1.442695
        %v1599 = vpow.pop %v1598
        %v1600 = vadd.f32 %v1590, %v1599
        %vm1601 = vcmp.eq.f32.partialorder %v1472, 12.0
        %v1602 = vsel %vm1601, %v1474, 0.0
        %v1603 = vsel %vm1591, %v1475, 0.0
        %v1604 = vadd.f32 %v1602, %v1603
        %v1605 = vmul.f32 %v1604, %v1461
        %v1606 = vadd.f32 %v1596, %v1605
        %v1607 = vsub.f32 %v1464, %v1471
        %v1608 = vmul.f32 %v1607, 1.442695
        %v1609 = vpow.pop %v1608
        %v1610 = vadd.f32 %v1600, %v1609
        %vm1611 = vcmp.eq.f32.partialorder %v1472, 13.0
        %v1612 = vsel %vm1611, %v1474, 0.0
        %v1613 = vsel %vm1601, %v1475, 0.0
        %v1614 = vadd.f32 %v1612, %v1613
        %v1615 = vmul.f32 %v1614, %v1464
        %v1616 = vadd.f32 %v1606, %v1615
        %v1617 = vsub.f32 %v1467, %v1471
        %v1618 = vmul.f32 %v1617, 1.442695
        %v1619 = vpow.pop %v1618
        %v1620 = vadd.f32 %v1610, %v1619
        %vm1621 = vcmp.eq.f32.partialorder %v1472, 14.0
        %v1622 = vsel %vm1621, %v1474, 0.0
        %v1623 = vsel %vm1611, %v1475, 0.0
        %v1624 = vadd.f32 %v1622, %v1623
        %v1625 = vmul.f32 %v1624, %v1467
        %v1626 = vadd.f32 %v1616, %v1625
        %v1627 = vsub.f32 %v1470, %v1471
        %v1628 = vmul.f32 %v1627, 1.442695
        %v1629 = vpow.pop %v1628
        %v1630 = vadd.f32 %v1620, %v1629
        %vm1631 = vcmp.eq.f32.partialorder %v1472, 15.0
        %v1632 = vsel %vm1631, %v1474, 0.0
        %v1633 = vsel %vm1621, %v1475, 0.0
        %v1634 = vadd.f32 %v1632, %v1633
        %v1635 = vmul.f32 %v1634, %v1470
        %v1636 = vadd.f32 %v1626, %v1635
        %v1637 = vlog2.pop %v1630
        %v1638 = vmul.f32 %v1637, 0.6931472
        %v1639 = vadd.f32 %v1471, %v1638
        %v1640 = vsub.f32 %v1639, %v1636
        %v1641 = vadd.f32 %v1640, 0.0
        %s1642 = scalar_lea.vmem %s814, 128 [#allocation9]
        %v1643 = vld [vmem:[%s1642] sm:$0xff]
        %s1644 = scalar_lea.vmem %s814, 136 [#allocation9]
        %v1645 = vld [vmem:[%s1644] sm:$0xff]
        %v1646 = vmax.f32 %v1643, %v1645
        %s1647 = scalar_lea.vmem %s814, 144 [#allocation9]
        %v1648 = vld [vmem:[%s1647] sm:$0xff]
        %v1649 = vmax.f32 %v1646, %v1648
        %s1650 = scalar_lea.vmem %s814, 152 [#allocation9]
        %v1651 = vld [vmem:[%s1650] sm:$0xff]
        %v1652 = vmax.f32 %v1649, %v1651
        %s1653 = scalar_lea.vmem %s814, 160 [#allocation9]
        %v1654 = vld [vmem:[%s1653] sm:$0xff]
        %v1655 = vmax.f32 %v1652, %v1654
        %s1656 = scalar_lea.vmem %s814, 168 [#allocation9]
        %v1657 = vld [vmem:[%s1656] sm:$0xff]
        %v1658 = vmax.f32 %v1655, %v1657
        %s1659 = scalar_lea.vmem %s814, 176 [#allocation9]
        %v1660 = vld [vmem:[%s1659] sm:$0xff]
        %v1661 = vmax.f32 %v1658, %v1660
        %s1662 = scalar_lea.vmem %s814, 184 [#allocation9]
        %v1663 = vld [vmem:[%s1662] sm:$0xff]
        %v1664 = vmax.f32 %v1661, %v1663
        %s1665 = scalar_lea.vmem %s814, 192 [#allocation9]
        %v1666 = vld [vmem:[%s1665] sm:$0xff]
        %v1667 = vmax.f32 %v1664, %v1666
        %s1668 = scalar_lea.vmem %s814, 200 [#allocation9]
        %v1669 = vld [vmem:[%s1668] sm:$0xff]
        %v1670 = vmax.f32 %v1667, %v1669
        %s1671 = scalar_lea.vmem %s814, 208 [#allocation9]
        %v1672 = vld [vmem:[%s1671] sm:$0xff]
        %v1673 = vmax.f32 %v1670, %v1672
        %s1674 = scalar_lea.vmem %s814, 216 [#allocation9]
        %v1675 = vld [vmem:[%s1674] sm:$0xff]
        %v1676 = vmax.f32 %v1673, %v1675
        %s1677 = scalar_lea.vmem %s814, 224 [#allocation9]
        %v1678 = vld [vmem:[%s1677] sm:$0xff]
        %v1679 = vmax.f32 %v1676, %v1678
        %s1680 = scalar_lea.vmem %s814, 232 [#allocation9]
        %v1681 = vld [vmem:[%s1680] sm:$0xff]
        %v1682 = vmax.f32 %v1679, %v1681
        %s1683 = scalar_lea.vmem %s814, 240 [#allocation9]
        %v1684 = vld [vmem:[%s1683] sm:$0xff]
        %v1685 = vmax.f32 %v1682, %v1684
        %s1686 = scalar_lea.vmem %s814, 248 [#allocation9]
        %v1687 = vld [vmem:[%s1686] sm:$0xff]
        %v1688 = vmax.f32 %v1685, %v1687
        %v1689 = vfloor.f32 %v1417
        %v1690 = vadd.f32 %v1689, 1.0
        %v1691 = vsub.f32 %v1690, %v1417
        %v1692 = vsub.f32 1.0, %v1691
        %v1693 = vsub.f32 %v1643, %v1688
        %v1694 = vmul.f32 %v1693, 1.442695
        %v1695 = vpow.pop %v1694
        %v1696 = vadd.f32 %v1695, 0.0
        %vm1697 = vcmp.eq.f32.partialorder %v1689, 0.0
        %v1698 = vsel %vm1697, %v1691, 0.0
        %vm1699 = vcmp.eq.f32.partialorder %v1689, -1.0
        %v1700 = vsel %vm1699, %v1692, 0.0
        %v1701 = vadd.f32 %v1698, %v1700
        %v1702 = vmul.f32 %v1701, %v1643
        %v1703 = vadd.f32 %v1702, 0.0
        %v1704 = vsub.f32 %v1645, %v1688
        %v1705 = vmul.f32 %v1704, 1.442695
        %v1706 = vpow.pop %v1705
        %v1707 = vadd.f32 %v1696, %v1706
        %vm1708 = vcmp.eq.f32.partialorder %v1689, 1.0
        %v1709 = vsel %vm1708, %v1691, 0.0
        %v1710 = vsel %vm1697, %v1692, 0.0
        %v1711 = vadd.f32 %v1709, %v1710
        %v1712 = vmul.f32 %v1711, %v1645
        %v1713 = vadd.f32 %v1703, %v1712
        %v1714 = vsub.f32 %v1648, %v1688
        %v1715 = vmul.f32 %v1714, 1.442695
        %v1716 = vpow.pop %v1715
        %v1717 = vadd.f32 %v1707, %v1716
        %vm1718 = vcmp.eq.f32.partialorder %v1689, 2.0
        %v1719 = vsel %vm1718, %v1691, 0.0
        %v1720 = vsel %vm1708, %v1692, 0.0
        %v1721 = vadd.f32 %v1719, %v1720
        %v1722 = vmul.f32 %v1721, %v1648
        %v1723 = vadd.f32 %v1713, %v1722
        %v1724 = vsub.f32 %v1651, %v1688
        %v1725 = vmul.f32 %v1724, 1.442695
        %v1726 = vpow.pop %v1725
        %v1727 = vadd.f32 %v1717, %v1726
        %vm1728 = vcmp.eq.f32.partialorder %v1689, 3.0
        %v1729 = vsel %vm1728, %v1691, 0.0
        %v1730 = vsel %vm1718, %v1692, 0.0
        %v1731 = vadd.f32 %v1729, %v1730
        %v1732 = vmul.f32 %v1731, %v1651
        %v1733 = vadd.f32 %v1723, %v1732
        %v1734 = vsub.f32 %v1654, %v1688
        %v1735 = vmul.f32 %v1734, 1.442695
        %v1736 = vpow.pop %v1735
        %v1737 = vadd.f32 %v1727, %v1736
        %vm1738 = vcmp.eq.f32.partialorder %v1689, 4.0
        %v1739 = vsel %vm1738, %v1691, 0.0
        %v1740 = vsel %vm1728, %v1692, 0.0
        %v1741 = vadd.f32 %v1739, %v1740
        %v1742 = vmul.f32 %v1741, %v1654
        %v1743 = vadd.f32 %v1733, %v1742
        %v1744 = vsub.f32 %v1657, %v1688
        %v1745 = vmul.f32 %v1744, 1.442695
        %v1746 = vpow.pop %v1745
        %v1747 = vadd.f32 %v1737, %v1746
        %vm1748 = vcmp.eq.f32.partialorder %v1689, 5.0
        %v1749 = vsel %vm1748, %v1691, 0.0
        %v1750 = vsel %vm1738, %v1692, 0.0
        %v1751 = vadd.f32 %v1749, %v1750
        %v1752 = vmul.f32 %v1751, %v1657
        %v1753 = vadd.f32 %v1743, %v1752
        %v1754 = vsub.f32 %v1660, %v1688
        %v1755 = vmul.f32 %v1754, 1.442695
        %v1756 = vpow.pop %v1755
        %v1757 = vadd.f32 %v1747, %v1756
        %vm1758 = vcmp.eq.f32.partialorder %v1689, 6.0
        %v1759 = vsel %vm1758, %v1691, 0.0
        %v1760 = vsel %vm1748, %v1692, 0.0
        %v1761 = vadd.f32 %v1759, %v1760
        %v1762 = vmul.f32 %v1761, %v1660
        %v1763 = vadd.f32 %v1753, %v1762
        %v1764 = vsub.f32 %v1663, %v1688
        %v1765 = vmul.f32 %v1764, 1.442695
        %v1766 = vpow.pop %v1765
        %v1767 = vadd.f32 %v1757, %v1766
        %vm1768 = vcmp.eq.f32.partialorder %v1689, 7.0
        %v1769 = vsel %vm1768, %v1691, 0.0
        %v1770 = vsel %vm1758, %v1692, 0.0
        %v1771 = vadd.f32 %v1769, %v1770
        %v1772 = vmul.f32 %v1771, %v1663
        %v1773 = vadd.f32 %v1763, %v1772
        %v1774 = vsub.f32 %v1666, %v1688
        %v1775 = vmul.f32 %v1774, 1.442695
        %v1776 = vpow.pop %v1775
        %v1777 = vadd.f32 %v1767, %v1776
        %vm1778 = vcmp.eq.f32.partialorder %v1689, 8.0
        %v1779 = vsel %vm1778, %v1691, 0.0
        %v1780 = vsel %vm1768, %v1692, 0.0
        %v1781 = vadd.f32 %v1779, %v1780
        %v1782 = vmul.f32 %v1781, %v1666
        %v1783 = vadd.f32 %v1773, %v1782
        %v1784 = vsub.f32 %v1669, %v1688
        %v1785 = vmul.f32 %v1784, 1.442695
        %v1786 = vpow.pop %v1785
        %v1787 = vadd.f32 %v1777, %v1786
        %vm1788 = vcmp.eq.f32.partialorder %v1689, 9.0
        %v1789 = vsel %vm1788, %v1691, 0.0
        %v1790 = vsel %vm1778, %v1692, 0.0
        %v1791 = vadd.f32 %v1789, %v1790
        %v1792 = vmul.f32 %v1791, %v1669
        %v1793 = vadd.f32 %v1783, %v1792
        %v1794 = vsub.f32 %v1672, %v1688
        %v1795 = vmul.f32 %v1794, 1.442695
        %v1796 = vpow.pop %v1795
        %v1797 = vadd.f32 %v1787, %v1796
        %vm1798 = vcmp.eq.f32.partialorder %v1689, 10.0
        %v1799 = vsel %vm1798, %v1691, 0.0
        %v1800 = vsel %vm1788, %v1692, 0.0
        %v1801 = vadd.f32 %v1799, %v1800
        %v1802 = vmul.f32 %v1801, %v1672
        %v1803 = vadd.f32 %v1793, %v1802
        %v1804 = vsub.f32 %v1675, %v1688
        %v1805 = vmul.f32 %v1804, 1.442695
        %v1806 = vpow.pop %v1805
        %v1807 = vadd.f32 %v1797, %v1806
        %vm1808 = vcmp.eq.f32.partialorder %v1689, 11.0
        %v1809 = vsel %vm1808, %v1691, 0.0
        %v1810 = vsel %vm1798, %v1692, 0.0
        %v1811 = vadd.f32 %v1809, %v1810
        %v1812 = vmul.f32 %v1811, %v1675
        %v1813 = vadd.f32 %v1803, %v1812
        %v1814 = vsub.f32 %v1678, %v1688
        %v1815 = vmul.f32 %v1814, 1.442695
        %v1816 = vpow.pop %v1815
        %v1817 = vadd.f32 %v1807, %v1816
        %vm1818 = vcmp.eq.f32.partialorder %v1689, 12.0
        %v1819 = vsel %vm1818, %v1691, 0.0
        %v1820 = vsel %vm1808, %v1692, 0.0
        %v1821 = vadd.f32 %v1819, %v1820
        %v1822 = vmul.f32 %v1821, %v1678
        %v1823 = vadd.f32 %v1813, %v1822
        %v1824 = vsub.f32 %v1681, %v1688
        %v1825 = vmul.f32 %v1824, 1.442695
        %v1826 = vpow.pop %v1825
        %v1827 = vadd.f32 %v1817, %v1826
        %vm1828 = vcmp.eq.f32.partialorder %v1689, 13.0
        %v1829 = vsel %vm1828, %v1691, 0.0
        %v1830 = vsel %vm1818, %v1692, 0.0
        %v1831 = vadd.f32 %v1829, %v1830
        %v1832 = vmul.f32 %v1831, %v1681
        %v1833 = vadd.f32 %v1823, %v1832
        %v1834 = vsub.f32 %v1684, %v1688
        %v1835 = vmul.f32 %v1834, 1.442695
        %v1836 = vpow.pop %v1835
        %v1837 = vadd.f32 %v1827, %v1836
        %vm1838 = vcmp.eq.f32.partialorder %v1689, 14.0
        %v1839 = vsel %vm1838, %v1691, 0.0
        %v1840 = vsel %vm1828, %v1692, 0.0
        %v1841 = vadd.f32 %v1839, %v1840
        %v1842 = vmul.f32 %v1841, %v1684
        %v1843 = vadd.f32 %v1833, %v1842
        %v1844 = vsub.f32 %v1687, %v1688
        %v1845 = vmul.f32 %v1844, 1.442695
        %v1846 = vpow.pop %v1845
        %v1847 = vadd.f32 %v1837, %v1846
        %vm1848 = vcmp.eq.f32.partialorder %v1689, 15.0
        %v1849 = vsel %vm1848, %v1691, 0.0
        %v1850 = vsel %vm1838, %v1692, 0.0
        %v1851 = vadd.f32 %v1849, %v1850
        %v1852 = vmul.f32 %v1851, %v1687
        %v1853 = vadd.f32 %v1843, %v1852
        %v1854 = vlog2.pop %v1847
        %v1855 = vmul.f32 %v1854, 0.6931472
        %v1856 = vadd.f32 %v1688, %v1855
        %v1857 = vsub.f32 %v1856, %v1853
        %v1858 = vadd.f32 %v1641, %v1857
        %s1859 = scalar_lea.vmem %s814, 256 [#allocation9]
        %v1860 = vld [vmem:[%s1859] sm:$0xff]
        %s1861 = scalar_lea.vmem %s814, 264 [#allocation9]
        %v1862 = vld [vmem:[%s1861] sm:$0xff]
        %v1863 = vmax.f32 %v1860, %v1862
        %s1864 = scalar_lea.vmem %s814, 272 [#allocation9]
        %v1865 = vld [vmem:[%s1864] sm:$0xff]
        %v1866 = vmax.f32 %v1863, %v1865
        %s1867 = scalar_lea.vmem %s814, 280 [#allocation9]
        %v1868 = vld [vmem:[%s1867] sm:$0xff]
        %v1869 = vmax.f32 %v1866, %v1868
        %s1870 = scalar_lea.vmem %s814, 288 [#allocation9]
        %v1871 = vld [vmem:[%s1870] sm:$0xff]
        %v1872 = vmax.f32 %v1869, %v1871
        %s1873 = scalar_lea.vmem %s814, 296 [#allocation9]
        %v1874 = vld [vmem:[%s1873] sm:$0xff]
        %v1875 = vmax.f32 %v1872, %v1874
        %s1876 = scalar_lea.vmem %s814, 304 [#allocation9]
        %v1877 = vld [vmem:[%s1876] sm:$0xff]
        %v1878 = vmax.f32 %v1875, %v1877
        %s1879 = scalar_lea.vmem %s814, 312 [#allocation9]
        %v1880 = vld [vmem:[%s1879] sm:$0xff]
        %v1881 = vmax.f32 %v1878, %v1880
        %s1882 = scalar_lea.vmem %s814, 320 [#allocation9]
        %v1883 = vld [vmem:[%s1882] sm:$0xff]
        %v1884 = vmax.f32 %v1881, %v1883
        %s1885 = scalar_lea.vmem %s814, 328 [#allocation9]
        %v1886 = vld [vmem:[%s1885] sm:$0xff]
        %v1887 = vmax.f32 %v1884, %v1886
        %s1888 = scalar_lea.vmem %s814, 336 [#allocation9]
        %v1889 = vld [vmem:[%s1888] sm:$0xff]
        %v1890 = vmax.f32 %v1887, %v1889
        %s1891 = scalar_lea.vmem %s814, 344 [#allocation9]
        %v1892 = vld [vmem:[%s1891] sm:$0xff]
        %v1893 = vmax.f32 %v1890, %v1892
        %s1894 = scalar_lea.vmem %s814, 352 [#allocation9]
        %v1895 = vld [vmem:[%s1894] sm:$0xff]
        %v1896 = vmax.f32 %v1893, %v1895
        %s1897 = scalar_lea.vmem %s814, 360 [#allocation9]
        %v1898 = vld [vmem:[%s1897] sm:$0xff]
        %v1899 = vmax.f32 %v1896, %v1898
        %s1900 = scalar_lea.vmem %s814, 368 [#allocation9]
        %v1901 = vld [vmem:[%s1900] sm:$0xff]
        %v1902 = vmax.f32 %v1899, %v1901
        %s1903 = scalar_lea.vmem %s814, 376 [#allocation9]
        %v1904 = vld [vmem:[%s1903] sm:$0xff]
        %v1905 = vmax.f32 %v1902, %v1904
        %v1906 = vfloor.f32 %v1421
        %v1907 = vadd.f32 %v1906, 1.0
        %v1908 = vsub.f32 %v1907, %v1421
        %v1909 = vsub.f32 1.0, %v1908
        %v1910 = vsub.f32 %v1860, %v1905
        %v1911 = vmul.f32 %v1910, 1.442695
        %v1912 = vpow.pop %v1911
        %v1913 = vadd.f32 %v1912, 0.0
        %vm1914 = vcmp.eq.f32.partialorder %v1906, 0.0
        %v1915 = vsel %vm1914, %v1908, 0.0
        %vm1916 = vcmp.eq.f32.partialorder %v1906, -1.0
        %v1917 = vsel %vm1916, %v1909, 0.0
        %v1918 = vadd.f32 %v1915, %v1917
        %v1919 = vmul.f32 %v1918, %v1860
        %v1920 = vadd.f32 %v1919, 0.0
        %v1921 = vsub.f32 %v1862, %v1905
        %v1922 = vmul.f32 %v1921, 1.442695
        %v1923 = vpow.pop %v1922
        %v1924 = vadd.f32 %v1913, %v1923
        %vm1925 = vcmp.eq.f32.partialorder %v1906, 1.0
        %v1926 = vsel %vm1925, %v1908, 0.0
        %v1927 = vsel %vm1914, %v1909, 0.0
        %v1928 = vadd.f32 %v1926, %v1927
        %v1929 = vmul.f32 %v1928, %v1862
        %v1930 = vadd.f32 %v1920, %v1929
        %v1931 = vsub.f32 %v1865, %v1905
        %v1932 = vmul.f32 %v1931, 1.442695
        %v1933 = vpow.pop %v1932
        %v1934 = vadd.f32 %v1924, %v1933
        %vm1935 = vcmp.eq.f32.partialorder %v1906, 2.0
        %v1936 = vsel %vm1935, %v1908, 0.0
        %v1937 = vsel %vm1925, %v1909, 0.0
        %v1938 = vadd.f32 %v1936, %v1937
        %v1939 = vmul.f32 %v1938, %v1865
        %v1940 = vadd.f32 %v1930, %v1939
        %v1941 = vsub.f32 %v1868, %v1905
        %v1942 = vmul.f32 %v1941, 1.442695
        %v1943 = vpow.pop %v1942
        %v1944 = vadd.f32 %v1934, %v1943
        %vm1945 = vcmp.eq.f32.partialorder %v1906, 3.0
        %v1946 = vsel %vm1945, %v1908, 0.0
        %v1947 = vsel %vm1935, %v1909, 0.0
        %v1948 = vadd.f32 %v1946, %v1947
        %v1949 = vmul.f32 %v1948, %v1868
        %v1950 = vadd.f32 %v1940, %v1949
        %v1951 = vsub.f32 %v1871, %v1905
        %v1952 = vmul.f32 %v1951, 1.442695
        %v1953 = vpow.pop %v1952
        %v1954 = vadd.f32 %v1944, %v1953
        %vm1955 = vcmp.eq.f32.partialorder %v1906, 4.0
        %v1956 = vsel %vm1955, %v1908, 0.0
        %v1957 = vsel %vm1945, %v1909, 0.0
        %v1958 = vadd.f32 %v1956, %v1957
        %v1959 = vmul.f32 %v1958, %v1871
        %v1960 = vadd.f32 %v1950, %v1959
        %v1961 = vsub.f32 %v1874, %v1905
        %v1962 = vmul.f32 %v1961, 1.442695
        %v1963 = vpow.pop %v1962
        %v1964 = vadd.f32 %v1954, %v1963
        %vm1965 = vcmp.eq.f32.partialorder %v1906, 5.0
        %v1966 = vsel %vm1965, %v1908, 0.0
        %v1967 = vsel %vm1955, %v1909, 0.0
        %v1968 = vadd.f32 %v1966, %v1967
        %v1969 = vmul.f32 %v1968, %v1874
        %v1970 = vadd.f32 %v1960, %v1969
        %v1971 = vsub.f32 %v1877, %v1905
        %v1972 = vmul.f32 %v1971, 1.442695
        %v1973 = vpow.pop %v1972
        %v1974 = vadd.f32 %v1964, %v1973
        %vm1975 = vcmp.eq.f32.partialorder %v1906, 6.0
        %v1976 = vsel %vm1975, %v1908, 0.0
        %v1977 = vsel %vm1965, %v1909, 0.0
        %v1978 = vadd.f32 %v1976, %v1977
        %v1979 = vmul.f32 %v1978, %v1877
        %v1980 = vadd.f32 %v1970, %v1979
        %v1981 = vsub.f32 %v1880, %v1905
        %v1982 = vmul.f32 %v1981, 1.442695
        %v1983 = vpow.pop %v1982
        %v1984 = vadd.f32 %v1974, %v1983
        %vm1985 = vcmp.eq.f32.partialorder %v1906, 7.0
        %v1986 = vsel %vm1985, %v1908, 0.0
        %v1987 = vsel %vm1975, %v1909, 0.0
        %v1988 = vadd.f32 %v1986, %v1987
        %v1989 = vmul.f32 %v1988, %v1880
        %v1990 = vadd.f32 %v1980, %v1989
        %v1991 = vsub.f32 %v1883, %v1905
        %v1992 = vmul.f32 %v1991, 1.442695
        %v1993 = vpow.pop %v1992
        %v1994 = vadd.f32 %v1984, %v1993
        %vm1995 = vcmp.eq.f32.partialorder %v1906, 8.0
        %v1996 = vsel %vm1995, %v1908, 0.0
        %v1997 = vsel %vm1985, %v1909, 0.0
        %v1998 = vadd.f32 %v1996, %v1997
        %v1999 = vmul.f32 %v1998, %v1883
        %v2000 = vadd.f32 %v1990, %v1999
        %v2001 = vsub.f32 %v1886, %v1905
        %v2002 = vmul.f32 %v2001, 1.442695
        %v2003 = vpow.pop %v2002
        %v2004 = vadd.f32 %v1994, %v2003
        %vm2005 = vcmp.eq.f32.partialorder %v1906, 9.0
        %v2006 = vsel %vm2005, %v1908, 0.0
        %v2007 = vsel %vm1995, %v1909, 0.0
        %v2008 = vadd.f32 %v2006, %v2007
        %v2009 = vmul.f32 %v2008, %v1886
        %v2010 = vadd.f32 %v2000, %v2009
        %v2011 = vsub.f32 %v1889, %v1905
        %v2012 = vmul.f32 %v2011, 1.442695
        %v2013 = vpow.pop %v2012
        %v2014 = vadd.f32 %v2004, %v2013
        %vm2015 = vcmp.eq.f32.partialorder %v1906, 10.0
        %v2016 = vsel %vm2015, %v1908, 0.0
        %v2017 = vsel %vm2005, %v1909, 0.0
        %v2018 = vadd.f32 %v2016, %v2017
        %v2019 = vmul.f32 %v2018, %v1889
        %v2020 = vadd.f32 %v2010, %v2019
        %v2021 = vsub.f32 %v1892, %v1905
        %v2022 = vmul.f32 %v2021, 1.442695
        %v2023 = vpow.pop %v2022
        %v2024 = vadd.f32 %v2014, %v2023
        %vm2025 = vcmp.eq.f32.partialorder %v1906, 11.0
        %v2026 = vsel %vm2025, %v1908, 0.0
        %v2027 = vsel %vm2015, %v1909, 0.0
        %v2028 = vadd.f32 %v2026, %v2027
        %v2029 = vmul.f32 %v2028, %v1892
        %v2030 = vadd.f32 %v2020, %v2029
        %v2031 = vsub.f32 %v1895, %v1905
        %v2032 = vmul.f32 %v2031, 1.442695
        %v2033 = vpow.pop %v2032
        %v2034 = vadd.f32 %v2024, %v2033
        %vm2035 = vcmp.eq.f32.partialorder %v1906, 12.0
        %v2036 = vsel %vm2035, %v1908, 0.0
        %v2037 = vsel %vm2025, %v1909, 0.0
        %v2038 = vadd.f32 %v2036, %v2037
        %v2039 = vmul.f32 %v2038, %v1895
        %v2040 = vadd.f32 %v2030, %v2039
        %v2041 = vsub.f32 %v1898, %v1905
        %v2042 = vmul.f32 %v2041, 1.442695
        %v2043 = vpow.pop %v2042
        %v2044 = vadd.f32 %v2034, %v2043
        %vm2045 = vcmp.eq.f32.partialorder %v1906, 13.0
        %v2046 = vsel %vm2045, %v1908, 0.0
        %v2047 = vsel %vm2035, %v1909, 0.0
        %v2048 = vadd.f32 %v2046, %v2047
        %v2049 = vmul.f32 %v2048, %v1898
        %v2050 = vadd.f32 %v2040, %v2049
        %v2051 = vsub.f32 %v1901, %v1905
        %v2052 = vmul.f32 %v2051, 1.442695
        %v2053 = vpow.pop %v2052
        %v2054 = vadd.f32 %v2044, %v2053
        %vm2055 = vcmp.eq.f32.partialorder %v1906, 14.0
        %v2056 = vsel %vm2055, %v1908, 0.0
        %v2057 = vsel %vm2045, %v1909, 0.0
        %v2058 = vadd.f32 %v2056, %v2057
        %v2059 = vmul.f32 %v2058, %v1901
        %v2060 = vadd.f32 %v2050, %v2059
        %v2061 = vsub.f32 %v1904, %v1905
        %v2062 = vmul.f32 %v2061, 1.442695
        %v2063 = vpow.pop %v2062
        %v2064 = vadd.f32 %v2054, %v2063
        %vm2065 = vcmp.eq.f32.partialorder %v1906, 15.0
        %v2066 = vsel %vm2065, %v1908, 0.0
        %v2067 = vsel %vm2055, %v1909, 0.0
        %v2068 = vadd.f32 %v2066, %v2067
        %v2069 = vmul.f32 %v2068, %v1904
        %v2070 = vadd.f32 %v2060, %v2069
        %v2071 = vlog2.pop %v2064
        %v2072 = vmul.f32 %v2071, 0.6931472
        %v2073 = vadd.f32 %v1905, %v2072
        %v2074 = vsub.f32 %v2073, %v2070
        %v2075 = vadd.f32 %v1858, %v2074
        %s2076 = scalar_lea.vmem %s814, 384 [#allocation9]
        %v2077 = vld [vmem:[%s2076] sm:$0xff]
        %s2078 = scalar_lea.vmem %s814, 392 [#allocation9]
        %v2079 = vld [vmem:[%s2078] sm:$0xff]
        %v2080 = vmax.f32 %v2077, %v2079
        %s2081 = scalar_lea.vmem %s814, 400 [#allocation9]
        %v2082 = vld [vmem:[%s2081] sm:$0xff]
        %v2083 = vmax.f32 %v2080, %v2082
        %s2084 = scalar_lea.vmem %s814, 408 [#allocation9]
        %v2085 = vld [vmem:[%s2084] sm:$0xff]
        %v2086 = vmax.f32 %v2083, %v2085
        %s2087 = scalar_lea.vmem %s814, 416 [#allocation9]
        %v2088 = vld [vmem:[%s2087] sm:$0xff]
        %v2089 = vmax.f32 %v2086, %v2088
        %s2090 = scalar_lea.vmem %s814, 424 [#allocation9]
        %v2091 = vld [vmem:[%s2090] sm:$0xff]
        %v2092 = vmax.f32 %v2089, %v2091
        %s2093 = scalar_lea.vmem %s814, 432 [#allocation9]
        %v2094 = vld [vmem:[%s2093] sm:$0xff]
        %v2095 = vmax.f32 %v2092, %v2094
        %s2096 = scalar_lea.vmem %s814, 440 [#allocation9]
        %v2097 = vld [vmem:[%s2096] sm:$0xff]
        %v2098 = vmax.f32 %v2095, %v2097
        %s2099 = scalar_lea.vmem %s814, 448 [#allocation9]
        %v2100 = vld [vmem:[%s2099] sm:$0xff]
        %v2101 = vmax.f32 %v2098, %v2100
        %s2102 = scalar_lea.vmem %s814, 456 [#allocation9]
        %v2103 = vld [vmem:[%s2102] sm:$0xff]
        %v2104 = vmax.f32 %v2101, %v2103
        %s2105 = scalar_lea.vmem %s814, 464 [#allocation9]
        %v2106 = vld [vmem:[%s2105] sm:$0xff]
        %v2107 = vmax.f32 %v2104, %v2106
        %s2108 = scalar_lea.vmem %s814, 472 [#allocation9]
        %v2109 = vld [vmem:[%s2108] sm:$0xff]
        %v2110 = vmax.f32 %v2107, %v2109
        %s2111 = scalar_lea.vmem %s814, 480 [#allocation9]
        %v2112 = vld [vmem:[%s2111] sm:$0xff]
        %v2113 = vmax.f32 %v2110, %v2112
        %s2114 = scalar_lea.vmem %s814, 488 [#allocation9]
        %v2115 = vld [vmem:[%s2114] sm:$0xff]
        %v2116 = vmax.f32 %v2113, %v2115
        %s2117 = scalar_lea.vmem %s814, 496 [#allocation9]
        %v2118 = vld [vmem:[%s2117] sm:$0xff]
        %v2119 = vmax.f32 %v2116, %v2118
        %s2120 = scalar_lea.vmem %s814, 504 [#allocation9]
        %v2121 = vld [vmem:[%s2120] sm:$0xff]
        %v2122 = vmax.f32 %v2119, %v2121
        %v2123 = vfloor.f32 %v1425
        %v2124 = vadd.f32 %v2123, 1.0
        %v2125 = vsub.f32 %v2124, %v1425
        %v2126 = vsub.f32 1.0, %v2125
        %v2127 = vsub.f32 %v2077, %v2122
        %v2128 = vmul.f32 %v2127, 1.442695
        %v2129 = vpow.pop %v2128
        %v2130 = vadd.f32 %v2129, 0.0
        %vm2131 = vcmp.eq.f32.partialorder %v2123, 0.0
        %v2132 = vsel %vm2131, %v2125, 0.0
        %vm2133 = vcmp.eq.f32.partialorder %v2123, -1.0
        %v2134 = vsel %vm2133, %v2126, 0.0
        %v2135 = vadd.f32 %v2132, %v2134
        %v2136 = vmul.f32 %v2135, %v2077
        %v2137 = vadd.f32 %v2136, 0.0
        %v2138 = vsub.f32 %v2079, %v2122
        %v2139 = vmul.f32 %v2138, 1.442695
        %v2140 = vpow.pop %v2139
        %v2141 = vadd.f32 %v2130, %v2140
        %vm2142 = vcmp.eq.f32.partialorder %v2123, 1.0
        %v2143 = vsel %vm2142, %v2125, 0.0
        %v2144 = vsel %vm2131, %v2126, 0.0
        %v2145 = vadd.f32 %v2143, %v2144
        %v2146 = vmul.f32 %v2145, %v2079
        %v2147 = vadd.f32 %v2137, %v2146
        %v2148 = vsub.f32 %v2082, %v2122
        %v2149 = vmul.f32 %v2148, 1.442695
        %v2150 = vpow.pop %v2149
        %v2151 = vadd.f32 %v2141, %v2150
        %vm2152 = vcmp.eq.f32.partialorder %v2123, 2.0
        %v2153 = vsel %vm2152, %v2125, 0.0
        %v2154 = vsel %vm2142, %v2126, 0.0
        %v2155 = vadd.f32 %v2153, %v2154
        %v2156 = vmul.f32 %v2155, %v2082
        %v2157 = vadd.f32 %v2147, %v2156
        %v2158 = vsub.f32 %v2085, %v2122
        %v2159 = vmul.f32 %v2158, 1.442695
        %v2160 = vpow.pop %v2159
        %v2161 = vadd.f32 %v2151, %v2160
        %vm2162 = vcmp.eq.f32.partialorder %v2123, 3.0
        %v2163 = vsel %vm2162, %v2125, 0.0
        %v2164 = vsel %vm2152, %v2126, 0.0
        %v2165 = vadd.f32 %v2163, %v2164
        %v2166 = vmul.f32 %v2165, %v2085
        %v2167 = vadd.f32 %v2157, %v2166
        %v2168 = vsub.f32 %v2088, %v2122
        %v2169 = vmul.f32 %v2168, 1.442695
        %v2170 = vpow.pop %v2169
        %v2171 = vadd.f32 %v2161, %v2170
        %vm2172 = vcmp.eq.f32.partialorder %v2123, 4.0
        %v2173 = vsel %vm2172, %v2125, 0.0
        %v2174 = vsel %vm2162, %v2126, 0.0
        %v2175 = vadd.f32 %v2173, %v2174
        %v2176 = vmul.f32 %v2175, %v2088
        %v2177 = vadd.f32 %v2167, %v2176
        %v2178 = vsub.f32 %v2091, %v2122
        %v2179 = vmul.f32 %v2178, 1.442695
        %v2180 = vpow.pop %v2179
        %v2181 = vadd.f32 %v2171, %v2180
        %vm2182 = vcmp.eq.f32.partialorder %v2123, 5.0
        %v2183 = vsel %vm2182, %v2125, 0.0
        %v2184 = vsel %vm2172, %v2126, 0.0
        %v2185 = vadd.f32 %v2183, %v2184
        %v2186 = vmul.f32 %v2185, %v2091
        %v2187 = vadd.f32 %v2177, %v2186
        %v2188 = vsub.f32 %v2094, %v2122
        %v2189 = vmul.f32 %v2188, 1.442695
        %v2190 = vpow.pop %v2189
        %v2191 = vadd.f32 %v2181, %v2190
        %vm2192 = vcmp.eq.f32.partialorder %v2123, 6.0
        %v2193 = vsel %vm2192, %v2125, 0.0
        %v2194 = vsel %vm2182, %v2126, 0.0
        %v2195 = vadd.f32 %v2193, %v2194
        %v2196 = vmul.f32 %v2195, %v2094
        %v2197 = vadd.f32 %v2187, %v2196
        %v2198 = vsub.f32 %v2097, %v2122
        %v2199 = vmul.f32 %v2198, 1.442695
        %v2200 = vpow.pop %v2199
        %v2201 = vadd.f32 %v2191, %v2200
        %vm2202 = vcmp.eq.f32.partialorder %v2123, 7.0
        %v2203 = vsel %vm2202, %v2125, 0.0
        %v2204 = vsel %vm2192, %v2126, 0.0
        %v2205 = vadd.f32 %v2203, %v2204
        %v2206 = vmul.f32 %v2205, %v2097
        %v2207 = vadd.f32 %v2197, %v2206
        %v2208 = vsub.f32 %v2100, %v2122
        %v2209 = vmul.f32 %v2208, 1.442695
        %v2210 = vpow.pop %v2209
        %v2211 = vadd.f32 %v2201, %v2210
        %vm2212 = vcmp.eq.f32.partialorder %v2123, 8.0
        %v2213 = vsel %vm2212, %v2125, 0.0
        %v2214 = vsel %vm2202, %v2126, 0.0
        %v2215 = vadd.f32 %v2213, %v2214
        %v2216 = vmul.f32 %v2215, %v2100
        %v2217 = vadd.f32 %v2207, %v2216
        %v2218 = vsub.f32 %v2103, %v2122
        %v2219 = vmul.f32 %v2218, 1.442695
        %v2220 = vpow.pop %v2219
        %v2221 = vadd.f32 %v2211, %v2220
        %vm2222 = vcmp.eq.f32.partialorder %v2123, 9.0
        %v2223 = vsel %vm2222, %v2125, 0.0
        %v2224 = vsel %vm2212, %v2126, 0.0
        %v2225 = vadd.f32 %v2223, %v2224
        %v2226 = vmul.f32 %v2225, %v2103
        %v2227 = vadd.f32 %v2217, %v2226
        %v2228 = vsub.f32 %v2106, %v2122
        %v2229 = vmul.f32 %v2228, 1.442695
        %v2230 = vpow.pop %v2229
        %v2231 = vadd.f32 %v2221, %v2230
        %vm2232 = vcmp.eq.f32.partialorder %v2123, 10.0
        %v2233 = vsel %vm2232, %v2125, 0.0
        %v2234 = vsel %vm2222, %v2126, 0.0
        %v2235 = vadd.f32 %v2233, %v2234
        %v2236 = vmul.f32 %v2235, %v2106
        %v2237 = vadd.f32 %v2227, %v2236
        %v2238 = vsub.f32 %v2109, %v2122
        %v2239 = vmul.f32 %v2238, 1.442695
        %v2240 = vpow.pop %v2239
        %v2241 = vadd.f32 %v2231, %v2240
        %vm2242 = vcmp.eq.f32.partialorder %v2123, 11.0
        %v2243 = vsel %vm2242, %v2125, 0.0
        %v2244 = vsel %vm2232, %v2126, 0.0
        %v2245 = vadd.f32 %v2243, %v2244
        %v2246 = vmul.f32 %v2245, %v2109
        %v2247 = vadd.f32 %v2237, %v2246
        %v2248 = vsub.f32 %v2112, %v2122
        %v2249 = vmul.f32 %v2248, 1.442695
        %v2250 = vpow.pop %v2249
        %v2251 = vadd.f32 %v2241, %v2250
        %vm2252 = vcmp.eq.f32.partialorder %v2123, 12.0
        %v2253 = vsel %vm2252, %v2125, 0.0
        %v2254 = vsel %vm2242, %v2126, 0.0
        %v2255 = vadd.f32 %v2253, %v2254
        %v2256 = vmul.f32 %v2255, %v2112
        %v2257 = vadd.f32 %v2247, %v2256
        %v2258 = vsub.f32 %v2115, %v2122
        %v2259 = vmul.f32 %v2258, 1.442695
        %v2260 = vpow.pop %v2259
        %v2261 = vadd.f32 %v2251, %v2260
        %vm2262 = vcmp.eq.f32.partialorder %v2123, 13.0
        %v2263 = vsel %vm2262, %v2125, 0.0
        %v2264 = vsel %vm2252, %v2126, 0.0
        %v2265 = vadd.f32 %v2263, %v2264
        %v2266 = vmul.f32 %v2265, %v2115
        %v2267 = vadd.f32 %v2257, %v2266
        %v2268 = vsub.f32 %v2118, %v2122
        %v2269 = vmul.f32 %v2268, 1.442695
        %v2270 = vpow.pop %v2269
        %v2271 = vadd.f32 %v2261, %v2270
        %vm2272 = vcmp.eq.f32.partialorder %v2123, 14.0
        %v2273 = vsel %vm2272, %v2125, 0.0
        %v2274 = vsel %vm2262, %v2126, 0.0
        %v2275 = vadd.f32 %v2273, %v2274
        %v2276 = vmul.f32 %v2275, %v2118
        %v2277 = vadd.f32 %v2267, %v2276
        %v2278 = vsub.f32 %v2121, %v2122
        %v2279 = vmul.f32 %v2278, 1.442695
        %v2280 = vpow.pop %v2279
        %v2281 = vadd.f32 %v2271, %v2280
        %vm2282 = vcmp.eq.f32.partialorder %v2123, 15.0
        %v2283 = vsel %vm2282, %v2125, 0.0
        %v2284 = vsel %vm2272, %v2126, 0.0
        %v2285 = vadd.f32 %v2283, %v2284
        %v2286 = vmul.f32 %v2285, %v2121
        %v2287 = vadd.f32 %v2277, %v2286
        %v2288 = vlog2.pop %v2281
        %v2289 = vmul.f32 %v2288, 0.6931472
        %v2290 = vadd.f32 %v2122, %v2289
        %v2291 = vsub.f32 %v2290, %v2287
        %v2292 = vadd.f32 %v2075, %v2291
        %v2293 = vmul.f32 %v2292, 0.25
        %v2294 = vld [vmem:[#allocation3] sm:$0xff]
        %v2295 = vmul.f32 %v2293, %v877
        %v2296 = vsel %vm1400, %v2295, 0.0
        %v2297 = vadd.f32 %v2294, %v2296
        %2298 = vst [vmem:[#allocation3] sm:$0xff] %v2297
        %p2299 = scmp.eq.s32.totalorder %s23, 1
        // Predicated region
        $region243: #{rotated_bbox_loss.1} parent=217 // pred_check
          %p2300 = pneg %p2299
        $region244: #{rotated_bbox_loss.1} parent=217 // pred_check_branch
          %2302 = sbr.rel (%p2300) target = $region246
        $region245: #{rotated_bbox_loss.1} parent=217 // pred_region
          %s2303 = sld [smem:[#allocation4]]
          %v2304 = vstv %s2303
          %v2305 = vrcp.pop %v2304
          %s2306 = vtos %v2305
          %v2307 = vld [vmem:[#allocation2] sm:$0xff]
          %2308 = vadd.xlane.f32.xlu0 %v2307
          %v2309 = vpop.xlane.xlu0 %2308
          %v2310 = vrot.slane %v2309, 4
          %v2311 = vadd.f32 %v2309, %v2310
          %v2312 = vrot.slane %v2311, 2
          %v2313 = vadd.f32 %v2311, %v2312
          %v2314 = vrot.slane %v2313, 1
          %v2315 = vadd.f32 %v2313, %v2314
          %s2316 = vtos %v2315
          %s2317 = smul.f32 %s2316, %s2306
          %s2318 = scalar_lea.smem [#allocation10], 0
          %2319 = sst [smem:[%s2318]] %s2317
          %v2320 = vld [vmem:[#allocation3] sm:$0xff]
          %2321 = vadd.xlane.f32.xlu0 %v2320
          %v2322 = vpop.xlane.xlu0 %2321
          %v2323 = vrot.slane %v2322, 4
          %v2324 = vadd.f32 %v2322, %v2323
          %v2325 = vrot.slane %v2324, 2
          %v2326 = vadd.f32 %v2324, %v2325
          %v2327 = vrot.slane %v2326, 1
          %v2328 = vadd.f32 %v2326, %v2327
          %s2329 = vtos %v2328
          %s2330 = smul.f32 %s2329, %s2306
          %s2331 = scalar_lea.smem [#allocation12], 0
          %2332 = sst [smem:[%s2331]] %s2330
        $region246: #{rotated_bbox_loss.1} parent=217 // pred_fallthru
          _
        // Predicated region
        $region247: #{rotated_bbox_loss.1} parent=217 // pred_check
          %p2333 = pneg %p213
        $region248: #{rotated_bbox_loss.1} parent=217 // pred_check_branch
          %2335 = sbr.rel (%p2333) target = $region250
        $region249: #{rotated_bbox_loss.1} parent=217 // pred_region
          %s2337 = ssub.s32 16, 16
          %2338 = vsyncadd [#allocation11], %s2337
          %2341 = dma.smem_to_hbm [#allocation10], 16, %s7, [#allocation11]
        $region250: #{rotated_bbox_loss.1} parent=217 // pred_fallthru
          _
        // Predicated region
        $region251: #{rotated_bbox_loss.1} parent=217 // pred_check
          %p2342 = pneg %p234
        $region252: #{rotated_bbox_loss.1} parent=217 // pred_check_branch
          %2344 = sbr.rel (%p2342) target = $region254
        $region253: #{rotated_bbox_loss.1} parent=217 // pred_region
          %s2346 = ssub.s32 16, 16
          %2347 = vsyncadd [#allocation13], %s2346
          %2350 = dma.smem_to_hbm [#allocation12], 16, %s8, [#allocation13]
        $region254: #{rotated_bbox_loss.1} parent=217 // pred_fallthru
          _
        // Predicated region
        $region255: #{rotated_bbox_loss.1} parent=217 // pred_check
          %p2351 = pneg %p213
        $region256: #{rotated_bbox_loss.1} parent=217 // pred_check_branch
          %2353 = sbr.rel (%p2351) target = $region258
        $region257: #{rotated_bbox_loss.1} parent=217 // pred_region
          %2354 = dma.done [#allocation11], 16
        $region258: #{rotated_bbox_loss.1} parent=217 // pred_fallthru
          _
        // Predicated region
        $region259: #{rotated_bbox_loss.1} parent=217 // pred_check
          %p2355 = pneg %p234
        $region260: #{rotated_bbox_loss.1} parent=217 // pred_check_branch
          %2357 = sbr.rel (%p2355) target = $region262
        $region261: #{rotated_bbox_loss.1} parent=217 // pred_region
          %2358 = dma.done [#allocation13], 16
        $region262: #{rotated_bbox_loss.1} parent=217 // pred_fallthru
          _
        %2359 = sfence
      $region218: #{rotated_bbox_loss.1} parent=5 // pred_fallthru
        _
      %p2360 = scmp.le.s32.totalorder 2, %s18
      // Predicated region
      $region263: #{rotated_bbox_loss.1} parent=5 // pred_check
        %p2361 = pneg %p2360
      $region264: #{rotated_bbox_loss.1} parent=5 // pred_check_branch
        %2363 = sbr.rel (%p2361) target = $region266
      $region265: #{rotated_bbox_loss.1} parent=5 // pred_region
        %s2364 = ssub.s32 %s18, 2
      $region266: #{rotated_bbox_loss.1} parent=5 // pred_fallthru
        _
    $region6: #{rotated_bbox_loss.1} parent=1 // loop_footer
      %s22 = sadd.s32 1, %s18
    $region7: #{rotated_bbox_loss.1} parent=1 // loop_footer_branch
      %17 = sbr.rel target = $region3
    $region8: #{rotated_bbox_loss.1} parent=1 // loop_exit
      _
    %2365 = vsyncpa [#allocation11], 1
    %s2366 = scalar_lea.sflag [#allocation11], 1
    %2367 = vsyncpa %s2366, 1
    %2368 = vsyncpa [#allocation13], 1

</llo_original>
